<compile_context>
chip_gen: v5e
topology: v5e:2x2
jax: 0.10.0
libtpu: 0.0.40
codegen_flags: <defaults>
</compile_context>

<pallas_src>
import jax
import jax.numpy as jnp
import numpy as np
from jax import lax
from jax.experimental import pallas as pl
from jax.experimental.pallas import tpu as pltpu

# ---------------- small, module-consistent hyperparameters ----------------
BATCH = 2
B_PAD = 8              # batch padded to a full sublane tile inside the kernel
FRAME_SIZE = 64        # "4096" in the real model
FRAME_EMBED = 32
HIDDEN1 = 32
WORD_EMBED = 32
HIDDEN2 = 32
NUM_FRAMES = 8         # "60" in the real model
NUM_WORDS = 8          # "30" in the real model
VOCAB_SIZE = 32
VOCAB_PAD = 128        # vocab padded to a full lane tile -> unmasked output store
START_ID = 1           # vocab('<start>')


def _lstm_gate_mask(hidden):
    """Lane mask selecting the 'g' (tanh) gate inside a (B_PAD, 4*hidden) gate tile."""
    lane = lax.broadcasted_iota(jnp.int32, (B_PAD, 4 * hidden), 1)
    return (lane >= 2 * hidden) & (lane < 3 * hidden)


def _lstm_cell(gates, c, hidden, g_mask):
    """PyTorch nn.LSTMCell gate math, gate order (i, f, g, o).

    One full-(B_PAD, 4H) tanh on the EUP per cell: sigmoid lanes are computed as
    0.5*(1 + tanh(x/2)) and blended with the precomputed g-lane mask, so the only
    other transcendental is the unavoidable tanh(c_new).
    """
    t = jnp.tanh(jnp.where(g_mask, gates, 0.5 * gates))
    act = jnp.where(g_mask, t, 0.5 * (t + 1.0))
    i = act[:, 0 * hidden:1 * hidden]
    f = act[:, 1 * hidden:2 * hidden]
    g = act[:, 2 * hidden:3 * hidden]
    o = act[:, 3 * hidden:4 * hidden]
    c_new = f * c + i * g
    h_new = o * jnp.tanh(c_new)
    return h_new, c_new


def decoder_rnn_kernel(video_ref,      # (NF*Bp, FRAME_SIZE)  time-major, batch-padded
                       word_ref,       # (NW*Bp, WORD_EMBED)  teacher-forced word inputs
                       w_fe1_ref, b_fe1_ref,   # fused frame path: (F, 4H1), (1, 4H1)
                       b1_ref,                 # lstm1 merged bias (1, 4H1) (decode phase)
                       w_ih2w_ref, b2_ref,     # lstm2 word-input block: (WE, 4H2), (1, 4H2)
                       w_rec_ref,              # block-diag [w_hh1 0; 0 w_hh2]: (H1+H2, 4H1+4H2)
                       w_ih2h_ref,             # lstm2 h1-input block: (H1, 4H2)
                       w_out_ref, b_out_ref,   # (H2, V_PAD), (1, V_PAD)
                       logits_ref,             # out: (NW*Bp, V_PAD)
                       g1x_scr,                # VMEM (NF*Bp, 4H1)
                       g2x_scr,                # VMEM (NW*Bp, 4H2)
                       h2_scr):                # VMEM (NW*Bp, H2)
    f32 = jnp.float32
    h1d, h2d, bp = HIDDEN1, HIDDEN2, B_PAD
    g1w = 4 * h1d

    # Recurrent weights held as values across the (unrolled) loops.
    # TODO(synk): on v5e/v6e (MRF) pin this RHS in MXU weight staging with
    # pltpu.matmul_push_rhs once before the loops + matmul_acc_lhs/matmul_pop per
    # step to drop the per-step RHS push from the chain; kept portable jnp.dot here.
    w_rec = w_rec_ref[...]
    w_ih2h = w_ih2h_ref[...]

    # ---- hoisted batched projections (off the serial recurrence critical path);
    # ---- frame path is pre-fused (w_fe @ w_ih1, b_fe @ w_ih1 + b1) in the wrapper
    # ---- and all biases are folded in here exactly once ----
    # frame_drop / word_drop / lstm*_drop: identity (eval mode)
    g1x_scr[...] = jnp.dot(video_ref[...], w_fe1_ref[...],
                           preferred_element_type=f32) + b_fe1_ref[...]
    g2x_scr[...] = jnp.dot(word_ref[...], w_ih2w_ref[...],
                           preferred_element_type=f32) + b2_ref[...]

    # hoisted broadcasts / masks (re-used every step, not re-materialized in loops)
    b1_b = jnp.broadcast_to(b1_ref[...], (bp, 4 * h1d))
    b2_b = jnp.broadcast_to(b2_ref[...], (bp, 4 * h2d))
    gmask1 = _lstm_gate_mask(h1d)
    gmask2 = _lstm_gate_mask(h2d)

    def step(hcat, c1, c2, gates1_x, gates2_x):
        # one fused old-state recurrent dot: [h1|h2] @ [[w_hh1,0],[0,w_hh2]] -> (bp, 256)
        rec = jnp.dot(hcat, w_rec, preferred_element_type=f32)
        h1, c1 = _lstm_cell(gates1_x + rec[:, :g1w], c1, h1d, gmask1)
        # only a K=32 dot remains on the h1 -> h2 dependency edge
        gates2 = gates2_x + rec[:, g1w:] + jnp.dot(h1, w_ih2h,
                                                   preferred_element_type=f32)
        h2, c2 = _lstm_cell(gates2, c2, h2d, gmask2)
        return jnp.concatenate([h1, h2], axis=1), c1, c2, h2

    # ---------------- encoding phase over video frames ----------------
    def encode_body(t, carry):
        hcat, c1, c2 = carry
        row = pl.multiple_of(t * bp, bp)
        # lstm2 input = concat(word_pad(=0), h1): word term vanishes -> bare b2.
        hcat, c1, c2, _ = step(hcat, c1, c2, g1x_scr[pl.ds(row, bp), :], b2_b)
        return (hcat, c1, c2)

    init = (jnp.zeros((bp, h1d + h2d), f32),
            jnp.zeros((bp, h1d), f32),
            jnp.zeros((bp, h2d), f32))
    carry = lax.fori_loop(0, NUM_FRAMES, encode_body, init, unroll=True)

    # ---------------- decoding phase over words ----------------
    def decode_body(t, carry):
        hcat, c1, c2 = carry
        row = pl.multiple_of(t * bp, bp)
        # lstm1 input = frame_pad (zeros): input projection reduces to the bias b1.
        hcat, c1, c2, h2 = step(hcat, c1, c2, b1_b, g2x_scr[pl.ds(row, bp), :])
        h2_scr[pl.ds(row, bp), :] = h2          # no per-step logits store
        return (hcat, c1, c2)

    lax.fori_loop(0, NUM_WORDS, decode_body, carry, unroll=True)

    # ---- single batched vocab projection + one lane-dense (64, 128) store ----
    # TODO(synk): at real model sizes (vocab ~10-20k, frame_size=4096) tile this
    # projection over a grid axis on V (dimension_semantics=("parallel",...)), cast
    # w_out to bf16 (f32 accumulate), size the N tile from
    # pltpu.get_tpu_info().vmem_capacity_bytes (v7x: 64 MiB physical / 32 MiB scoped
    # default vs 128 MiB on v5e/v6e), and raise vmem_limit_bytes instead of keeping
    # w_out fully resident.  On v5e keep all gate elementwise math / transcendentals
    # in f32 (no bf16 VPU/EUP there); only the MXU operands go bf16.
    logits_ref[...] = jnp.dot(h2_scr[...], w_out_ref[...],
                              preferred_element_type=f32) + b_out_ref[...]


def make_params(key):
    ks = jax.random.split(key, 12)
    f32 = jnp.float32
    params = dict(
        # frame_embed (stored transposed: (in, out))
        w_fe=jax.random.normal(ks[0], (FRAME_SIZE, FRAME_EMBED), f32)
             * np.sqrt(2.0 / (FRAME_SIZE + FRAME_EMBED)),
        b_fe=jnp.zeros((1, FRAME_EMBED), f32),
        # word embedding table
        word_embed=jax.random.uniform(ks[1], (VOCAB_SIZE, WORD_EMBED), f32, -1.73, 1.73),
        # lstm1 (gates i,f,g,o stacked on the output dim), transposed
        w_ih1=jax.random.uniform(ks[2], (FRAME_EMBED, 4 * HIDDEN1), f32, -0.1, 0.1),
        w_hh1=jax.random.uniform(ks[3], (HIDDEN1, 4 * HIDDEN1), f32, -0.1, 0.1),
        b1=jax.random.uniform(ks[4], (1, 4 * HIDDEN1), f32, -0.1, 0.1),   # b_ih + b_hh merged
        # lstm2: input dim = WORD_EMBED + HIDDEN1, split into the two blocks
        w_ih2w=jax.random.uniform(ks[5], (WORD_EMBED, 4 * HIDDEN2), f32, -0.1, 0.1),
        w_ih2h=jax.random.uniform(ks[6], (HIDDEN1, 4 * HIDDEN2), f32, -0.1, 0.1),
        w_hh2=jax.random.uniform(ks[7], (HIDDEN2, 4 * HIDDEN2), f32, -0.1, 0.1),
        b2=jax.random.uniform(ks[8], (1, 4 * HIDDEN2), f32, -0.1, 0.1),
        # output linear
        w_out=jax.random.uniform(ks[9], (HIDDEN2, VOCAB_SIZE), f32, -0.08, 0.08),
        b_out=jnp.zeros((1, VOCAB_SIZE), f32),
    )
    return params


def _word_inputs(captions, params):
    """Teacher-forced decoder word inputs: [emb(<start>), emb(cap[:,0]), ...]."""
    b = captions.shape[0]
    start = jnp.broadcast_to(params["word_embed"][START_ID][None, None, :],
                             (b, 1, WORD_EMBED))
    prev = params["word_embed"][captions[:, :NUM_WORDS - 1]]        # (B, NW-1, WE)
    word_in = jnp.concatenate([start, prev], axis=1)                # (B, NW, WE)
    return jnp.transpose(word_in, (1, 0, 2))                        # (NW, B, WE)


@jax.jit
def decoder_rnn_forward(video_feats, captions, params):
    """video_feats: (B, NUM_FRAMES, FRAME_SIZE); captions: (B, NUM_WORDS) int32.
    Returns logits (B, NUM_WORDS, VOCAB_SIZE) — forward() with full teacher forcing."""
    # TODO(synk): python `random.random() < teacher_forcing_ratio` coin flips and the
    # data-dependent `captions[:, i].sum() == 0` early break are not expressible as a
    # static Pallas program; deterministic full teacher forcing over NUM_WORDS is used.
    b = video_feats.shape[0]
    pad = B_PAD - b

    video_tm = jnp.transpose(video_feats, (1, 0, 2)).astype(jnp.float32)   # (NF, B, F)
    video_flat = jnp.pad(video_tm, ((0, 0), (0, pad), (0, 0))
                         ).reshape(NUM_FRAMES * B_PAD, FRAME_SIZE)

    word_tm = _word_inputs(captions, params).astype(jnp.float32)           # (NW, B, WE)
    word_flat = jnp.pad(word_tm, ((0, 0), (0, pad), (0, 0))
                        ).reshape(NUM_WORDS * B_PAD, WORD_EMBED)

    # pre-fused frame path (frame_drop is identity in eval):
    #   video @ (w_fe @ w_ih1) + (b_fe @ w_ih1 + b1)
    # TODO(synk): at real sizes where 4*H1 >> FRAME_EMBED keep the two-step form
    # (the fused weight costs extra FLOPs there); at toy sizes this is a straight win.
    w_fe_ih1 = params["w_fe"] @ params["w_ih1"]                     # (F, 4H1)
    b_fe_ih1 = params["b_fe"] @ params["w_ih1"] + params["b1"]      # (1, 4H1)

    # fused block-diagonal recurrent weight  [[w_hh1, 0], [0, w_hh2]]  (H1+H2, 4H1+4H2)
    z12 = jnp.zeros((HIDDEN1, 4 * HIDDEN2), jnp.float32)
    z21 = jnp.zeros((HIDDEN2, 4 * HIDDEN1), jnp.float32)
    w_rec = jnp.concatenate(
        [jnp.concatenate([params["w_hh1"], z12], axis=1),
         jnp.concatenate([z21, params["w_hh2"]], axis=1)], axis=0)

    # lane-padded output head
    w_out_p = jnp.pad(params["w_out"], ((0, 0), (0, VOCAB_PAD - VOCAB_SIZE)))
    b_out_p = jnp.pad(params["b_out"], ((0, 0), (0, VOCAB_PAD - VOCAB_SIZE)))
    # TODO(synk): at real model dims cast the MXU operands to bf16 (f32 accumulation);
    # kept f32 here for a tight check at toy sizes.

    vmem = pl.BlockSpec(memory_space=pltpu.MemorySpace.VMEM)
    operands = (video_flat, word_flat,
                w_fe_ih1, b_fe_ih1,
                params["b1"],
                params["w_ih2w"], params["b2"],
                w_rec, params["w_ih2h"],
                w_out_p, b_out_p)

    # advisory cost hint so XLA overlaps the surrounding transpose/pad/gather ops
    steps = NUM_FRAMES + NUM_WORDS
    flops = (2 * (NUM_FRAMES * B_PAD) * FRAME_SIZE * (4 * HIDDEN1)
             + 2 * (NUM_WORDS * B_PAD) * WORD_EMBED * (4 * HIDDEN2)
             + 2 * (NUM_WORDS * B_PAD) * HIDDEN2 * VOCAB_PAD
             + steps * (2 * B_PAD * (HIDDEN1 + HIDDEN2) * (4 * HIDDEN1 + 4 * HIDDEN2)
                        + 2 * B_PAD * HIDDEN1 * 4 * HIDDEN2))
    transcend = steps * (B_PAD * 4 * HIDDEN1 + B_PAD * HIDDEN1
                         + B_PAD * 4 * HIDDEN2 + B_PAD * HIDDEN2)
    bytes_accessed = (sum(int(np.prod(a.shape)) * a.dtype.itemsize for a in operands)
                      + NUM_WORDS * B_PAD * VOCAB_PAD * 4)
    cost = pl.CostEstimate(flops=flops, transcendentals=transcend,
                           bytes_accessed=bytes_accessed)

    logits_flat = pl.pallas_call(
        decoder_rnn_kernel,
        out_shape=jax.ShapeDtypeStruct((NUM_WORDS * B_PAD, VOCAB_PAD), jnp.float32),
        in_specs=[vmem] * len(operands),
        out_specs=vmem,
        scratch_shapes=[
            pltpu.VMEM((NUM_FRAMES * B_PAD, 4 * HIDDEN1), jnp.float32),
            pltpu.VMEM((NUM_WORDS * B_PAD, 4 * HIDDEN2), jnp.float32),
            pltpu.VMEM((NUM_WORDS * B_PAD, HIDDEN2), jnp.float32),
        ],
        cost_estimate=cost,
    )(*operands)

    logits = logits_flat.reshape(NUM_WORDS, B_PAD, VOCAB_PAD)[:, :b, :VOCAB_SIZE]
    return jnp.transpose(logits, (1, 0, 2))                          # (B, NW, V)


# ---------------- pure-JAX reference (same math) for verification ----------------
def reference_forward(video_feats, captions, params):
    video_tm = jnp.transpose(video_feats, (1, 0, 2)).astype(jnp.float32)
    word_in = _word_inputs(captions, params).astype(jnp.float32)

    def cell(gx, h, c, w_hh, b, hd):
        gates = gx + h @ w_hh + b
        i = jax.nn.sigmoid(gates[:, :hd])
        f = jax.nn.sigmoid(gates[:, hd:2 * hd])
        g = jnp.tanh(gates[:, 2 * hd:3 * hd])
        o = jax.nn.sigmoid(gates[:, 3 * hd:])
        c = f * c + i * g
        return o * jnp.tanh(c), c

    h1 = c1 = jnp.zeros((BATCH, HIDDEN1), jnp.float32)
    h2 = c2 = jnp.zeros((BATCH, HIDDEN2), jnp.float32)
    for t in range(NUM_FRAMES):
        v = video_tm[t] @ params["w_fe"] + params["b_fe"]
        h1, c1 = cell(v @ params["w_ih1"], h1, c1, params["w_hh1"], params["b1"], HIDDEN1)
        h2, c2 = cell(h1 @ params["w_ih2h"], h2, c2, params["w_hh2"], params["b2"], HIDDEN2)
    outs = []
    for t in range(NUM_WORDS):
        h1, c1 = cell(jnp.zeros((BATCH, 4 * HIDDEN1)), h1, c1,
                      params["w_hh1"], params["b1"], HIDDEN1)
        gx = word_in[t] @ params["w_ih2w"] + h1 @ params["w_ih2h"]
        h2, c2 = cell(gx, h2, c2, params["w_hh2"], params["b2"], HIDDEN2)
        outs.append(h2 @ params["w_out"] + params["b_out"])
    return jnp.transpose(jnp.stack(outs, axis=0), (1, 0, 2))


if __name__ == "__main__":
    key = jax.random.PRNGKey(0)
    k_p, k_v, k_c = jax.random.split(key, 3)
    params = make_params(k_p)
    video_feats = jax.random.normal(k_v, (BATCH, NUM_FRAMES, FRAME_SIZE), jnp.float32)
    captions = jax.random.randint(k_c, (BATCH, NUM_WORDS), 1, VOCAB_SIZE, jnp.int32)

    logits = decoder_rnn_forward(video_feats, captions, params)
    logits = jax.block_until_ready(logits)

    ref = reference_forward(video_feats, captions, params)
    np.testing.assert_allclose(np.asarray(logits), np.asarray(ref), rtol=2e-3, atol=2e-3)
    assert logits.shape == (BATCH, NUM_WORDS, VOCAB_SIZE)
    print("KERNEL_OK")
</pallas_src>

<mosaic_0001>
module attributes {stable_mosaic.version = 11 : i64} {
  func.func @decoder_rnn_kernel(%arg0: memref<64x64xf32, #tpu.memory_space<vmem>>, %arg1: memref<64x32xf32, #tpu.memory_space<vmem>>, %arg2: memref<64x128xf32, #tpu.memory_space<vmem>>, %arg3: memref<1x128xf32, #tpu.memory_space<vmem>>, %arg4: memref<1x128xf32, #tpu.memory_space<vmem>>, %arg5: memref<32x128xf32, #tpu.memory_space<vmem>>, %arg6: memref<1x128xf32, #tpu.memory_space<vmem>>, %arg7: memref<64x256xf32, #tpu.memory_space<vmem>>, %arg8: memref<32x128xf32, #tpu.memory_space<vmem>>, %arg9: memref<32x128xf32, #tpu.memory_space<vmem>>, %arg10: memref<1x128xf32, #tpu.memory_space<vmem>>, %arg11: memref<64x128xf32, #tpu.memory_space<vmem>>, %arg12: memref<64x128xf32, #tpu.memory_space<vmem>>, %arg13: memref<64x128xf32, #tpu.memory_space<vmem>>, %arg14: memref<64x32xf32, #tpu.memory_space<vmem>>) attributes {dimension_semantics = [], scalar_prefetch = 0 : i64, scratch_operands = 3 : i64, tpu.core_type = #tpu.core_type<tc>} {
    %c0 = arith.constant 0 : index
    %c0_0 = arith.constant 0 : index
    %0 = vector.load %arg7[%c0, %c0_0] : memref<64x256xf32, #tpu.memory_space<vmem>>, vector<64x256xf32>
    %c0_1 = arith.constant 0 : index
    %c0_2 = arith.constant 0 : index
    %1 = vector.load %arg8[%c0_1, %c0_2] : memref<32x128xf32, #tpu.memory_space<vmem>>, vector<32x128xf32>
    %c0_3 = arith.constant 0 : index
    %c0_4 = arith.constant 0 : index
    %2 = vector.load %arg0[%c0_3, %c0_4] : memref<64x64xf32, #tpu.memory_space<vmem>>, vector<64x64xf32>
    %c0_5 = arith.constant 0 : index
    %c0_6 = arith.constant 0 : index
    %3 = vector.load %arg2[%c0_5, %c0_6] : memref<64x128xf32, #tpu.memory_space<vmem>>, vector<64x128xf32>
    %cst = arith.constant dense<0.000000e+00> : vector<64x128xf32>
    %4 = tpu.matmul %2, %3, %cst {dimension_numbers = #tpu.dot_dimension_numbers<[1], [0], [0], [1], [0, 0, 1, 1], [], []>} : vector<64x64xf32>, vector<64x128xf32>, vector<64x128xf32> -> vector<64x128xf32>
    %c0_7 = arith.constant 0 : index
    %c0_8 = arith.constant 0 : index
    %5 = vector.load %arg3[%c0_7, %c0_8] : memref<1x128xf32, #tpu.memory_space<vmem>>, vector<1x128xf32>
    %6 = vector.broadcast %5 : vector<1x128xf32> to vector<64x128xf32>
    %7 = arith.addf %4, %6 : vector<64x128xf32>
    %c0_9 = arith.constant 0 : index
    %c0_10 = arith.constant 0 : index
    %8 = vector.load %arg12[%c0_9, %c0_10] : memref<64x128xf32, #tpu.memory_space<vmem>>, vector<64x128xf32>
    tpu.vector_store %arg12[%c0_9, %c0_10], %7 {strides = array<i32>} : memref<64x128xf32, #tpu.memory_space<vmem>>, vector<64x128xf32>,
    %c0_11 = arith.constant 0 : index
    %c0_12 = arith.constant 0 : index
    %9 = vector.load %arg1[%c0_11, %c0_12] : memref<64x32xf32, #tpu.memory_space<vmem>>, vector<64x32xf32>
    %c0_13 = arith.constant 0 : index
    %c0_14 = arith.constant 0 : index
    %10 = vector.load %arg5[%c0_13, %c0_14] : memref<32x128xf32, #tpu.memory_space<vmem>>, vector<32x128xf32>
    %cst_15 = arith.constant dense<0.000000e+00> : vector<64x128xf32>
    %11 = tpu.matmul %9, %10, %cst_15 {dimension_numbers = #tpu.dot_dimension_numbers<[1], [0], [0], [1], [0, 0, 1, 1], [], []>} : vector<64x32xf32>, vector<32x128xf32>, vector<64x128xf32> -> vector<64x128xf32>
    %c0_16 = arith.constant 0 : index
    %c0_17 = arith.constant 0 : index
    %12 = vector.load %arg6[%c0_16, %c0_17] : memref<1x128xf32, #tpu.memory_space<vmem>>, vector<1x128xf32>
    %13 = vector.broadcast %12 : vector<1x128xf32> to vector<64x128xf32>
    %14 = arith.addf %11, %13 : vector<64x128xf32>
    %c0_18 = arith.constant 0 : index
    %c0_19 = arith.constant 0 : index
    %15 = vector.load %arg13[%c0_18, %c0_19] : memref<64x128xf32, #tpu.memory_space<vmem>>, vector<64x128xf32>
    tpu.vector_store %arg13[%c0_18, %c0_19], %14 {strides = array<i32>} : memref<64x128xf32, #tpu.memory_space<vmem>>, vector<64x128xf32>,
    %c0_20 = arith.constant 0 : index
    %c0_21 = arith.constant 0 : index
    %16 = vector.load %arg4[%c0_20, %c0_21] : memref<1x128xf32, #tpu.memory_space<vmem>>, vector<1x128xf32>
    %17 = vector.shape_cast %16 : vector<1x128xf32> to vector<1x128xf32>
    %18 = vector.broadcast %17 : vector<1x128xf32> to vector<8x128xf32>
    %c0_22 = arith.constant 0 : index
    %c0_23 = arith.constant 0 : index
    %19 = vector.load %arg6[%c0_22, %c0_23] : memref<1x128xf32, #tpu.memory_space<vmem>>, vector<1x128xf32>
    %20 = vector.shape_cast %19 : vector<1x128xf32> to vector<1x128xf32>
    %21 = vector.broadcast %20 : vector<1x128xf32> to vector<8x128xf32>
    %22 = tpu.iota {dimensions = array<i32: 1>} : vector<8x128xi32>
    %c64_i32 = arith.constant 64 : i32
    %23 = vector.broadcast %c64_i32 : i32 to vector<8x128xi32>
    %24 = arith.cmpi sge, %22, %23 : vector<8x128xi32>
    %c96_i32 = arith.constant 96 : i32
    %25 = vector.broadcast %c96_i32 : i32 to vector<8x128xi32>
    %26 = arith.cmpi slt, %22, %25 : vector<8x128xi32>
    %27 = arith.andi %24, %26 : vector<8x128xi1>
    %28 = tpu.iota {dimensions = array<i32: 1>} : vector<8x128xi32>
    %c64_i32_24 = arith.constant 64 : i32
    %29 = vector.broadcast %c64_i32_24 : i32 to vector<8x128xi32>
    %30 = arith.cmpi sge, %28, %29 : vector<8x128xi32>
    %c96_i32_25 = arith.constant 96 : i32
    %31 = vector.broadcast %c96_i32_25 : i32 to vector<8x128xi32>
    %32 = arith.cmpi slt, %28, %31 : vector<8x128xi32>
    %33 = arith.andi %30, %32 : vector<8x128xi1>
    %cst_26 = arith.constant 0.000000e+00 : f32
    %34 = vector.broadcast %cst_26 : f32 to vector<8x64xf32>
    %cst_27 = arith.constant 0.000000e+00 : f32
    %35 = vector.broadcast %cst_27 : f32 to vector<8x32xf32>
    %cst_28 = arith.constant 0.000000e+00 : f32
    %36 = vector.broadcast %cst_28 : f32 to vector<8x32xf32>
    %c0_i32 = arith.constant 0 : i32
    %c8_i32 = arith.constant 8 : i32
    %37 = arith.muli %c0_i32, %c8_i32 : i32
    %38 = tpu.assume_multiple %37, 8 : i32
    %39 = arith.index_cast %38 : i32 to index
    %c0_29 = arith.constant 0 : index
    %40 = vector.load %arg12[%39, %c0_29] : memref<64x128xf32, #tpu.memory_space<vmem>>, vector<8x128xf32>
    %cst_30 = arith.constant dense<0.000000e+00> : vector<8x256xf32>
    %41 = tpu.matmul %34, %0, %cst_30 {dimension_numbers = #tpu.dot_dimension_numbers<[1], [0], [0], [1], [0, 0, 1, 1], [], []>} : vector<8x64xf32>, vector<64x256xf32>, vector<8x256xf32> -> vector<8x256xf32>
    %42 = vector.extract_strided_slice %41 {offsets = [0, 0], sizes = [8, 128], strides = [1, 1]} : vector<8x256xf32> to vector<8x128xf32>
    %43 = arith.addf %40, %42 : vector<8x128xf32>
    %cst_31 = arith.constant 5.000000e-01 : f32
    %44 = vector.broadcast %cst_31 : f32 to vector<8x128xf32>
    %45 = arith.mulf %44, %43 : vector<8x128xf32>
    %46 = arith.select %27, %43, %45 : vector<8x128xi1>, vector<8x128xf32>
    %47 = math.tanh %46 : vector<8x128xf32>
    %cst_32 = arith.constant 1.000000e+00 : f32
    %48 = vector.broadcast %cst_32 : f32 to vector<8x128xf32>
    %49 = arith.addf %47, %48 : vector<8x128xf32>
    %cst_33 = arith.constant 5.000000e-01 : f32
    %50 = vector.broadcast %cst_33 : f32 to vector<8x128xf32>
    %51 = arith.mulf %50, %49 : vector<8x128xf32>
    %52 = arith.select %27, %47, %51 : vector<8x128xi1>, vector<8x128xf32>
    %53 = vector.extract_strided_slice %52 {offsets = [0, 0], sizes = [8, 32], strides = [1, 1]} : vector<8x128xf32> to vector<8x32xf32>
    %54 = vector.extract_strided_slice %52 {offsets = [0, 32], sizes = [8, 32], strides = [1, 1]} : vector<8x128xf32> to vector<8x32xf32>
    %55 = vector.extract_strided_slice %52 {offsets = [0, 64], sizes = [8, 32], strides = [1, 1]} : vector<8x128xf32> to vector<8x32xf32>
    %56 = vector.extract_strided_slice %52 {offsets = [0, 96], sizes = [8, 32], strides = [1, 1]} : vector<8x128xf32> to vector<8x32xf32>
    %57 = arith.mulf %54, %35 : vector<8x32xf32>
    %58 = arith.mulf %53, %55 : vector<8x32xf32>
    %59 = arith.addf %57, %58 : vector<8x32xf32>
    %60 = math.tanh %59 : vector<8x32xf32>
    %61 = arith.mulf %56, %60 : vector<8x32xf32>
    %62 = vector.extract_strided_slice %41 {offsets = [0, 128], sizes = [8, 128], strides = [1, 1]} : vector<8x256xf32> to vector<8x128xf32>
    %63 = arith.addf %21, %62 : vector<8x128xf32>
    %cst_34 = arith.constant dense<0.000000e+00> : vector<8x128xf32>
    %64 = tpu.matmul %61, %1, %cst_34 {dimension_numbers = #tpu.dot_dimension_numbers<[1], [0], [0], [1], [0, 0, 1, 1], [], []>} : vector<8x32xf32>, vector<32x128xf32>, vector<8x128xf32> -> vector<8x128xf32>
    %65 = arith.addf %63, %64 : vector<8x128xf32>
    %cst_35 = arith.constant 5.000000e-01 : f32
    %66 = vector.broadcast %cst_35 : f32 to vector<8x128xf32>
    %67 = arith.mulf %66, %65 : vector<8x128xf32>
    %68 = arith.select %33, %65, %67 : vector<8x128xi1>, vector<8x128xf32>
    %69 = math.tanh %68 : vector<8x128xf32>
    %cst_36 = arith.constant 1.000000e+00 : f32
    %70 = vector.broadcast %cst_36 : f32 to vector<8x128xf32>
    %71 = arith.addf %69, %70 : vector<8x128xf32>
    %cst_37 = arith.constant 5.000000e-01 : f32
    %72 = vector.broadcast %cst_37 : f32 to vector<8x128xf32>
    %73 = arith.mulf %72, %71 : vector<8x128xf32>
    %74 = arith.select %33, %69, %73 : vector<8x128xi1>, vector<8x128xf32>
    %75 = vector.extract_strided_slice %74 {offsets = [0, 0], sizes = [8, 32], strides = [1, 1]} : vector<8x128xf32> to vector<8x32xf32>
    %76 = vector.extract_strided_slice %74 {offsets = [0, 32], sizes = [8, 32], strides = [1, 1]} : vector<8x128xf32> to vector<8x32xf32>
    %77 = vector.extract_strided_slice %74 {offsets = [0, 64], sizes = [8, 32], strides = [1, 1]} : vector<8x128xf32> to vector<8x32xf32>
    %78 = vector.extract_strided_slice %74 {offsets = [0, 96], sizes = [8, 32], strides = [1, 1]} : vector<8x128xf32> to vector<8x32xf32>
    %79 = arith.mulf %76, %36 : vector<8x32xf32>
    %80 = arith.mulf %75, %77 : vector<8x32xf32>
    %81 = arith.addf %79, %80 : vector<8x32xf32>
    %82 = math.tanh %81 : vector<8x32xf32>
    %83 = arith.mulf %78, %82 : vector<8x32xf32>
    %84 = tpu.concatenate %61, %83 in 1 : vector<8x32xf32>, vector<8x32xf32> -> vector<8x64xf32>
    %c1_i32 = arith.constant 1 : i32
    %c8_i32_38 = arith.constant 8 : i32
    %85 = arith.muli %c1_i32, %c8_i32_38 : i32
    %86 = tpu.assume_multiple %85, 8 : i32
    %87 = arith.index_cast %86 : i32 to index
    %c0_39 = arith.constant 0 : index
    %88 = vector.load %arg12[%87, %c0_39] : memref<64x128xf32, #tpu.memory_space<vmem>>, vector<8x128xf32>
    %cst_40 = arith.constant dense<0.000000e+00> : vector<8x256xf32>
    %89 = tpu.matmul %84, %0, %cst_40 {dimension_numbers = #tpu.dot_dimension_numbers<[1], [0], [0], [1], [0, 0, 1, 1], [], []>} : vector<8x64xf32>, vector<64x256xf32>, vector<8x256xf32> -> vector<8x256xf32>
    %90 = vector.extract_strided_slice %89 {offsets = [0, 0], sizes = [8, 128], strides = [1, 1]} : vector<8x256xf32> to vector<8x128xf32>
    %91 = arith.addf %88, %90 : vector<8x128xf32>
    %cst_41 = arith.constant 5.000000e-01 : f32
    %92 = vector.broadcast %cst_41 : f32 to vector<8x128xf32>
    %93 = arith.mulf %92, %91 : vector<8x128xf32>
    %94 = arith.select %27, %91, %93 : vector<8x128xi1>, vector<8x128xf32>
    %95 = math.tanh %94 : vector<8x128xf32>
    %cst_42 = arith.constant 1.000000e+00 : f32
    %96 = vector.broadcast %cst_42 : f32 to vector<8x128xf32>
    %97 = arith.addf %95, %96 : vector<8x128xf32>
    %cst_43 = arith.constant 5.000000e-01 : f32
    %98 = vector.broadcast %cst_43 : f32 to vector<8x128xf32>
    %99 = arith.mulf %98, %97 : vector<8x128xf32>
    %100 = arith.select %27, %95, %99 : vector<8x128xi1>, vector<8x128xf32>
    %101 = vector.extract_strided_slice %100 {offsets = [0, 0], sizes = [8, 32], strides = [1, 1]} : vector<8x128xf32> to vector<8x32xf32>
    %102 = vector.extract_strided_slice %100 {offsets = [0, 32], sizes = [8, 32], strides = [1, 1]} : vector<8x128xf32> to vector<8x32xf32>
    %103 = vector.extract_strided_slice %100 {offsets = [0, 64], sizes = [8, 32], strides = [1, 1]} : vector<8x128xf32> to vector<8x32xf32>
    %104 = vector.extract_strided_slice %100 {offsets = [0, 96], sizes = [8, 32], strides = [1, 1]} : vector<8x128xf32> to vector<8x32xf32>
    %105 = arith.mulf %102, %59 : vector<8x32xf32>
    %106 = arith.mulf %101, %103 : vector<8x32xf32>
    %107 = arith.addf %105, %106 : vector<8x32xf32>
    %108 = math.tanh %107 : vector<8x32xf32>
    %109 = arith.mulf %104, %108 : vector<8x32xf32>
    %110 = vector.extract_strided_slice %89 {offsets = [0, 128], sizes = [8, 128], strides = [1, 1]} : vector<8x256xf32> to vector<8x128xf32>
    %111 = arith.addf %21, %110 : vector<8x128xf32>
    %cst_44 = arith.constant dense<0.000000e+00> : vector<8x128xf32>
    %112 = tpu.matmul %109, %1, %cst_44 {dimension_numbers = #tpu.dot_dimension_numbers<[1], [0], [0], [1], [0, 0, 1, 1], [], []>} : vector<8x32xf32>, vector<32x128xf32>, vector<8x128xf32> -> vector<8x128xf32>
    %113 = arith.addf %111, %112 : vector<8x128xf32>
    %cst_45 = arith.constant 5.000000e-01 : f32
    %114 = vector.broadcast %cst_45 : f32 to vector<8x128xf32>
    %115 = arith.mulf %114, %113 : vector<8x128xf32>
    %116 = arith.select %33, %113, %115 : vector<8x128xi1>, vector<8x128xf32>
    %117 = math.tanh %116 : vector<8x128xf32>
    %cst_46 = arith.constant 1.000000e+00 : f32
    %118 = vector.broadcast %cst_46 : f32 to vector<8x128xf32>
    %119 = arith.addf %117, %118 : vector<8x128xf32>
    %cst_47 = arith.constant 5.000000e-01 : f32
    %120 = vector.broadcast %cst_47 : f32 to vector<8x128xf32>
    %121 = arith.mulf %120, %119 : vector<8x128xf32>
    %122 = arith.select %33, %117, %121 : vector<8x128xi1>, vector<8x128xf32>
    %123 = vector.extract_strided_slice %122 {offsets = [0, 0], sizes = [8, 32], strides = [1, 1]} : vector<8x128xf32> to vector<8x32xf32>
    %124 = vector.extract_strided_slice %122 {offsets = [0, 32], sizes = [8, 32], strides = [1, 1]} : vector<8x128xf32> to vector<8x32xf32>
    %125 = vector.extract_strided_slice %122 {offsets = [0, 64], sizes = [8, 32], strides = [1, 1]} : vector<8x128xf32> to vector<8x32xf32>
    %126 = vector.extract_strided_slice %122 {offsets = [0, 96], sizes = [8, 32], strides = [1, 1]} : vector<8x128xf32> to vector<8x32xf32>
    %127 = arith.mulf %124, %81 : vector<8x32xf32>
    %128 = arith.mulf %123, %125 : vector<8x32xf32>
    %129 = arith.addf %127, %128 : vector<8x32xf32>
    %130 = math.tanh %129 : vector<8x32xf32>
    %131 = arith.mulf %126, %130 : vector<8x32xf32>
    %132 = tpu.concatenate %109, %131 in 1 : vector<8x32xf32>, vector<8x32xf32> -> vector<8x64xf32>
    %c2_i32 = arith.constant 2 : i32
    %c8_i32_48 = arith.constant 8 : i32
    %133 = arith.muli %c2_i32, %c8_i32_48 : i32
    %134 = tpu.assume_multiple %133, 8 : i32
    %135 = arith.index_cast %134 : i32 to index
    %c0_49 = arith.constant 0 : index
    %136 = vector.load %arg12[%135, %c0_49] : memref<64x128xf32, #tpu.memory_space<vmem>>, vector<8x128xf32>
    %cst_50 = arith.constant dense<0.000000e+00> : vector<8x256xf32>
    %137 = tpu.matmul %132, %0, %cst_50 {dimension_numbers = #tpu.dot_dimension_numbers<[1], [0], [0], [1], [0, 0, 1, 1], [], []>} : vector<8x64xf32>, vector<64x256xf32>, vector<8x256xf32> -> vector<8x256xf32>
    %138 = vector.extract_strided_slice %137 {offsets = [0, 0], sizes = [8, 128], strides = [1, 1]} : vector<8x256xf32> to vector<8x128xf32>
    %139 = arith.addf %136, %138 : vector<8x128xf32>
    %cst_51 = arith.constant 5.000000e-01 : f32
    %140 = vector.broadcast %cst_51 : f32 to vector<8x128xf32>
    %141 = arith.mulf %140, %139 : vector<8x128xf32>
    %142 = arith.select %27, %139, %141 : vector<8x128xi1>, vector<8x128xf32>
    %143 = math.tanh %142 : vector<8x128xf32>
    %cst_52 = arith.constant 1.000000e+00 : f32
    %144 = vector.broadcast %cst_52 : f32 to vector<8x128xf32>
    %145 = arith.addf %143, %144 : vector<8x128xf32>
    %cst_53 = arith.constant 5.000000e-01 : f32
    %146 = vector.broadcast %cst_53 : f32 to vector<8x128xf32>
    %147 = arith.mulf %146, %145 : vector<8x128xf32>
    %148 = arith.select %27, %143, %147 : vector<8x128xi1>, vector<8x128xf32>
    %149 = vector.extract_strided_slice %148 {offsets = [0, 0], sizes = [8, 32], strides = [1, 1]} : vector<8x128xf32> to vector<8x32xf32>
    %150 = vector.extract_strided_slice %148 {offsets = [0, 32], sizes = [8, 32], strides = [1, 1]} : vector<8x128xf32> to vector<8x32xf32>
    %151 = vector.extract_strided_slice %148 {offsets = [0, 64], sizes = [8, 32], strides = [1, 1]} : vector<8x128xf32> to vector<8x32xf32>
    %152 = vector.extract_strided_slice %148 {offsets = [0, 96], sizes = [8, 32], strides = [1, 1]} : vector<8x128xf32> to vector<8x32xf32>
    %153 = arith.mulf %150, %107 : vector<8x32xf32>
    %154 = arith.mulf %149, %151 : vector<8x32xf32>
    %155 = arith.addf %153, %154 : vector<8x32xf32>
    %156 = math.tanh %155 : vector<8x32xf32>
    %157 = arith.mulf %152, %156 : vector<8x32xf32>
    %158 = vector.extract_strided_slice %137 {offsets = [0, 128], sizes = [8, 128], strides = [1, 1]} : vector<8x256xf32> to vector<8x128xf32>
    %159 = arith.addf %21, %158 : vector<8x128xf32>
    %cst_54 = arith.constant dense<0.000000e+00> : vector<8x128xf32>
    %160 = tpu.matmul %157, %1, %cst_54 {dimension_numbers = #tpu.dot_dimension_numbers<[1], [0], [0], [1], [0, 0, 1, 1], [], []>} : vector<8x32xf32>, vector<32x128xf32>, vector<8x128xf32> -> vector<8x128xf32>
    %161 = arith.addf %159, %160 : vector<8x128xf32>
    %cst_55 = arith.constant 5.000000e-01 : f32
    %162 = vector.broadcast %cst_55 : f32 to vector<8x128xf32>
    %163 = arith.mulf %162, %161 : vector<8x128xf32>
    %164 = arith.select %33, %161, %163 : vector<8x128xi1>, vector<8x128xf32>
    %165 = math.tanh %164 : vector<8x128xf32>
    %cst_56 = arith.constant 1.000000e+00 : f32
    %166 = vector.broadcast %cst_56 : f32 to vector<8x128xf32>
    %167 = arith.addf %165, %166 : vector<8x128xf32>
    %cst_57 = arith.constant 5.000000e-01 : f32
    %168 = vector.broadcast %cst_57 : f32 to vector<8x128xf32>
    %169 = arith.mulf %168, %167 : vector<8x128xf32>
    %170 = arith.select %33, %165, %169 : vector<8x128xi1>, vector<8x128xf32>
    %171 = vector.extract_strided_slice %170 {offsets = [0, 0], sizes = [8, 32], strides = [1, 1]} : vector<8x128xf32> to vector<8x32xf32>
    %172 = vector.extract_strided_slice %170 {offsets = [0, 32], sizes = [8, 32], strides = [1, 1]} : vector<8x128xf32> to vector<8x32xf32>
    %173 = vector.extract_strided_slice %170 {offsets = [0, 64], sizes = [8, 32], strides = [1, 1]} : vector<8x128xf32> to vector<8x32xf32>
    %174 = vector.extract_strided_slice %170 {offsets = [0, 96], sizes = [8, 32], strides = [1, 1]} : vector<8x128xf32> to vector<8x32xf32>
    %175 = arith.mulf %172, %129 : vector<8x32xf32>
    %176 = arith.mulf %171, %173 : vector<8x32xf32>
    %177 = arith.addf %175, %176 : vector<8x32xf32>
    %178 = math.tanh %177 : vector<8x32xf32>
    %179 = arith.mulf %174, %178 : vector<8x32xf32>
    %180 = tpu.concatenate %157, %179 in 1 : vector<8x32xf32>, vector<8x32xf32> -> vector<8x64xf32>
    %c3_i32 = arith.constant 3 : i32
    %c8_i32_58 = arith.constant 8 : i32
    %181 = arith.muli %c3_i32, %c8_i32_58 : i32
    %182 = tpu.assume_multiple %181, 8 : i32
    %183 = arith.index_cast %182 : i32 to index
    %c0_59 = arith.constant 0 : index
    %184 = vector.load %arg12[%183, %c0_59] : memref<64x128xf32, #tpu.memory_space<vmem>>, vector<8x128xf32>
    %cst_60 = arith.constant dense<0.000000e+00> : vector<8x256xf32>
    %185 = tpu.matmul %180, %0, %cst_60 {dimension_numbers = #tpu.dot_dimension_numbers<[1], [0], [0], [1], [0, 0, 1, 1], [], []>} : vector<8x64xf32>, vector<64x256xf32>, vector<8x256xf32> -> vector<8x256xf32>
    %186 = vector.extract_strided_slice %185 {offsets = [0, 0], sizes = [8, 128], strides = [1, 1]} : vector<8x256xf32> to vector<8x128xf32>
    %187 = arith.addf %184, %186 : vector<8x128xf32>
    %cst_61 = arith.constant 5.000000e-01 : f32
    %188 = vector.broadcast %cst_61 : f32 to vector<8x128xf32>
    %189 = arith.mulf %188, %187 : vector<8x128xf32>
    %190 = arith.select %27, %187, %189 : vector<8x128xi1>, vector<8x128xf32>
    %191 = math.tanh %190 : vector<8x128xf32>
    %cst_62 = arith.constant 1.000000e+00 : f32
    %192 = vector.broadcast %cst_62 : f32 to vector<8x128xf32>
    %193 = arith.addf %191, %192 : vector<8x128xf32>
    %cst_63 = arith.constant 5.000000e-01 : f32
    %194 = vector.broadcast %cst_63 : f32 to vector<8x128xf32>
    %195 = arith.mulf %194, %193 : vector<8x128xf32>
    %196 = arith.select %27, %191, %195 : vector<8x128xi1>, vector<8x128xf32>
    %197 = vector.extract_strided_slice %196 {offsets = [0, 0], sizes = [8, 32], strides = [1, 1]} : vector<8x128xf32> to vector<8x32xf32>
    %198 = vector.extract_strided_slice %196 {offsets = [0, 32], sizes = [8, 32], strides = [1, 1]} : vector<8x128xf32> to vector<8x32xf32>
    %199 = vector.extract_strided_slice %196 {offsets = [0, 64], sizes = [8, 32], strides = [1, 1]} : vector<8x128xf32> to vector<8x32xf32>
    %200 = vector.extract_strided_slice %196 {offsets = [0, 96], sizes = [8, 32], strides = [1, 1]} : vector<8x128xf32> to vector<8x32xf32>
    %201 = arith.mulf %198, %155 : vector<8x32xf32>
    %202 = arith.mulf %197, %199 : vector<8x32xf32>
    %203 = arith.addf %201, %202 : vector<8x32xf32>
    %204 = math.tanh %203 : vector<8x32xf32>
    %205 = arith.mulf %200, %204 : vector<8x32xf32>
    %206 = vector.extract_strided_slice %185 {offsets = [0, 128], sizes = [8, 128], strides = [1, 1]} : vector<8x256xf32> to vector<8x128xf32>
    %207 = arith.addf %21, %206 : vector<8x128xf32>
    %cst_64 = arith.constant dense<0.000000e+00> : vector<8x128xf32>
    %208 = tpu.matmul %205, %1, %cst_64 {dimension_numbers = #tpu.dot_dimension_numbers<[1], [0], [0], [1], [0, 0, 1, 1], [], []>} : vector<8x32xf32>, vector<32x128xf32>, vector<8x128xf32> -> vector<8x128xf32>
    %209 = arith.addf %207, %208 : vector<8x128xf32>
    %cst_65 = arith.constant 5.000000e-01 : f32
    %210 = vector.broadcast %cst_65 : f32 to vector<8x128xf32>
    %211 = arith.mulf %210, %209 : vector<8x128xf32>
    %212 = arith.select %33, %209, %211 : vector<8x128xi1>, vector<8x128xf32>
    %213 = math.tanh %212 : vector<8x128xf32>
    %cst_66 = arith.constant 1.000000e+00 : f32
    %214 = vector.broadcast %cst_66 : f32 to vector<8x128xf32>
    %215 = arith.addf %213, %214 : vector<8x128xf32>
    %cst_67 = arith.constant 5.000000e-01 : f32
    %216 = vector.broadcast %cst_67 : f32 to vector<8x128xf32>
    %217 = arith.mulf %216, %215 : vector<8x128xf32>
    %218 = arith.select %33, %213, %217 : vector<8x128xi1>, vector<8x128xf32>
    %219 = vector.extract_strided_slice %218 {offsets = [0, 0], sizes = [8, 32], strides = [1, 1]} : vector<8x128xf32> to vector<8x32xf32>
    %220 = vector.extract_strided_slice %218 {offsets = [0, 32], sizes = [8, 32], strides = [1, 1]} : vector<8x128xf32> to vector<8x32xf32>
    %221 = vector.extract_strided_slice %218 {offsets = [0, 64], sizes = [8, 32], strides = [1, 1]} : vector<8x128xf32> to vector<8x32xf32>
    %222 = vector.extract_strided_slice %218 {offsets = [0, 96], sizes = [8, 32], strides = [1, 1]} : vector<8x128xf32> to vector<8x32xf32>
    %223 = arith.mulf %220, %177 : vector<8x32xf32>
    %224 = arith.mulf %219, %221 : vector<8x32xf32>
    %225 = arith.addf %223, %224 : vector<8x32xf32>
    %226 = math.tanh %225 : vector<8x32xf32>
    %227 = arith.mulf %222, %226 : vector<8x32xf32>
    %228 = tpu.concatenate %205, %227 in 1 : vector<8x32xf32>, vector<8x32xf32> -> vector<8x64xf32>
    %c4_i32 = arith.constant 4 : i32
    %c8_i32_68 = arith.constant 8 : i32
    %229 = arith.muli %c4_i32, %c8_i32_68 : i32
    %230 = tpu.assume_multiple %229, 8 : i32
    %231 = arith.index_cast %230 : i32 to index
    %c0_69 = arith.constant 0 : index
    %232 = vector.load %arg12[%231, %c0_69] : memref<64x128xf32, #tpu.memory_space<vmem>>, vector<8x128xf32>
    %cst_70 = arith.constant dense<0.000000e+00> : vector<8x256xf32>
    %233 = tpu.matmul %228, %0, %cst_70 {dimension_numbers = #tpu.dot_dimension_numbers<[1], [0], [0], [1], [0, 0, 1, 1], [], []>} : vector<8x64xf32>, vector<64x256xf32>, vector<8x256xf32> -> vector<8x256xf32>
    %234 = vector.extract_strided_slice %233 {offsets = [0, 0], sizes = [8, 128], strides = [1, 1]} : vector<8x256xf32> to vector<8x128xf32>
    %235 = arith.addf %232, %234 : vector<8x128xf32>
    %cst_71 = arith.constant 5.000000e-01 : f32
    %236 = vector.broadcast %cst_71 : f32 to vector<8x128xf32>
    %237 = arith.mulf %236, %235 : vector<8x128xf32>
    %238 = arith.select %27, %235, %237 : vector<8x128xi1>, vector<8x128xf32>
    %239 = math.tanh %238 : vector<8x128xf32>
    %cst_72 = arith.constant 1.000000e+00 : f32
    %240 = vector.broadcast %cst_72 : f32 to vector<8x128xf32>
    %241 = arith.addf %239, %240 : vector<8x128xf32>
    %cst_73 = arith.constant 5.000000e-01 : f32
    %242 = vector.broadcast %cst_73 : f32 to vector<8x128xf32>
    %243 = arith.mulf %242, %241 : vector<8x128xf32>
    %244 = arith.select %27, %239, %243 : vector<8x128xi1>, vector<8x128xf32>
    %245 = vector.extract_strided_slice %244 {offsets = [0, 0], sizes = [8, 32], strides = [1, 1]} : vector<8x128xf32> to vector<8x32xf32>
    %246 = vector.extract_strided_slice %244 {offsets = [0, 32], sizes = [8, 32], strides = [1, 1]} : vector<8x128xf32> to vector<8x32xf32>
    %247 = vector.extract_strided_slice %244 {offsets = [0, 64], sizes = [8, 32], strides = [1, 1]} : vector<8x128xf32> to vector<8x32xf32>
    %248 = vector.extract_strided_slice %244 {offsets = [0, 96], sizes = [8, 32], strides = [1, 1]} : vector<8x128xf32> to vector<8x32xf32>
    %249 = arith.mulf %246, %203 : vector<8x32xf32>
    %250 = arith.mulf %245, %247 : vector<8x32xf32>
    %251 = arith.addf %249, %250 : vector<8x32xf32>
    %252 = math.tanh %251 : vector<8x32xf32>
    %253 = arith.mulf %248, %252 : vector<8x32xf32>
    %254 = vector.extract_strided_slice %233 {offsets = [0, 128], sizes = [8, 128], strides = [1, 1]} : vector<8x256xf32> to vector<8x128xf32>
    %255 = arith.addf %21, %254 : vector<8x128xf32>
    %cst_74 = arith.constant dense<0.000000e+00> : vector<8x128xf32>
    %256 = tpu.matmul %253, %1, %cst_74 {dimension_numbers = #tpu.dot_dimension_numbers<[1], [0], [0], [1], [0, 0, 1, 1], [], []>} : vector<8x32xf32>, vector<32x128xf32>, vector<8x128xf32> -> vector<8x128xf32>
    %257 = arith.addf %255, %256 : vector<8x128xf32>
    %cst_75 = arith.constant 5.000000e-01 : f32
    %258 = vector.broadcast %cst_75 : f32 to vector<8x128xf32>
    %259 = arith.mulf %258, %257 : vector<8x128xf32>
    %260 = arith.select %33, %257, %259 : vector<8x128xi1>, vector<8x128xf32>
    %261 = math.tanh %260 : vector<8x128xf32>
    %cst_76 = arith.constant 1.000000e+00 : f32
    %262 = vector.broadcast %cst_76 : f32 to vector<8x128xf32>
    %263 = arith.addf %261, %262 : vector<8x128xf32>
    %cst_77 = arith.constant 5.000000e-01 : f32
    %264 = vector.broadcast %cst_77 : f32 to vector<8x128xf32>
    %265 = arith.mulf %264, %263 : vector<8x128xf32>
    %266 = arith.select %33, %261, %265 : vector<8x128xi1>, vector<8x128xf32>
    %267 = vector.extract_strided_slice %266 {offsets = [0, 0], sizes = [8, 32], strides = [1, 1]} : vector<8x128xf32> to vector<8x32xf32>
    %268 = vector.extract_strided_slice %266 {offsets = [0, 32], sizes = [8, 32], strides = [1, 1]} : vector<8x128xf32> to vector<8x32xf32>
    %269 = vector.extract_strided_slice %266 {offsets = [0, 64], sizes = [8, 32], strides = [1, 1]} : vector<8x128xf32> to vector<8x32xf32>
    %270 = vector.extract_strided_slice %266 {offsets = [0, 96], sizes = [8, 32], strides = [1, 1]} : vector<8x128xf32> to vector<8x32xf32>
    %271 = arith.mulf %268, %225 : vector<8x32xf32>
    %272 = arith.mulf %267, %269 : vector<8x32xf32>
    %273 = arith.addf %271, %272 : vector<8x32xf32>
    %274 = math.tanh %273 : vector<8x32xf32>
    %275 = arith.mulf %270, %274 : vector<8x32xf32>
    %276 = tpu.concatenate %253, %275 in 1 : vector<8x32xf32>, vector<8x32xf32> -> vector<8x64xf32>
    %c5_i32 = arith.constant 5 : i32
    %c8_i32_78 = arith.constant 8 : i32
    %277 = arith.muli %c5_i32, %c8_i32_78 : i32
    %278 = tpu.assume_multiple %277, 8 : i32
    %279 = arith.index_cast %278 : i32 to index
    %c0_79 = arith.constant 0 : index
    %280 = vector.load %arg12[%279, %c0_79] : memref<64x128xf32, #tpu.memory_space<vmem>>, vector<8x128xf32>
    %cst_80 = arith.constant dense<0.000000e+00> : vector<8x256xf32>
    %281 = tpu.matmul %276, %0, %cst_80 {dimension_numbers = #tpu.dot_dimension_numbers<[1], [0], [0], [1], [0, 0, 1, 1], [], []>} : vector<8x64xf32>, vector<64x256xf32>, vector<8x256xf32> -> vector<8x256xf32>
    %282 = vector.extract_strided_slice %281 {offsets = [0, 0], sizes = [8, 128], strides = [1, 1]} : vector<8x256xf32> to vector<8x128xf32>
    %283 = arith.addf %280, %282 : vector<8x128xf32>
    %cst_81 = arith.constant 5.000000e-01 : f32
    %284 = vector.broadcast %cst_81 : f32 to vector<8x128xf32>
    %285 = arith.mulf %284, %283 : vector<8x128xf32>
    %286 = arith.select %27, %283, %285 : vector<8x128xi1>, vector<8x128xf32>
    %287 = math.tanh %286 : vector<8x128xf32>
    %cst_82 = arith.constant 1.000000e+00 : f32
    %288 = vector.broadcast %cst_82 : f32 to vector<8x128xf32>
    %289 = arith.addf %287, %288 : vector<8x128xf32>
    %cst_83 = arith.constant 5.000000e-01 : f32
    %290 = vector.broadcast %cst_83 : f32 to vector<8x128xf32>
    %291 = arith.mulf %290, %289 : vector<8x128xf32>
    %292 = arith.select %27, %287, %291 : vector<8x128xi1>, vector<8x128xf32>
    %293 = vector.extract_strided_slice %292 {offsets = [0, 0], sizes = [8, 32], strides = [1, 1]} : vector<8x128xf32> to vector<8x32xf32>
    %294 = vector.extract_strided_slice %292 {offsets = [0, 32], sizes = [8, 32], strides = [1, 1]} : vector<8x128xf32> to vector<8x32xf32>
    %295 = vector.extract_strided_slice %292 {offsets = [0, 64], sizes = [8, 32], strides = [1, 1]} : vector<8x128xf32> to vector<8x32xf32>
    %296 = vector.extract_strided_slice %292 {offsets = [0, 96], sizes = [8, 32], strides = [1, 1]} : vector<8x128xf32> to vector<8x32xf32>
    %297 = arith.mulf %294, %251 : vector<8x32xf32>
    %298 = arith.mulf %293, %295 : vector<8x32xf32>
    %299 = arith.addf %297, %298 : vector<8x32xf32>
    %300 = math.tanh %299 : vector<8x32xf32>
    %301 = arith.mulf %296, %300 : vector<8x32xf32>
    %302 = vector.extract_strided_slice %281 {offsets = [0, 128], sizes = [8, 128], strides = [1, 1]} : vector<8x256xf32> to vector<8x128xf32>
    %303 = arith.addf %21, %302 : vector<8x128xf32>
    %cst_84 = arith.constant dense<0.000000e+00> : vector<8x128xf32>
    %304 = tpu.matmul %301, %1, %cst_84 {dimension_numbers = #tpu.dot_dimension_numbers<[1], [0], [0], [1], [0, 0, 1, 1], [], []>} : vector<8x32xf32>, vector<32x128xf32>, vector<8x128xf32> -> vector<8x128xf32>
    %305 = arith.addf %303, %304 : vector<8x128xf32>
    %cst_85 = arith.constant 5.000000e-01 : f32
    %306 = vector.broadcast %cst_85 : f32 to vector<8x128xf32>
    %307 = arith.mulf %306, %305 : vector<8x128xf32>
    %308 = arith.select %33, %305, %307 : vector<8x128xi1>, vector<8x128xf32>
    %309 = math.tanh %308 : vector<8x128xf32>
    %cst_86 = arith.constant 1.000000e+00 : f32
    %310 = vector.broadcast %cst_86 : f32 to vector<8x128xf32>
    %311 = arith.addf %309, %310 : vector<8x128xf32>
    %cst_87 = arith.constant 5.000000e-01 : f32
    %312 = vector.broadcast %cst_87 : f32 to vector<8x128xf32>
    %313 = arith.mulf %312, %311 : vector<8x128xf32>
    %314 = arith.select %33, %309, %313 : vector<8x128xi1>, vector<8x128xf32>
    %315 = vector.extract_strided_slice %314 {offsets = [0, 0], sizes = [8, 32], strides = [1, 1]} : vector<8x128xf32> to vector<8x32xf32>
    %316 = vector.extract_strided_slice %314 {offsets = [0, 32], sizes = [8, 32], strides = [1, 1]} : vector<8x128xf32> to vector<8x32xf32>
    %317 = vector.extract_strided_slice %314 {offsets = [0, 64], sizes = [8, 32], strides = [1, 1]} : vector<8x128xf32> to vector<8x32xf32>
    %318 = vector.extract_strided_slice %314 {offsets = [0, 96], sizes = [8, 32], strides = [1, 1]} : vector<8x128xf32> to vector<8x32xf32>
    %319 = arith.mulf %316, %273 : vector<8x32xf32>
    %320 = arith.mulf %315, %317 : vector<8x32xf32>
    %321 = arith.addf %319, %320 : vector<8x32xf32>
    %322 = math.tanh %321 : vector<8x32xf32>
    %323 = arith.mulf %318, %322 : vector<8x32xf32>
    %324 = tpu.concatenate %301, %323 in 1 : vector<8x32xf32>, vector<8x32xf32> -> vector<8x64xf32>
    %c6_i32 = arith.constant 6 : i32
    %c8_i32_88 = arith.constant 8 : i32
    %325 = arith.muli %c6_i32, %c8_i32_88 : i32
    %326 = tpu.assume_multiple %325, 8 : i32
    %327 = arith.index_cast %326 : i32 to index
    %c0_89 = arith.constant 0 : index
    %328 = vector.load %arg12[%327, %c0_89] : memref<64x128xf32, #tpu.memory_space<vmem>>, vector<8x128xf32>
    %cst_90 = arith.constant dense<0.000000e+00> : vector<8x256xf32>
    %329 = tpu.matmul %324, %0, %cst_90 {dimension_numbers = #tpu.dot_dimension_numbers<[1], [0], [0], [1], [0, 0, 1, 1], [], []>} : vector<8x64xf32>, vector<64x256xf32>, vector<8x256xf32> -> vector<8x256xf32>
    %330 = vector.extract_strided_slice %329 {offsets = [0, 0], sizes = [8, 128], strides = [1, 1]} : vector<8x256xf32> to vector<8x128xf32>
    %331 = arith.addf %328, %330 : vector<8x128xf32>
    %cst_91 = arith.constant 5.000000e-01 : f32
    %332 = vector.broadcast %cst_91 : f32 to vector<8x128xf32>
    %333 = arith.mulf %332, %331 : vector<8x128xf32>
    %334 = arith.select %27, %331, %333 : vector<8x128xi1>, vector<8x128xf32>
    %335 = math.tanh %334 : vector<8x128xf32>
    %cst_92 = arith.constant 1.000000e+00 : f32
    %336 = vector.broadcast %cst_92 : f32 to vector<8x128xf32>
    %337 = arith.addf %335, %336 : vector<8x128xf32>
    %cst_93 = arith.constant 5.000000e-01 : f32
    %338 = vector.broadcast %cst_93 : f32 to vector<8x128xf32>
    %339 = arith.mulf %338, %337 : vector<8x128xf32>
    %340 = arith.select %27, %335, %339 : vector<8x128xi1>, vector<8x128xf32>
    %341 = vector.extract_strided_slice %340 {offsets = [0, 0], sizes = [8, 32], strides = [1, 1]} : vector<8x128xf32> to vector<8x32xf32>
    %342 = vector.extract_strided_slice %340 {offsets = [0, 32], sizes = [8, 32], strides = [1, 1]} : vector<8x128xf32> to vector<8x32xf32>
    %343 = vector.extract_strided_slice %340 {offsets = [0, 64], sizes = [8, 32], strides = [1, 1]} : vector<8x128xf32> to vector<8x32xf32>
    %344 = vector.extract_strided_slice %340 {offsets = [0, 96], sizes = [8, 32], strides = [1, 1]} : vector<8x128xf32> to vector<8x32xf32>
    %345 = arith.mulf %342, %299 : vector<8x32xf32>
    %346 = arith.mulf %341, %343 : vector<8x32xf32>
    %347 = arith.addf %345, %346 : vector<8x32xf32>
    %348 = math.tanh %347 : vector<8x32xf32>
    %349 = arith.mulf %344, %348 : vector<8x32xf32>
    %350 = vector.extract_strided_slice %329 {offsets = [0, 128], sizes = [8, 128], strides = [1, 1]} : vector<8x256xf32> to vector<8x128xf32>
    %351 = arith.addf %21, %350 : vector<8x128xf32>
    %cst_94 = arith.constant dense<0.000000e+00> : vector<8x128xf32>
    %352 = tpu.matmul %349, %1, %cst_94 {dimension_numbers = #tpu.dot_dimension_numbers<[1], [0], [0], [1], [0, 0, 1, 1], [], []>} : vector<8x32xf32>, vector<32x128xf32>, vector<8x128xf32> -> vector<8x128xf32>
    %353 = arith.addf %351, %352 : vector<8x128xf32>
    %cst_95 = arith.constant 5.000000e-01 : f32
    %354 = vector.broadcast %cst_95 : f32 to vector<8x128xf32>
    %355 = arith.mulf %354, %353 : vector<8x128xf32>
    %356 = arith.select %33, %353, %355 : vector<8x128xi1>, vector<8x128xf32>
    %357 = math.tanh %356 : vector<8x128xf32>
    %cst_96 = arith.constant 1.000000e+00 : f32
    %358 = vector.broadcast %cst_96 : f32 to vector<8x128xf32>
    %359 = arith.addf %357, %358 : vector<8x128xf32>
    %cst_97 = arith.constant 5.000000e-01 : f32
    %360 = vector.broadcast %cst_97 : f32 to vector<8x128xf32>
    %361 = arith.mulf %360, %359 : vector<8x128xf32>
    %362 = arith.select %33, %357, %361 : vector<8x128xi1>, vector<8x128xf32>
    %363 = vector.extract_strided_slice %362 {offsets = [0, 0], sizes = [8, 32], strides = [1, 1]} : vector<8x128xf32> to vector<8x32xf32>
    %364 = vector.extract_strided_slice %362 {offsets = [0, 32], sizes = [8, 32], strides = [1, 1]} : vector<8x128xf32> to vector<8x32xf32>
    %365 = vector.extract_strided_slice %362 {offsets = [0, 64], sizes = [8, 32], strides = [1, 1]} : vector<8x128xf32> to vector<8x32xf32>
    %366 = vector.extract_strided_slice %362 {offsets = [0, 96], sizes = [8, 32], strides = [1, 1]} : vector<8x128xf32> to vector<8x32xf32>
    %367 = arith.mulf %364, %321 : vector<8x32xf32>
    %368 = arith.mulf %363, %365 : vector<8x32xf32>
    %369 = arith.addf %367, %368 : vector<8x32xf32>
    %370 = math.tanh %369 : vector<8x32xf32>
    %371 = arith.mulf %366, %370 : vector<8x32xf32>
    %372 = tpu.concatenate %349, %371 in 1 : vector<8x32xf32>, vector<8x32xf32> -> vector<8x64xf32>
    %c7_i32 = arith.constant 7 : i32
    %c8_i32_98 = arith.constant 8 : i32
    %373 = arith.muli %c7_i32, %c8_i32_98 : i32
    %374 = tpu.assume_multiple %373, 8 : i32
    %375 = arith.index_cast %374 : i32 to index
    %c0_99 = arith.constant 0 : index
    %376 = vector.load %arg12[%375, %c0_99] : memref<64x128xf32, #tpu.memory_space<vmem>>, vector<8x128xf32>
    %cst_100 = arith.constant dense<0.000000e+00> : vector<8x256xf32>
    %377 = tpu.matmul %372, %0, %cst_100 {dimension_numbers = #tpu.dot_dimension_numbers<[1], [0], [0], [1], [0, 0, 1, 1], [], []>} : vector<8x64xf32>, vector<64x256xf32>, vector<8x256xf32> -> vector<8x256xf32>
    %378 = vector.extract_strided_slice %377 {offsets = [0, 0], sizes = [8, 128], strides = [1, 1]} : vector<8x256xf32> to vector<8x128xf32>
    %379 = arith.addf %376, %378 : vector<8x128xf32>
    %cst_101 = arith.constant 5.000000e-01 : f32
    %380 = vector.broadcast %cst_101 : f32 to vector<8x128xf32>
    %381 = arith.mulf %380, %379 : vector<8x128xf32>
    %382 = arith.select %27, %379, %381 : vector<8x128xi1>, vector<8x128xf32>
    %383 = math.tanh %382 : vector<8x128xf32>
    %cst_102 = arith.constant 1.000000e+00 : f32
    %384 = vector.broadcast %cst_102 : f32 to vector<8x128xf32>
    %385 = arith.addf %383, %384 : vector<8x128xf32>
    %cst_103 = arith.constant 5.000000e-01 : f32
    %386 = vector.broadcast %cst_103 : f32 to vector<8x128xf32>
    %387 = arith.mulf %386, %385 : vector<8x128xf32>
    %388 = arith.select %27, %383, %387 : vector<8x128xi1>, vector<8x128xf32>
    %389 = vector.extract_strided_slice %388 {offsets = [0, 0], sizes = [8, 32], strides = [1, 1]} : vector<8x128xf32> to vector<8x32xf32>
    %390 = vector.extract_strided_slice %388 {offsets = [0, 32], sizes = [8, 32], strides = [1, 1]} : vector<8x128xf32> to vector<8x32xf32>
    %391 = vector.extract_strided_slice %388 {offsets = [0, 64], sizes = [8, 32], strides = [1, 1]} : vector<8x128xf32> to vector<8x32xf32>
    %392 = vector.extract_strided_slice %388 {offsets = [0, 96], sizes = [8, 32], strides = [1, 1]} : vector<8x128xf32> to vector<8x32xf32>
    %393 = arith.mulf %390, %347 : vector<8x32xf32>
    %394 = arith.mulf %389, %391 : vector<8x32xf32>
    %395 = arith.addf %393, %394 : vector<8x32xf32>
    %396 = math.tanh %395 : vector<8x32xf32>
    %397 = arith.mulf %392, %396 : vector<8x32xf32>
    %398 = vector.extract_strided_slice %377 {offsets = [0, 128], sizes = [8, 128], strides = [1, 1]} : vector<8x256xf32> to vector<8x128xf32>
    %399 = arith.addf %21, %398 : vector<8x128xf32>
    %cst_104 = arith.constant dense<0.000000e+00> : vector<8x128xf32>
    %400 = tpu.matmul %397, %1, %cst_104 {dimension_numbers = #tpu.dot_dimension_numbers<[1], [0], [0], [1], [0, 0, 1, 1], [], []>} : vector<8x32xf32>, vector<32x128xf32>, vector<8x128xf32> -> vector<8x128xf32>
    %401 = arith.addf %399, %400 : vector<8x128xf32>
    %cst_105 = arith.constant 5.000000e-01 : f32
    %402 = vector.broadcast %cst_105 : f32 to vector<8x128xf32>
    %403 = arith.mulf %402, %401 : vector<8x128xf32>
    %404 = arith.select %33, %401, %403 : vector<8x128xi1>, vector<8x128xf32>
    %405 = math.tanh %404 : vector<8x128xf32>
    %cst_106 = arith.constant 1.000000e+00 : f32
    %406 = vector.broadcast %cst_106 : f32 to vector<8x128xf32>
    %407 = arith.addf %405, %406 : vector<8x128xf32>
    %cst_107 = arith.constant 5.000000e-01 : f32
    %408 = vector.broadcast %cst_107 : f32 to vector<8x128xf32>
    %409 = arith.mulf %408, %407 : vector<8x128xf32>
    %410 = arith.select %33, %405, %409 : vector<8x128xi1>, vector<8x128xf32>
    %411 = vector.extract_strided_slice %410 {offsets = [0, 0], sizes = [8, 32], strides = [1, 1]} : vector<8x128xf32> to vector<8x32xf32>
    %412 = vector.extract_strided_slice %410 {offsets = [0, 32], sizes = [8, 32], strides = [1, 1]} : vector<8x128xf32> to vector<8x32xf32>
    %413 = vector.extract_strided_slice %410 {offsets = [0, 64], sizes = [8, 32], strides = [1, 1]} : vector<8x128xf32> to vector<8x32xf32>
    %414 = vector.extract_strided_slice %410 {offsets = [0, 96], sizes = [8, 32], strides = [1, 1]} : vector<8x128xf32> to vector<8x32xf32>
    %415 = arith.mulf %412, %369 : vector<8x32xf32>
    %416 = arith.mulf %411, %413 : vector<8x32xf32>
    %417 = arith.addf %415, %416 : vector<8x32xf32>
    %418 = math.tanh %417 : vector<8x32xf32>
    %419 = arith.mulf %414, %418 : vector<8x32xf32>
    %420 = tpu.concatenate %397, %419 in 1 : vector<8x32xf32>, vector<8x32xf32> -> vector<8x64xf32>
    %c8_i32_108 = arith.constant 8 : i32
    %c0_i32_109 = arith.constant 0 : i32
    %c8_i32_110 = arith.constant 8 : i32
    %421 = arith.muli %c0_i32_109, %c8_i32_110 : i32
    %422 = tpu.assume_multiple %421, 8 : i32
    %423 = arith.index_cast %422 : i32 to index
    %c0_111 = arith.constant 0 : index
    %424 = vector.load %arg13[%423, %c0_111] : memref<64x128xf32, #tpu.memory_space<vmem>>, vector<8x128xf32>
    %cst_112 = arith.constant dense<0.000000e+00> : vector<8x256xf32>
    %425 = tpu.matmul %420, %0, %cst_112 {dimension_numbers = #tpu.dot_dimension_numbers<[1], [0], [0], [1], [0, 0, 1, 1], [], []>} : vector<8x64xf32>, vector<64x256xf32>, vector<8x256xf32> -> vector<8x256xf32>
    %426 = vector.extract_strided_slice %425 {offsets = [0, 0], sizes = [8, 128], strides = [1, 1]} : vector<8x256xf32> to vector<8x128xf32>
    %427 = arith.addf %18, %426 : vector<8x128xf32>
    %cst_113 = arith.constant 5.000000e-01 : f32
    %428 = vector.broadcast %cst_113 : f32 to vector<8x128xf32>
    %429 = arith.mulf %428, %427 : vector<8x128xf32>
    %430 = arith.select %27, %427, %429 : vector<8x128xi1>, vector<8x128xf32>
    %431 = math.tanh %430 : vector<8x128xf32>
    %cst_114 = arith.constant 1.000000e+00 : f32
    %432 = vector.broadcast %cst_114 : f32 to vector<8x128xf32>
    %433 = arith.addf %431, %432 : vector<8x128xf32>
    %cst_115 = arith.constant 5.000000e-01 : f32
    %434 = vector.broadcast %cst_115 : f32 to vector<8x128xf32>
    %435 = arith.mulf %434, %433 : vector<8x128xf32>
    %436 = arith.select %27, %431, %435 : vector<8x128xi1>, vector<8x128xf32>
    %437 = vector.extract_strided_slice %436 {offsets = [0, 0], sizes = [8, 32], strides = [1, 1]} : vector<8x128xf32> to vector<8x32xf32>
    %438 = vector.extract_strided_slice %436 {offsets = [0, 32], sizes = [8, 32], strides = [1, 1]} : vector<8x128xf32> to vector<8x32xf32>
    %439 = vector.extract_strided_slice %436 {offsets = [0, 64], sizes = [8, 32], strides = [1, 1]} : vector<8x128xf32> to vector<8x32xf32>
    %440 = vector.extract_strided_slice %436 {offsets = [0, 96], sizes = [8, 32], strides = [1, 1]} : vector<8x128xf32> to vector<8x32xf32>
    %441 = arith.mulf %438, %395 : vector<8x32xf32>
    %442 = arith.mulf %437, %439 : vector<8x32xf32>
    %443 = arith.addf %441, %442 : vector<8x32xf32>
    %444 = math.tanh %443 : vector<8x32xf32>
    %445 = arith.mulf %440, %444 : vector<8x32xf32>
    %446 = vector.extract_strided_slice %425 {offsets = [0, 128], sizes = [8, 128], strides = [1, 1]} : vector<8x256xf32> to vector<8x128xf32>
    %447 = arith.addf %424, %446 : vector<8x128xf32>
    %cst_116 = arith.constant dense<0.000000e+00> : vector<8x128xf32>
    %448 = tpu.matmul %445, %1, %cst_116 {dimension_numbers = #tpu.dot_dimension_numbers<[1], [0], [0], [1], [0, 0, 1, 1], [], []>} : vector<8x32xf32>, vector<32x128xf32>, vector<8x128xf32> -> vector<8x128xf32>
    %449 = arith.addf %447, %448 : vector<8x128xf32>
    %cst_117 = arith.constant 5.000000e-01 : f32
    %450 = vector.broadcast %cst_117 : f32 to vector<8x128xf32>
    %451 = arith.mulf %450, %449 : vector<8x128xf32>
    %452 = arith.select %33, %449, %451 : vector<8x128xi1>, vector<8x128xf32>
    %453 = math.tanh %452 : vector<8x128xf32>
    %cst_118 = arith.constant 1.000000e+00 : f32
    %454 = vector.broadcast %cst_118 : f32 to vector<8x128xf32>
    %455 = arith.addf %453, %454 : vector<8x128xf32>
    %cst_119 = arith.constant 5.000000e-01 : f32
    %456 = vector.broadcast %cst_119 : f32 to vector<8x128xf32>
    %457 = arith.mulf %456, %455 : vector<8x128xf32>
    %458 = arith.select %33, %453, %457 : vector<8x128xi1>, vector<8x128xf32>
    %459 = vector.extract_strided_slice %458 {offsets = [0, 0], sizes = [8, 32], strides = [1, 1]} : vector<8x128xf32> to vector<8x32xf32>
    %460 = vector.extract_strided_slice %458 {offsets = [0, 32], sizes = [8, 32], strides = [1, 1]} : vector<8x128xf32> to vector<8x32xf32>
    %461 = vector.extract_strided_slice %458 {offsets = [0, 64], sizes = [8, 32], strides = [1, 1]} : vector<8x128xf32> to vector<8x32xf32>
    %462 = vector.extract_strided_slice %458 {offsets = [0, 96], sizes = [8, 32], strides = [1, 1]} : vector<8x128xf32> to vector<8x32xf32>
    %463 = arith.mulf %460, %417 : vector<8x32xf32>
    %464 = arith.mulf %459, %461 : vector<8x32xf32>
    %465 = arith.addf %463, %464 : vector<8x32xf32>
    %466 = math.tanh %465 : vector<8x32xf32>
    %467 = arith.mulf %462, %466 : vector<8x32xf32>
    %468 = tpu.concatenate %445, %467 in 1 : vector<8x32xf32>, vector<8x32xf32> -> vector<8x64xf32>
    %469 = arith.index_cast %422 : i32 to index
    %c0_120 = arith.constant 0 : index
    %470 = vector.load %arg14[%469, %c0_120] : memref<64x32xf32, #tpu.memory_space<vmem>>, vector<8x32xf32>
    tpu.vector_store %arg14[%469, %c0_120], %467 {strides = array<i32>} : memref<64x32xf32, #tpu.memory_space<vmem>>, vector<8x32xf32>,
    %c1_i32_121 = arith.constant 1 : i32
    %c8_i32_122 = arith.constant 8 : i32
    %471 = arith.muli %c1_i32_121, %c8_i32_122 : i32
    %472 = tpu.assume_multiple %471, 8 : i32
    %473 = arith.index_cast %472 : i32 to index
    %c0_123 = arith.constant 0 : index
    %474 = vector.load %arg13[%473, %c0_123] : memref<64x128xf32, #tpu.memory_space<vmem>>, vector<8x128xf32>
    %cst_124 = arith.constant dense<0.000000e+00> : vector<8x256xf32>
    %475 = tpu.matmul %468, %0, %cst_124 {dimension_numbers = #tpu.dot_dimension_numbers<[1], [0], [0], [1], [0, 0, 1, 1], [], []>} : vector<8x64xf32>, vector<64x256xf32>, vector<8x256xf32> -> vector<8x256xf32>
    %476 = vector.extract_strided_slice %475 {offsets = [0, 0], sizes = [8, 128], strides = [1, 1]} : vector<8x256xf32> to vector<8x128xf32>
    %477 = arith.addf %18, %476 : vector<8x128xf32>
    %cst_125 = arith.constant 5.000000e-01 : f32
    %478 = vector.broadcast %cst_125 : f32 to vector<8x128xf32>
    %479 = arith.mulf %478, %477 : vector<8x128xf32>
    %480 = arith.select %27, %477, %479 : vector<8x128xi1>, vector<8x128xf32>
    %481 = math.tanh %480 : vector<8x128xf32>
    %cst_126 = arith.constant 1.000000e+00 : f32
    %482 = vector.broadcast %cst_126 : f32 to vector<8x128xf32>
    %483 = arith.addf %481, %482 : vector<8x128xf32>
    %cst_127 = arith.constant 5.000000e-01 : f32
    %484 = vector.broadcast %cst_127 : f32 to vector<8x128xf32>
    %485 = arith.mulf %484, %483 : vector<8x128xf32>
    %486 = arith.select %27, %481, %485 : vector<8x128xi1>, vector<8x128xf32>
    %487 = vector.extract_strided_slice %486 {offsets = [0, 0], sizes = [8, 32], strides = [1, 1]} : vector<8x128xf32> to vector<8x32xf32>
    %488 = vector.extract_strided_slice %486 {offsets = [0, 32], sizes = [8, 32], strides = [1, 1]} : vector<8x128xf32> to vector<8x32xf32>
    %489 = vector.extract_strided_slice %486 {offsets = [0, 64], sizes = [8, 32], strides = [1, 1]} : vector<8x128xf32> to vector<8x32xf32>
    %490 = vector.extract_strided_slice %486 {offsets = [0, 96], sizes = [8, 32], strides = [1, 1]} : vector<8x128xf32> to vector<8x32xf32>
    %491 = arith.mulf %488, %443 : vector<8x32xf32>
    %492 = arith.mulf %487, %489 : vector<8x32xf32>
    %493 = arith.addf %491, %492 : vector<8x32xf32>
    %494 = math.tanh %493 : vector<8x32xf32>
    %495 = arith.mulf %490, %494 : vector<8x32xf32>
    %496 = vector.extract_strided_slice %475 {offsets = [0, 128], sizes = [8, 128], strides = [1, 1]} : vector<8x256xf32> to vector<8x128xf32>
    %497 = arith.addf %474, %496 : vector<8x128xf32>
    %cst_128 = arith.constant dense<0.000000e+00> : vector<8x128xf32>
    %498 = tpu.matmul %495, %1, %cst_128 {dimension_numbers = #tpu.dot_dimension_numbers<[1], [0], [0], [1], [0, 0, 1, 1], [], []>} : vector<8x32xf32>, vector<32x128xf32>, vector<8x128xf32> -> vector<8x128xf32>
    %499 = arith.addf %497, %498 : vector<8x128xf32>
    %cst_129 = arith.constant 5.000000e-01 : f32
    %500 = vector.broadcast %cst_129 : f32 to vector<8x128xf32>
    %501 = arith.mulf %500, %499 : vector<8x128xf32>
    %502 = arith.select %33, %499, %501 : vector<8x128xi1>, vector<8x128xf32>
    %503 = math.tanh %502 : vector<8x128xf32>
    %cst_130 = arith.constant 1.000000e+00 : f32
    %504 = vector.broadcast %cst_130 : f32 to vector<8x128xf32>
    %505 = arith.addf %503, %504 : vector<8x128xf32>
    %cst_131 = arith.constant 5.000000e-01 : f32
    %506 = vector.broadcast %cst_131 : f32 to vector<8x128xf32>
    %507 = arith.mulf %506, %505 : vector<8x128xf32>
    %508 = arith.select %33, %503, %507 : vector<8x128xi1>, vector<8x128xf32>
    %509 = vector.extract_strided_slice %508 {offsets = [0, 0], sizes = [8, 32], strides = [1, 1]} : vector<8x128xf32> to vector<8x32xf32>
    %510 = vector.extract_strided_slice %508 {offsets = [0, 32], sizes = [8, 32], strides = [1, 1]} : vector<8x128xf32> to vector<8x32xf32>
    %511 = vector.extract_strided_slice %508 {offsets = [0, 64], sizes = [8, 32], strides = [1, 1]} : vector<8x128xf32> to vector<8x32xf32>
    %512 = vector.extract_strided_slice %508 {offsets = [0, 96], sizes = [8, 32], strides = [1, 1]} : vector<8x128xf32> to vector<8x32xf32>
    %513 = arith.mulf %510, %465 : vector<8x32xf32>
    %514 = arith.mulf %509, %511 : vector<8x32xf32>
    %515 = arith.addf %513, %514 : vector<8x32xf32>
    %516 = math.tanh %515 : vector<8x32xf32>
    %517 = arith.mulf %512, %516 : vector<8x32xf32>
    %518 = tpu.concatenate %495, %517 in 1 : vector<8x32xf32>, vector<8x32xf32> -> vector<8x64xf32>
    %519 = arith.index_cast %472 : i32 to index
    %c0_132 = arith.constant 0 : index
    %520 = vector.load %arg14[%519, %c0_132] : memref<64x32xf32, #tpu.memory_space<vmem>>, vector<8x32xf32>
    tpu.vector_store %arg14[%519, %c0_132], %517 {strides = array<i32>} : memref<64x32xf32, #tpu.memory_space<vmem>>, vector<8x32xf32>,
    %c2_i32_133 = arith.constant 2 : i32
    %c8_i32_134 = arith.constant 8 : i32
    %521 = arith.muli %c2_i32_133, %c8_i32_134 : i32
    %522 = tpu.assume_multiple %521, 8 : i32
    %523 = arith.index_cast %522 : i32 to index
    %c0_135 = arith.constant 0 : index
    %524 = vector.load %arg13[%523, %c0_135] : memref<64x128xf32, #tpu.memory_space<vmem>>, vector<8x128xf32>
    %cst_136 = arith.constant dense<0.000000e+00> : vector<8x256xf32>
    %525 = tpu.matmul %518, %0, %cst_136 {dimension_numbers = #tpu.dot_dimension_numbers<[1], [0], [0], [1], [0, 0, 1, 1], [], []>} : vector<8x64xf32>, vector<64x256xf32>, vector<8x256xf32> -> vector<8x256xf32>
    %526 = vector.extract_strided_slice %525 {offsets = [0, 0], sizes = [8, 128], strides = [1, 1]} : vector<8x256xf32> to vector<8x128xf32>
    %527 = arith.addf %18, %526 : vector<8x128xf32>
    %cst_137 = arith.constant 5.000000e-01 : f32
    %528 = vector.broadcast %cst_137 : f32 to vector<8x128xf32>
    %529 = arith.mulf %528, %527 : vector<8x128xf32>
    %530 = arith.select %27, %527, %529 : vector<8x128xi1>, vector<8x128xf32>
    %531 = math.tanh %530 : vector<8x128xf32>
    %cst_138 = arith.constant 1.000000e+00 : f32
    %532 = vector.broadcast %cst_138 : f32 to vector<8x128xf32>
    %533 = arith.addf %531, %532 : vector<8x128xf32>
    %cst_139 = arith.constant 5.000000e-01 : f32
    %534 = vector.broadcast %cst_139 : f32 to vector<8x128xf32>
    %535 = arith.mulf %534, %533 : vector<8x128xf32>
    %536 = arith.select %27, %531, %535 : vector<8x128xi1>, vector<8x128xf32>
    %537 = vector.extract_strided_slice %536 {offsets = [0, 0], sizes = [8, 32], strides = [1, 1]} : vector<8x128xf32> to vector<8x32xf32>
    %538 = vector.extract_strided_slice %536 {offsets = [0, 32], sizes = [8, 32], strides = [1, 1]} : vector<8x128xf32> to vector<8x32xf32>
    %539 = vector.extract_strided_slice %536 {offsets = [0, 64], sizes = [8, 32], strides = [1, 1]} : vector<8x128xf32> to vector<8x32xf32>
    %540 = vector.extract_strided_slice %536 {offsets = [0, 96], sizes = [8, 32], strides = [1, 1]} : vector<8x128xf32> to vector<8x32xf32>
    %541 = arith.mulf %538, %493 : vector<8x32xf32>
    %542 = arith.mulf %537, %539 : vector<8x32xf32>
    %543 = arith.addf %541, %542 : vector<8x32xf32>
    %544 = math.tanh %543 : vector<8x32xf32>
    %545 = arith.mulf %540, %544 : vector<8x32xf32>
    %546 = vector.extract_strided_slice %525 {offsets = [0, 128], sizes = [8, 128], strides = [1, 1]} : vector<8x256xf32> to vector<8x128xf32>
    %547 = arith.addf %524, %546 : vector<8x128xf32>
    %cst_140 = arith.constant dense<0.000000e+00> : vector<8x128xf32>
    %548 = tpu.matmul %545, %1, %cst_140 {dimension_numbers = #tpu.dot_dimension_numbers<[1], [0], [0], [1], [0, 0, 1, 1], [], []>} : vector<8x32xf32>, vector<32x128xf32>, vector<8x128xf32> -> vector<8x128xf32>
    %549 = arith.addf %547, %548 : vector<8x128xf32>
    %cst_141 = arith.constant 5.000000e-01 : f32
    %550 = vector.broadcast %cst_141 : f32 to vector<8x128xf32>
    %551 = arith.mulf %550, %549 : vector<8x128xf32>
    %552 = arith.select %33, %549, %551 : vector<8x128xi1>, vector<8x128xf32>
    %553 = math.tanh %552 : vector<8x128xf32>
    %cst_142 = arith.constant 1.000000e+00 : f32
    %554 = vector.broadcast %cst_142 : f32 to vector<8x128xf32>
    %555 = arith.addf %553, %554 : vector<8x128xf32>
    %cst_143 = arith.constant 5.000000e-01 : f32
    %556 = vector.broadcast %cst_143 : f32 to vector<8x128xf32>
    %557 = arith.mulf %556, %555 : vector<8x128xf32>
    %558 = arith.select %33, %553, %557 : vector<8x128xi1>, vector<8x128xf32>
    %559 = vector.extract_strided_slice %558 {offsets = [0, 0], sizes = [8, 32], strides = [1, 1]} : vector<8x128xf32> to vector<8x32xf32>
    %560 = vector.extract_strided_slice %558 {offsets = [0, 32], sizes = [8, 32], strides = [1, 1]} : vector<8x128xf32> to vector<8x32xf32>
    %561 = vector.extract_strided_slice %558 {offsets = [0, 64], sizes = [8, 32], strides = [1, 1]} : vector<8x128xf32> to vector<8x32xf32>
    %562 = vector.extract_strided_slice %558 {offsets = [0, 96], sizes = [8, 32], strides = [1, 1]} : vector<8x128xf32> to vector<8x32xf32>
    %563 = arith.mulf %560, %515 : vector<8x32xf32>
    %564 = arith.mulf %559, %561 : vector<8x32xf32>
    %565 = arith.addf %563, %564 : vector<8x32xf32>
    %566 = math.tanh %565 : vector<8x32xf32>
    %567 = arith.mulf %562, %566 : vector<8x32xf32>
    %568 = tpu.concatenate %545, %567 in 1 : vector<8x32xf32>, vector<8x32xf32> -> vector<8x64xf32>
    %569 = arith.index_cast %522 : i32 to index
    %c0_144 = arith.constant 0 : index
    %570 = vector.load %arg14[%569, %c0_144] : memref<64x32xf32, #tpu.memory_space<vmem>>, vector<8x32xf32>
    tpu.vector_store %arg14[%569, %c0_144], %567 {strides = array<i32>} : memref<64x32xf32, #tpu.memory_space<vmem>>, vector<8x32xf32>,
    %c3_i32_145 = arith.constant 3 : i32
    %c8_i32_146 = arith.constant 8 : i32
    %571 = arith.muli %c3_i32_145, %c8_i32_146 : i32
    %572 = tpu.assume_multiple %571, 8 : i32
    %573 = arith.index_cast %572 : i32 to index
    %c0_147 = arith.constant 0 : index
    %574 = vector.load %arg13[%573, %c0_147] : memref<64x128xf32, #tpu.memory_space<vmem>>, vector<8x128xf32>
    %cst_148 = arith.constant dense<0.000000e+00> : vector<8x256xf32>
    %575 = tpu.matmul %568, %0, %cst_148 {dimension_numbers = #tpu.dot_dimension_numbers<[1], [0], [0], [1], [0, 0, 1, 1], [], []>} : vector<8x64xf32>, vector<64x256xf32>, vector<8x256xf32> -> vector<8x256xf32>
    %576 = vector.extract_strided_slice %575 {offsets = [0, 0], sizes = [8, 128], strides = [1, 1]} : vector<8x256xf32> to vector<8x128xf32>
    %577 = arith.addf %18, %576 : vector<8x128xf32>
    %cst_149 = arith.constant 5.000000e-01 : f32
    %578 = vector.broadcast %cst_149 : f32 to vector<8x128xf32>
    %579 = arith.mulf %578, %577 : vector<8x128xf32>
    %580 = arith.select %27, %577, %579 : vector<8x128xi1>, vector<8x128xf32>
    %581 = math.tanh %580 : vector<8x128xf32>
    %cst_150 = arith.constant 1.000000e+00 : f32
    %582 = vector.broadcast %cst_150 : f32 to vector<8x128xf32>
    %583 = arith.addf %581, %582 : vector<8x128xf32>
    %cst_151 = arith.constant 5.000000e-01 : f32
    %584 = vector.broadcast %cst_151 : f32 to vector<8x128xf32>
    %585 = arith.mulf %584, %583 : vector<8x128xf32>
    %586 = arith.select %27, %581, %585 : vector<8x128xi1>, vector<8x128xf32>
    %587 = vector.extract_strided_slice %586 {offsets = [0, 0], sizes = [8, 32], strides = [1, 1]} : vector<8x128xf32> to vector<8x32xf32>
    %588 = vector.extract_strided_slice %586 {offsets = [0, 32], sizes = [8, 32], strides = [1, 1]} : vector<8x128xf32> to vector<8x32xf32>
    %589 = vector.extract_strided_slice %586 {offsets = [0, 64], sizes = [8, 32], strides = [1, 1]} : vector<8x128xf32> to vector<8x32xf32>
    %590 = vector.extract_strided_slice %586 {offsets = [0, 96], sizes = [8, 32], strides = [1, 1]} : vector<8x128xf32> to vector<8x32xf32>
    %591 = arith.mulf %588, %543 : vector<8x32xf32>
    %592 = arith.mulf %587, %589 : vector<8x32xf32>
    %593 = arith.addf %591, %592 : vector<8x32xf32>
    %594 = math.tanh %593 : vector<8x32xf32>
    %595 = arith.mulf %590, %594 : vector<8x32xf32>
    %596 = vector.extract_strided_slice %575 {offsets = [0, 128], sizes = [8, 128], strides = [1, 1]} : vector<8x256xf32> to vector<8x128xf32>
    %597 = arith.addf %574, %596 : vector<8x128xf32>
    %cst_152 = arith.constant dense<0.000000e+00> : vector<8x128xf32>
    %598 = tpu.matmul %595, %1, %cst_152 {dimension_numbers = #tpu.dot_dimension_numbers<[1], [0], [0], [1], [0, 0, 1, 1], [], []>} : vector<8x32xf32>, vector<32x128xf32>, vector<8x128xf32> -> vector<8x128xf32>
    %599 = arith.addf %597, %598 : vector<8x128xf32>
    %cst_153 = arith.constant 5.000000e-01 : f32
    %600 = vector.broadcast %cst_153 : f32 to vector<8x128xf32>
    %601 = arith.mulf %600, %599 : vector<8x128xf32>
    %602 = arith.select %33, %599, %601 : vector<8x128xi1>, vector<8x128xf32>
    %603 = math.tanh %602 : vector<8x128xf32>
    %cst_154 = arith.constant 1.000000e+00 : f32
    %604 = vector.broadcast %cst_154 : f32 to vector<8x128xf32>
    %605 = arith.addf %603, %604 : vector<8x128xf32>
    %cst_155 = arith.constant 5.000000e-01 : f32
    %606 = vector.broadcast %cst_155 : f32 to vector<8x128xf32>
    %607 = arith.mulf %606, %605 : vector<8x128xf32>
    %608 = arith.select %33, %603, %607 : vector<8x128xi1>, vector<8x128xf32>
    %609 = vector.extract_strided_slice %608 {offsets = [0, 0], sizes = [8, 32], strides = [1, 1]} : vector<8x128xf32> to vector<8x32xf32>
    %610 = vector.extract_strided_slice %608 {offsets = [0, 32], sizes = [8, 32], strides = [1, 1]} : vector<8x128xf32> to vector<8x32xf32>
    %611 = vector.extract_strided_slice %608 {offsets = [0, 64], sizes = [8, 32], strides = [1, 1]} : vector<8x128xf32> to vector<8x32xf32>
    %612 = vector.extract_strided_slice %608 {offsets = [0, 96], sizes = [8, 32], strides = [1, 1]} : vector<8x128xf32> to vector<8x32xf32>
    %613 = arith.mulf %610, %565 : vector<8x32xf32>
    %614 = arith.mulf %609, %611 : vector<8x32xf32>
    %615 = arith.addf %613, %614 : vector<8x32xf32>
    %616 = math.tanh %615 : vector<8x32xf32>
    %617 = arith.mulf %612, %616 : vector<8x32xf32>
    %618 = tpu.concatenate %595, %617 in 1 : vector<8x32xf32>, vector<8x32xf32> -> vector<8x64xf32>
    %619 = arith.index_cast %572 : i32 to index
    %c0_156 = arith.constant 0 : index
    %620 = vector.load %arg14[%619, %c0_156] : memref<64x32xf32, #tpu.memory_space<vmem>>, vector<8x32xf32>
    tpu.vector_store %arg14[%619, %c0_156], %617 {strides = array<i32>} : memref<64x32xf32, #tpu.memory_space<vmem>>, vector<8x32xf32>,
    %c4_i32_157 = arith.constant 4 : i32
    %c8_i32_158 = arith.constant 8 : i32
    %621 = arith.muli %c4_i32_157, %c8_i32_158 : i32
    %622 = tpu.assume_multiple %621, 8 : i32
    %623 = arith.index_cast %622 : i32 to index
    %c0_159 = arith.constant 0 : index
    %624 = vector.load %arg13[%623, %c0_159] : memref<64x128xf32, #tpu.memory_space<vmem>>, vector<8x128xf32>
    %cst_160 = arith.constant dense<0.000000e+00> : vector<8x256xf32>
    %625 = tpu.matmul %618, %0, %cst_160 {dimension_numbers = #tpu.dot_dimension_numbers<[1], [0], [0], [1], [0, 0, 1, 1], [], []>} : vector<8x64xf32>, vector<64x256xf32>, vector<8x256xf32> -> vector<8x256xf32>
    %626 = vector.extract_strided_slice %625 {offsets = [0, 0], sizes = [8, 128], strides = [1, 1]} : vector<8x256xf32> to vector<8x128xf32>
    %627 = arith.addf %18, %626 : vector<8x128xf32>
    %cst_161 = arith.constant 5.000000e-01 : f32
    %628 = vector.broadcast %cst_161 : f32 to vector<8x128xf32>
    %629 = arith.mulf %628, %627 : vector<8x128xf32>
    %630 = arith.select %27, %627, %629 : vector<8x128xi1>, vector<8x128xf32>
    %631 = math.tanh %630 : vector<8x128xf32>
    %cst_162 = arith.constant 1.000000e+00 : f32
    %632 = vector.broadcast %cst_162 : f32 to vector<8x128xf32>
    %633 = arith.addf %631, %632 : vector<8x128xf32>
    %cst_163 = arith.constant 5.000000e-01 : f32
    %634 = vector.broadcast %cst_163 : f32 to vector<8x128xf32>
    %635 = arith.mulf %634, %633 : vector<8x128xf32>
    %636 = arith.select %27, %631, %635 : vector<8x128xi1>, vector<8x128xf32>
    %637 = vector.extract_strided_slice %636 {offsets = [0, 0], sizes = [8, 32], strides = [1, 1]} : vector<8x128xf32> to vector<8x32xf32>
    %638 = vector.extract_strided_slice %636 {offsets = [0, 32], sizes = [8, 32], strides = [1, 1]} : vector<8x128xf32> to vector<8x32xf32>
    %639 = vector.extract_strided_slice %636 {offsets = [0, 64], sizes = [8, 32], strides = [1, 1]} : vector<8x128xf32> to vector<8x32xf32>
    %640 = vector.extract_strided_slice %636 {offsets = [0, 96], sizes = [8, 32], strides = [1, 1]} : vector<8x128xf32> to vector<8x32xf32>
    %641 = arith.mulf %638, %593 : vector<8x32xf32>
    %642 = arith.mulf %637, %639 : vector<8x32xf32>
    %643 = arith.addf %641, %642 : vector<8x32xf32>
    %644 = math.tanh %643 : vector<8x32xf32>
    %645 = arith.mulf %640, %644 : vector<8x32xf32>
    %646 = vector.extract_strided_slice %625 {offsets = [0, 128], sizes = [8, 128], strides = [1, 1]} : vector<8x256xf32> to vector<8x128xf32>
    %647 = arith.addf %624, %646 : vector<8x128xf32>
    %cst_164 = arith.constant dense<0.000000e+00> : vector<8x128xf32>
    %648 = tpu.matmul %645, %1, %cst_164 {dimension_numbers = #tpu.dot_dimension_numbers<[1], [0], [0], [1], [0, 0, 1, 1], [], []>} : vector<8x32xf32>, vector<32x128xf32>, vector<8x128xf32> -> vector<8x128xf32>
    %649 = arith.addf %647, %648 : vector<8x128xf32>
    %cst_165 = arith.constant 5.000000e-01 : f32
    %650 = vector.broadcast %cst_165 : f32 to vector<8x128xf32>
    %651 = arith.mulf %650, %649 : vector<8x128xf32>
    %652 = arith.select %33, %649, %651 : vector<8x128xi1>, vector<8x128xf32>
    %653 = math.tanh %652 : vector<8x128xf32>
    %cst_166 = arith.constant 1.000000e+00 : f32
    %654 = vector.broadcast %cst_166 : f32 to vector<8x128xf32>
    %655 = arith.addf %653, %654 : vector<8x128xf32>
    %cst_167 = arith.constant 5.000000e-01 : f32
    %656 = vector.broadcast %cst_167 : f32 to vector<8x128xf32>
    %657 = arith.mulf %656, %655 : vector<8x128xf32>
    %658 = arith.select %33, %653, %657 : vector<8x128xi1>, vector<8x128xf32>
    %659 = vector.extract_strided_slice %658 {offsets = [0, 0], sizes = [8, 32], strides = [1, 1]} : vector<8x128xf32> to vector<8x32xf32>
    %660 = vector.extract_strided_slice %658 {offsets = [0, 32], sizes = [8, 32], strides = [1, 1]} : vector<8x128xf32> to vector<8x32xf32>
    %661 = vector.extract_strided_slice %658 {offsets = [0, 64], sizes = [8, 32], strides = [1, 1]} : vector<8x128xf32> to vector<8x32xf32>
    %662 = vector.extract_strided_slice %658 {offsets = [0, 96], sizes = [8, 32], strides = [1, 1]} : vector<8x128xf32> to vector<8x32xf32>
    %663 = arith.mulf %660, %615 : vector<8x32xf32>
    %664 = arith.mulf %659, %661 : vector<8x32xf32>
    %665 = arith.addf %663, %664 : vector<8x32xf32>
    %666 = math.tanh %665 : vector<8x32xf32>
    %667 = arith.mulf %662, %666 : vector<8x32xf32>
    %668 = tpu.concatenate %645, %667 in 1 : vector<8x32xf32>, vector<8x32xf32> -> vector<8x64xf32>
    %669 = arith.index_cast %622 : i32 to index
    %c0_168 = arith.constant 0 : index
    %670 = vector.load %arg14[%669, %c0_168] : memref<64x32xf32, #tpu.memory_space<vmem>>, vector<8x32xf32>
    tpu.vector_store %arg14[%669, %c0_168], %667 {strides = array<i32>} : memref<64x32xf32, #tpu.memory_space<vmem>>, vector<8x32xf32>,
    %c5_i32_169 = arith.constant 5 : i32
    %c8_i32_170 = arith.constant 8 : i32
    %671 = arith.muli %c5_i32_169, %c8_i32_170 : i32
    %672 = tpu.assume_multiple %671, 8 : i32
    %673 = arith.index_cast %672 : i32 to index
    %c0_171 = arith.constant 0 : index
    %674 = vector.load %arg13[%673, %c0_171] : memref<64x128xf32, #tpu.memory_space<vmem>>, vector<8x128xf32>
    %cst_172 = arith.constant dense<0.000000e+00> : vector<8x256xf32>
    %675 = tpu.matmul %668, %0, %cst_172 {dimension_numbers = #tpu.dot_dimension_numbers<[1], [0], [0], [1], [0, 0, 1, 1], [], []>} : vector<8x64xf32>, vector<64x256xf32>, vector<8x256xf32> -> vector<8x256xf32>
    %676 = vector.extract_strided_slice %675 {offsets = [0, 0], sizes = [8, 128], strides = [1, 1]} : vector<8x256xf32> to vector<8x128xf32>
    %677 = arith.addf %18, %676 : vector<8x128xf32>
    %cst_173 = arith.constant 5.000000e-01 : f32
    %678 = vector.broadcast %cst_173 : f32 to vector<8x128xf32>
    %679 = arith.mulf %678, %677 : vector<8x128xf32>
    %680 = arith.select %27, %677, %679 : vector<8x128xi1>, vector<8x128xf32>
    %681 = math.tanh %680 : vector<8x128xf32>
    %cst_174 = arith.constant 1.000000e+00 : f32
    %682 = vector.broadcast %cst_174 : f32 to vector<8x128xf32>
    %683 = arith.addf %681, %682 : vector<8x128xf32>
    %cst_175 = arith.constant 5.000000e-01 : f32
    %684 = vector.broadcast %cst_175 : f32 to vector<8x128xf32>
    %685 = arith.mulf %684, %683 : vector<8x128xf32>
    %686 = arith.select %27, %681, %685 : vector<8x128xi1>, vector<8x128xf32>
    %687 = vector.extract_strided_slice %686 {offsets = [0, 0], sizes = [8, 32], strides = [1, 1]} : vector<8x128xf32> to vector<8x32xf32>
    %688 = vector.extract_strided_slice %686 {offsets = [0, 32], sizes = [8, 32], strides = [1, 1]} : vector<8x128xf32> to vector<8x32xf32>
    %689 = vector.extract_strided_slice %686 {offsets = [0, 64], sizes = [8, 32], strides = [1, 1]} : vector<8x128xf32> to vector<8x32xf32>
    %690 = vector.extract_strided_slice %686 {offsets = [0, 96], sizes = [8, 32], strides = [1, 1]} : vector<8x128xf32> to vector<8x32xf32>
    %691 = arith.mulf %688, %643 : vector<8x32xf32>
    %692 = arith.mulf %687, %689 : vector<8x32xf32>
    %693 = arith.addf %691, %692 : vector<8x32xf32>
    %694 = math.tanh %693 : vector<8x32xf32>
    %695 = arith.mulf %690, %694 : vector<8x32xf32>
    %696 = vector.extract_strided_slice %675 {offsets = [0, 128], sizes = [8, 128], strides = [1, 1]} : vector<8x256xf32> to vector<8x128xf32>
    %697 = arith.addf %674, %696 : vector<8x128xf32>
    %cst_176 = arith.constant dense<0.000000e+00> : vector<8x128xf32>
    %698 = tpu.matmul %695, %1, %cst_176 {dimension_numbers = #tpu.dot_dimension_numbers<[1], [0], [0], [1], [0, 0, 1, 1], [], []>} : vector<8x32xf32>, vector<32x128xf32>, vector<8x128xf32> -> vector<8x128xf32>
    %699 = arith.addf %697, %698 : vector<8x128xf32>
    %cst_177 = arith.constant 5.000000e-01 : f32
    %700 = vector.broadcast %cst_177 : f32 to vector<8x128xf32>
    %701 = arith.mulf %700, %699 : vector<8x128xf32>
    %702 = arith.select %33, %699, %701 : vector<8x128xi1>, vector<8x128xf32>
    %703 = math.tanh %702 : vector<8x128xf32>
    %cst_178 = arith.constant 1.000000e+00 : f32
    %704 = vector.broadcast %cst_178 : f32 to vector<8x128xf32>
    %705 = arith.addf %703, %704 : vector<8x128xf32>
    %cst_179 = arith.constant 5.000000e-01 : f32
    %706 = vector.broadcast %cst_179 : f32 to vector<8x128xf32>
    %707 = arith.mulf %706, %705 : vector<8x128xf32>
    %708 = arith.select %33, %703, %707 : vector<8x128xi1>, vector<8x128xf32>
    %709 = vector.extract_strided_slice %708 {offsets = [0, 0], sizes = [8, 32], strides = [1, 1]} : vector<8x128xf32> to vector<8x32xf32>
    %710 = vector.extract_strided_slice %708 {offsets = [0, 32], sizes = [8, 32], strides = [1, 1]} : vector<8x128xf32> to vector<8x32xf32>
    %711 = vector.extract_strided_slice %708 {offsets = [0, 64], sizes = [8, 32], strides = [1, 1]} : vector<8x128xf32> to vector<8x32xf32>
    %712 = vector.extract_strided_slice %708 {offsets = [0, 96], sizes = [8, 32], strides = [1, 1]} : vector<8x128xf32> to vector<8x32xf32>
    %713 = arith.mulf %710, %665 : vector<8x32xf32>
    %714 = arith.mulf %709, %711 : vector<8x32xf32>
    %715 = arith.addf %713, %714 : vector<8x32xf32>
    %716 = math.tanh %715 : vector<8x32xf32>
    %717 = arith.mulf %712, %716 : vector<8x32xf32>
    %718 = tpu.concatenate %695, %717 in 1 : vector<8x32xf32>, vector<8x32xf32> -> vector<8x64xf32>
    %719 = arith.index_cast %672 : i32 to index
    %c0_180 = arith.constant 0 : index
    %720 = vector.load %arg14[%719, %c0_180] : memref<64x32xf32, #tpu.memory_space<vmem>>, vector<8x32xf32>
    tpu.vector_store %arg14[%719, %c0_180], %717 {strides = array<i32>} : memref<64x32xf32, #tpu.memory_space<vmem>>, vector<8x32xf32>,
    %c6_i32_181 = arith.constant 6 : i32
    %c8_i32_182 = arith.constant 8 : i32
    %721 = arith.muli %c6_i32_181, %c8_i32_182 : i32
    %722 = tpu.assume_multiple %721, 8 : i32
    %723 = arith.index_cast %722 : i32 to index
    %c0_183 = arith.constant 0 : index
    %724 = vector.load %arg13[%723, %c0_183] : memref<64x128xf32, #tpu.memory_space<vmem>>, vector<8x128xf32>
    %cst_184 = arith.constant dense<0.000000e+00> : vector<8x256xf32>
    %725 = tpu.matmul %718, %0, %cst_184 {dimension_numbers = #tpu.dot_dimension_numbers<[1], [0], [0], [1], [0, 0, 1, 1], [], []>} : vector<8x64xf32>, vector<64x256xf32>, vector<8x256xf32> -> vector<8x256xf32>
    %726 = vector.extract_strided_slice %725 {offsets = [0, 0], sizes = [8, 128], strides = [1, 1]} : vector<8x256xf32> to vector<8x128xf32>
    %727 = arith.addf %18, %726 : vector<8x128xf32>
    %cst_185 = arith.constant 5.000000e-01 : f32
    %728 = vector.broadcast %cst_185 : f32 to vector<8x128xf32>
    %729 = arith.mulf %728, %727 : vector<8x128xf32>
    %730 = arith.select %27, %727, %729 : vector<8x128xi1>, vector<8x128xf32>
    %731 = math.tanh %730 : vector<8x128xf32>
    %cst_186 = arith.constant 1.000000e+00 : f32
    %732 = vector.broadcast %cst_186 : f32 to vector<8x128xf32>
    %733 = arith.addf %731, %732 : vector<8x128xf32>
    %cst_187 = arith.constant 5.000000e-01 : f32
    %734 = vector.broadcast %cst_187 : f32 to vector<8x128xf32>
    %735 = arith.mulf %734, %733 : vector<8x128xf32>
    %736 = arith.select %27, %731, %735 : vector<8x128xi1>, vector<8x128xf32>
    %737 = vector.extract_strided_slice %736 {offsets = [0, 0], sizes = [8, 32], strides = [1, 1]} : vector<8x128xf32> to vector<8x32xf32>
    %738 = vector.extract_strided_slice %736 {offsets = [0, 32], sizes = [8, 32], strides = [1, 1]} : vector<8x128xf32> to vector<8x32xf32>
    %739 = vector.extract_strided_slice %736 {offsets = [0, 64], sizes = [8, 32], strides = [1, 1]} : vector<8x128xf32> to vector<8x32xf32>
    %740 = vector.extract_strided_slice %736 {offsets = [0, 96], sizes = [8, 32], strides = [1, 1]} : vector<8x128xf32> to vector<8x32xf32>
    %741 = arith.mulf %738, %693 : vector<8x32xf32>
    %742 = arith.mulf %737, %739 : vector<8x32xf32>
    %743 = arith.addf %741, %742 : vector<8x32xf32>
    %744 = math.tanh %743 : vector<8x32xf32>
    %745 = arith.mulf %740, %744 : vector<8x32xf32>
    %746 = vector.extract_strided_slice %725 {offsets = [0, 128], sizes = [8, 128], strides = [1, 1]} : vector<8x256xf32> to vector<8x128xf32>
    %747 = arith.addf %724, %746 : vector<8x128xf32>
    %cst_188 = arith.constant dense<0.000000e+00> : vector<8x128xf32>
    %748 = tpu.matmul %745, %1, %cst_188 {dimension_numbers = #tpu.dot_dimension_numbers<[1], [0], [0], [1], [0, 0, 1, 1], [], []>} : vector<8x32xf32>, vector<32x128xf32>, vector<8x128xf32> -> vector<8x128xf32>
    %749 = arith.addf %747, %748 : vector<8x128xf32>
    %cst_189 = arith.constant 5.000000e-01 : f32
    %750 = vector.broadcast %cst_189 : f32 to vector<8x128xf32>
    %751 = arith.mulf %750, %749 : vector<8x128xf32>
    %752 = arith.select %33, %749, %751 : vector<8x128xi1>, vector<8x128xf32>
    %753 = math.tanh %752 : vector<8x128xf32>
    %cst_190 = arith.constant 1.000000e+00 : f32
    %754 = vector.broadcast %cst_190 : f32 to vector<8x128xf32>
    %755 = arith.addf %753, %754 : vector<8x128xf32>
    %cst_191 = arith.constant 5.000000e-01 : f32
    %756 = vector.broadcast %cst_191 : f32 to vector<8x128xf32>
    %757 = arith.mulf %756, %755 : vector<8x128xf32>
    %758 = arith.select %33, %753, %757 : vector<8x128xi1>, vector<8x128xf32>
    %759 = vector.extract_strided_slice %758 {offsets = [0, 0], sizes = [8, 32], strides = [1, 1]} : vector<8x128xf32> to vector<8x32xf32>
    %760 = vector.extract_strided_slice %758 {offsets = [0, 32], sizes = [8, 32], strides = [1, 1]} : vector<8x128xf32> to vector<8x32xf32>
    %761 = vector.extract_strided_slice %758 {offsets = [0, 64], sizes = [8, 32], strides = [1, 1]} : vector<8x128xf32> to vector<8x32xf32>
    %762 = vector.extract_strided_slice %758 {offsets = [0, 96], sizes = [8, 32], strides = [1, 1]} : vector<8x128xf32> to vector<8x32xf32>
    %763 = arith.mulf %760, %715 : vector<8x32xf32>
    %764 = arith.mulf %759, %761 : vector<8x32xf32>
    %765 = arith.addf %763, %764 : vector<8x32xf32>
    %766 = math.tanh %765 : vector<8x32xf32>
    %767 = arith.mulf %762, %766 : vector<8x32xf32>
    %768 = tpu.concatenate %745, %767 in 1 : vector<8x32xf32>, vector<8x32xf32> -> vector<8x64xf32>
    %769 = arith.index_cast %722 : i32 to index
    %c0_192 = arith.constant 0 : index
    %770 = vector.load %arg14[%769, %c0_192] : memref<64x32xf32, #tpu.memory_space<vmem>>, vector<8x32xf32>
    tpu.vector_store %arg14[%769, %c0_192], %767 {strides = array<i32>} : memref<64x32xf32, #tpu.memory_space<vmem>>, vector<8x32xf32>,
    %c7_i32_193 = arith.constant 7 : i32
    %c8_i32_194 = arith.constant 8 : i32
    %771 = arith.muli %c7_i32_193, %c8_i32_194 : i32
    %772 = tpu.assume_multiple %771, 8 : i32
    %773 = arith.index_cast %772 : i32 to index
    %c0_195 = arith.constant 0 : index
    %774 = vector.load %arg13[%773, %c0_195] : memref<64x128xf32, #tpu.memory_space<vmem>>, vector<8x128xf32>
    %cst_196 = arith.constant dense<0.000000e+00> : vector<8x256xf32>
    %775 = tpu.matmul %768, %0, %cst_196 {dimension_numbers = #tpu.dot_dimension_numbers<[1], [0], [0], [1], [0, 0, 1, 1], [], []>} : vector<8x64xf32>, vector<64x256xf32>, vector<8x256xf32> -> vector<8x256xf32>
    %776 = vector.extract_strided_slice %775 {offsets = [0, 0], sizes = [8, 128], strides = [1, 1]} : vector<8x256xf32> to vector<8x128xf32>
    %777 = arith.addf %18, %776 : vector<8x128xf32>
    %cst_197 = arith.constant 5.000000e-01 : f32
    %778 = vector.broadcast %cst_197 : f32 to vector<8x128xf32>
    %779 = arith.mulf %778, %777 : vector<8x128xf32>
    %780 = arith.select %27, %777, %779 : vector<8x128xi1>, vector<8x128xf32>
    %781 = math.tanh %780 : vector<8x128xf32>
    %cst_198 = arith.constant 1.000000e+00 : f32
    %782 = vector.broadcast %cst_198 : f32 to vector<8x128xf32>
    %783 = arith.addf %781, %782 : vector<8x128xf32>
    %cst_199 = arith.constant 5.000000e-01 : f32
    %784 = vector.broadcast %cst_199 : f32 to vector<8x128xf32>
    %785 = arith.mulf %784, %783 : vector<8x128xf32>
    %786 = arith.select %27, %781, %785 : vector<8x128xi1>, vector<8x128xf32>
    %787 = vector.extract_strided_slice %786 {offsets = [0, 0], sizes = [8, 32], strides = [1, 1]} : vector<8x128xf32> to vector<8x32xf32>
    %788 = vector.extract_strided_slice %786 {offsets = [0, 32], sizes = [8, 32], strides = [1, 1]} : vector<8x128xf32> to vector<8x32xf32>
    %789 = vector.extract_strided_slice %786 {offsets = [0, 64], sizes = [8, 32], strides = [1, 1]} : vector<8x128xf32> to vector<8x32xf32>
    %790 = vector.extract_strided_slice %786 {offsets = [0, 96], sizes = [8, 32], strides = [1, 1]} : vector<8x128xf32> to vector<8x32xf32>
    %791 = arith.mulf %788, %743 : vector<8x32xf32>
    %792 = arith.mulf %787, %789 : vector<8x32xf32>
    %793 = arith.addf %791, %792 : vector<8x32xf32>
    %794 = math.tanh %793 : vector<8x32xf32>
    %795 = arith.mulf %790, %794 : vector<8x32xf32>
    %796 = vector.extract_strided_slice %775 {offsets = [0, 128], sizes = [8, 128], strides = [1, 1]} : vector<8x256xf32> to vector<8x128xf32>
    %797 = arith.addf %774, %796 : vector<8x128xf32>
    %cst_200 = arith.constant dense<0.000000e+00> : vector<8x128xf32>
    %798 = tpu.matmul %795, %1, %cst_200 {dimension_numbers = #tpu.dot_dimension_numbers<[1], [0], [0], [1], [0, 0, 1, 1], [], []>} : vector<8x32xf32>, vector<32x128xf32>, vector<8x128xf32> -> vector<8x128xf32>
    %799 = arith.addf %797, %798 : vector<8x128xf32>
    %cst_201 = arith.constant 5.000000e-01 : f32
    %800 = vector.broadcast %cst_201 : f32 to vector<8x128xf32>
    %801 = arith.mulf %800, %799 : vector<8x128xf32>
    %802 = arith.select %33, %799, %801 : vector<8x128xi1>, vector<8x128xf32>
    %803 = math.tanh %802 : vector<8x128xf32>
    %cst_202 = arith.constant 1.000000e+00 : f32
    %804 = vector.broadcast %cst_202 : f32 to vector<8x128xf32>
    %805 = arith.addf %803, %804 : vector<8x128xf32>
    %cst_203 = arith.constant 5.000000e-01 : f32
    %806 = vector.broadcast %cst_203 : f32 to vector<8x128xf32>
    %807 = arith.mulf %806, %805 : vector<8x128xf32>
    %808 = arith.select %33, %803, %807 : vector<8x128xi1>, vector<8x128xf32>
    %809 = vector.extract_strided_slice %808 {offsets = [0, 0], sizes = [8, 32], strides = [1, 1]} : vector<8x128xf32> to vector<8x32xf32>
    %810 = vector.extract_strided_slice %808 {offsets = [0, 32], sizes = [8, 32], strides = [1, 1]} : vector<8x128xf32> to vector<8x32xf32>
    %811 = vector.extract_strided_slice %808 {offsets = [0, 64], sizes = [8, 32], strides = [1, 1]} : vector<8x128xf32> to vector<8x32xf32>
    %812 = vector.extract_strided_slice %808 {offsets = [0, 96], sizes = [8, 32], strides = [1, 1]} : vector<8x128xf32> to vector<8x32xf32>
    %813 = arith.mulf %810, %765 : vector<8x32xf32>
    %814 = arith.mulf %809, %811 : vector<8x32xf32>
    %815 = arith.addf %813, %814 : vector<8x32xf32>
    %816 = math.tanh %815 : vector<8x32xf32>
    %817 = arith.mulf %812, %816 : vector<8x32xf32>
    %818 = tpu.concatenate %795, %817 in 1 : vector<8x32xf32>, vector<8x32xf32> -> vector<8x64xf32>
    %819 = arith.index_cast %772 : i32 to index
    %c0_204 = arith.constant 0 : index
    %820 = vector.load %arg14[%819, %c0_204] : memref<64x32xf32, #tpu.memory_space<vmem>>, vector<8x32xf32>
    tpu.vector_store %arg14[%819, %c0_204], %817 {strides = array<i32>} : memref<64x32xf32, #tpu.memory_space<vmem>>, vector<8x32xf32>,
    %c8_i32_205 = arith.constant 8 : i32
    %c0_206 = arith.constant 0 : index
    %c0_207 = arith.constant 0 : index
    %821 = vector.load %arg14[%c0_206, %c0_207] : memref<64x32xf32, #tpu.memory_space<vmem>>, vector<64x32xf32>
    %c0_208 = arith.constant 0 : index
    %c0_209 = arith.constant 0 : index
    %822 = vector.load %arg9[%c0_208, %c0_209] : memref<32x128xf32, #tpu.memory_space<vmem>>, vector<32x128xf32>
    %cst_210 = arith.constant dense<0.000000e+00> : vector<64x128xf32>
    %823 = tpu.matmul %821, %822, %cst_210 {dimension_numbers = #tpu.dot_dimension_numbers<[1], [0], [0], [1], [0, 0, 1, 1], [], []>} : vector<64x32xf32>, vector<32x128xf32>, vector<64x128xf32> -> vector<64x128xf32>
    %c0_211 = arith.constant 0 : index
    %c0_212 = arith.constant 0 : index
    %824 = vector.load %arg10[%c0_211, %c0_212] : memref<1x128xf32, #tpu.memory_space<vmem>>, vector<1x128xf32>
    %825 = vector.broadcast %824 : vector<1x128xf32> to vector<64x128xf32>
    %826 = arith.addf %823, %825 : vector<64x128xf32>
    %c0_213 = arith.constant 0 : index
    %c0_214 = arith.constant 0 : index
    %827 = vector.load %arg11[%c0_213, %c0_214] : memref<64x128xf32, #tpu.memory_space<vmem>>, vector<64x128xf32>
    tpu.vector_store %arg11[%c0_213, %c0_214], %826 {strides = array<i32>} : memref<64x128xf32, #tpu.memory_space<vmem>>, vector<64x128xf32>,
    return
  }
}

</mosaic_0001>

<llo_original>
// kernel: decoder_rnn_forward.1
$region0: #{decoder_rnn_forward.1}
  #allocation0 [shape = 'u32[]', space=smem, size = 0x4, offset = 0x4, fixed_abs, tag = 'smem constant byte address 0x4 - core index']
  #allocation1 [shape = 'u32[72,128]{1,0:T(1,128)}', space=vmem, size = 0x9000, scoped, tag = 'internal scratch']
  #allocation2 [shape = 'f32[64,128]{1,0:T(8,128)}', space=vmem, size = 0x8000, scoped, tag = 'scratch operand']
  #allocation3 [shape = 'f32[64,128]{1,0:T(8,128)}', space=vmem, size = 0x8000, scoped, tag = 'scratch operand']
  #allocation4 [shape = 'f32[64,32]{1,0:T(8,128)}', space=vmem, size = 0x8000, scoped, tag = 'scratch operand']
  %s0 = inlined_call_operand.vmem [shape: f32[64,64], index: 0, kind: input, shape index: {}]
  %s1 = inlined_call_operand.vmem [shape: f32[64,32], index: 1, kind: input, shape index: {}]
  %s2 = inlined_call_operand.vmem [shape: f32[64,128], index: 2, kind: input, shape index: {}]
  %s3 = inlined_call_operand.vmem [shape: f32[1,128], index: 3, kind: input, shape index: {}]
  %s4 = inlined_call_operand.vmem [shape: f32[1,128], index: 4, kind: input, shape index: {}]
  %s5 = inlined_call_operand.vmem [shape: f32[32,128], index: 5, kind: input, shape index: {}]
  %s6 = inlined_call_operand.vmem [shape: f32[1,128], index: 6, kind: input, shape index: {}]
  %s7 = inlined_call_operand.vmem [shape: f32[64,256], index: 7, kind: input, shape index: {}]
  %s8 = inlined_call_operand.vmem [shape: f32[32,128], index: 8, kind: input, shape index: {}]
  %s9 = inlined_call_operand.vmem [shape: f32[32,128], index: 9, kind: input, shape index: {}]
  %s10 = inlined_call_operand.vmem [shape: f32[1,128], index: 10, kind: input, shape index: {}]
  %s11 = inlined_call_operand.vmem [shape: f32[64,128], index: 11, kind: output, shape index: {}]
  %s12 = sld [smem:[#allocation0]]
  $region54: #{decoder_rnn_forward.1} parent=0
    _
  %s14 = ssub.s32 1, %s12
  %s15 = scalar_select 0, %s14, %s12
  // Predicated region
  $region2: #{decoder_rnn_forward.1} parent=0 // pred_check
    _
  $region3: #{decoder_rnn_forward.1} parent=0 // pred_check_branch
    %17 = sbr.rel (0) target = $region5
  $region4: #{decoder_rnn_forward.1} parent=0 // pred_region
    _
  $region5: #{decoder_rnn_forward.1} parent=0 // pred_fallthru
    _
  // Predicated region
  $region6: #{decoder_rnn_forward.1} parent=0 // pred_check
    _
  $region7: #{decoder_rnn_forward.1} parent=0 // pred_check_branch
    %19 = sbr.rel (0) target = $region9
  $region8: #{decoder_rnn_forward.1} parent=0 // pred_region
    _
  $region9: #{decoder_rnn_forward.1} parent=0 // pred_fallthru
    _
  // Predicated region
  $region10: #{decoder_rnn_forward.1} parent=0 // pred_check
    _
  $region11: #{decoder_rnn_forward.1} parent=0 // pred_check_branch
    %21 = sbr.rel (0) target = $region13
  $region12: #{decoder_rnn_forward.1} parent=0 // pred_region
    _
  $region13: #{decoder_rnn_forward.1} parent=0 // pred_fallthru
    _
  // Predicated region
  $region14: #{decoder_rnn_forward.1} parent=0 // pred_check
    _
  $region15: #{decoder_rnn_forward.1} parent=0 // pred_check_branch
    %23 = sbr.rel (0) target = $region17
  $region16: #{decoder_rnn_forward.1} parent=0 // pred_region
    _
  $region17: #{decoder_rnn_forward.1} parent=0 // pred_fallthru
    _
  // Predicated region
  $region18: #{decoder_rnn_forward.1} parent=0 // pred_check
    _
  $region19: #{decoder_rnn_forward.1} parent=0 // pred_check_branch
    %25 = sbr.rel (0) target = $region21
  $region20: #{decoder_rnn_forward.1} parent=0 // pred_region
    _
  $region21: #{decoder_rnn_forward.1} parent=0 // pred_fallthru
    _
  // Predicated region
  $region22: #{decoder_rnn_forward.1} parent=0 // pred_check
    _
  $region23: #{decoder_rnn_forward.1} parent=0 // pred_check_branch
    %27 = sbr.rel (0) target = $region25
  $region24: #{decoder_rnn_forward.1} parent=0 // pred_region
    _
  $region25: #{decoder_rnn_forward.1} parent=0 // pred_fallthru
    _
  // Predicated region
  $region26: #{decoder_rnn_forward.1} parent=0 // pred_check
    _
  $region27: #{decoder_rnn_forward.1} parent=0 // pred_check_branch
    %29 = sbr.rel (0) target = $region29
  $region28: #{decoder_rnn_forward.1} parent=0 // pred_region
    _
  $region29: #{decoder_rnn_forward.1} parent=0 // pred_fallthru
    _
  // Predicated region
  $region30: #{decoder_rnn_forward.1} parent=0 // pred_check
    _
  $region31: #{decoder_rnn_forward.1} parent=0 // pred_check_branch
    %31 = sbr.rel (0) target = $region33
  $region32: #{decoder_rnn_forward.1} parent=0 // pred_region
    _
  $region33: #{decoder_rnn_forward.1} parent=0 // pred_fallthru
    _
  // Predicated region
  $region34: #{decoder_rnn_forward.1} parent=0 // pred_check
    _
  $region35: #{decoder_rnn_forward.1} parent=0 // pred_check_branch
    %33 = sbr.rel (0) target = $region37
  $region36: #{decoder_rnn_forward.1} parent=0 // pred_region
    _
  $region37: #{decoder_rnn_forward.1} parent=0 // pred_fallthru
    _
  // Predicated region
  $region38: #{decoder_rnn_forward.1} parent=0 // pred_check
    _
  $region39: #{decoder_rnn_forward.1} parent=0 // pred_check_branch
    %35 = sbr.rel (0) target = $region41
  $region40: #{decoder_rnn_forward.1} parent=0 // pred_region
    _
  $region41: #{decoder_rnn_forward.1} parent=0 // pred_fallthru
    _
  // Predicated region
  $region42: #{decoder_rnn_forward.1} parent=0 // pred_check
    _
  $region43: #{decoder_rnn_forward.1} parent=0 // pred_check_branch
    %37 = sbr.rel (0) target = $region45
  $region44: #{decoder_rnn_forward.1} parent=0 // pred_region
    _
  $region45: #{decoder_rnn_forward.1} parent=0 // pred_fallthru
    _
  %v38 = vld [vmem:[%s7] sm:$0xff]
  %v39 = vld [vmem:[%s7 + $0x8] sm:$0xff]
  %v40 = vld [vmem:[%s7 + $0x10] sm:$0xff]
  %v41 = vld [vmem:[%s7 + $0x18] sm:$0xff]
  %v42 = vld [vmem:[%s7 + $0x20] sm:$0xff]
  %v43 = vld [vmem:[%s7 + $0x28] sm:$0xff]
  %v44 = vld [vmem:[%s7 + $0x30] sm:$0xff]
  %v45 = vld [vmem:[%s7 + $0x38] sm:$0xff]
  %v46 = vld [vmem:[%s7 + $0x40] sm:$0xff]
  %v47 = vld [vmem:[%s7 + $0x48] sm:$0xff]
  %v48 = vld [vmem:[%s7 + $0x50] sm:$0xff]
  %v49 = vld [vmem:[%s7 + $0x58] sm:$0xff]
  %v50 = vld [vmem:[%s7 + $0x60] sm:$0xff]
  %v51 = vld [vmem:[%s7 + $0x68] sm:$0xff]
  %v52 = vld [vmem:[%s7 + $0x70] sm:$0xff]
  %v53 = vld [vmem:[%s7 + $0x78] sm:$0xff]
  %v54 = vld [vmem:[%s8] sm:$0xff]
  %v55 = vld [vmem:[%s8 + $0x8] sm:$0xff]
  %v56 = vld [vmem:[%s8 + $0x10] sm:$0xff]
  %v57 = vld [vmem:[%s8 + $0x18] sm:$0xff]
  %v58 = vld [vmem:[%s0] sm:$0xff]
  %v59 = vld [vmem:[%s0 + $0x8] sm:$0xff]
  %v60 = vld [vmem:[%s0 + $0x10] sm:$0xff]
  %v61 = vld [vmem:[%s0 + $0x18] sm:$0xff]
  %v62 = vld [vmem:[%s0 + $0x20] sm:$0xff]
  %v63 = vld [vmem:[%s0 + $0x28] sm:$0xff]
  %v64 = vld [vmem:[%s0 + $0x30] sm:$0xff]
  %v65 = vld [vmem:[%s0 + $0x38] sm:$0xff]
  %v66 = vld [vmem:[%s2] sm:$0xff]
  %v67 = vld [vmem:[%s2 + $0x8] sm:$0xff]
  %v68 = vld [vmem:[%s2 + $0x10] sm:$0xff]
  %v69 = vld [vmem:[%s2 + $0x18] sm:$0xff]
  %v70 = vld [vmem:[%s2 + $0x20] sm:$0xff]
  %v71 = vld [vmem:[%s2 + $0x28] sm:$0xff]
  %v72 = vld [vmem:[%s2 + $0x30] sm:$0xff]
  %v73 = vld [vmem:[%s2 + $0x38] sm:$0xff]
  %v74 = vld [vmem:[%s3] sm:$0x1]
  %v76 = vperm.slane %v74, 0
  %vm78 = vcmask 523264
  %v80 = vsel %vm78, %v58, 0
  %v83 = vsel %vm78, %v59, 0
  %v86 = vsel %vm78, %v60, 0
  %v89 = vsel %vm78, %v61, 0
  %v92 = vsel %vm78, %v62, 0
  %v95 = vsel %vm78, %v63, 0
  %v98 = vsel %vm78, %v64, 0
  %v101 = vsel %vm78, %v65, 0
  %103 = vmatpush.msra.mxu0 0.0
  %104 = vmatpush.msra.mxu0 0.0
  %105 = vmatpush.msra.mxu0 0.0
  %106 = vmatpush.msra.mxu0 0.0
  %107 = vmatpush.msra.mxu0 0.0
  %108 = vmatpush.msra.mxu0 0.0
  %109 = vmatpush.msra.mxu0 0.0
  %110 = vmatpush.msra.mxu0 0.0
  %111 = vmatpush.msra.mxu0 %v73
  %112 = vmatpush.msra.mxu0 %v72
  %113 = vmatpush.msra.mxu0 %v71
  %114 = vmatpush.msra.mxu0 %v70
  %115 = vmatpush.msra.mxu0 %v69
  %116 = vmatpush.msra.mxu0 %v68
  %117 = vmatpush.msra.mxu0 %v67
  %118 = vmatpush.msra.mxu0 %v66
  %119 = vmatmul.f32.gmra.mxu0 %v80
  %v120 = vpop.f32.mrf.mxu0
  %v121 = vadd.f32 %v76, %v120
  %122 = vmatmul.f32.gmra.mxu0 %v83
  %v123 = vpop.f32.mrf.mxu0
  %v124 = vadd.f32 %v76, %v123
  %125 = vmatmul.f32.gmra.mxu0 %v86
  %v126 = vpop.f32.mrf.mxu0
  %v127 = vadd.f32 %v76, %v126
  %128 = vmatmul.f32.gmra.mxu0 %v89
  %v129 = vpop.f32.mrf.mxu0
  %v130 = vadd.f32 %v76, %v129
  %131 = vmatmul.f32.gmra.mxu0 %v92
  %v132 = vpop.f32.mrf.mxu0
  %v133 = vadd.f32 %v76, %v132
  %134 = vmatmul.f32.gmra.mxu0 %v95
  %v135 = vpop.f32.mrf.mxu0
  %v136 = vadd.f32 %v76, %v135
  %137 = vmatmul.f32.gmra.mxu0 %v98
  %v138 = vpop.f32.mrf.mxu0
  %v139 = vadd.f32 %v76, %v138
  %140 = vmatmul.f32.gmra.mxu0 %v101
  %v141 = vpop.f32.mrf.mxu0
  %v142 = vadd.f32 %v76, %v141
  %143 = vdwg.mxu0
  %144 = vst [vmem:[#allocation2] sm:$0xff] %v121
  %145 = vst [vmem:[#allocation2 + $0x8] sm:$0xff] %v124
  %146 = vst [vmem:[#allocation2 + $0x10] sm:$0xff] %v127
  %147 = vst [vmem:[#allocation2 + $0x18] sm:$0xff] %v130
  %148 = vst [vmem:[#allocation2 + $0x20] sm:$0xff] %v133
  %149 = vst [vmem:[#allocation2 + $0x28] sm:$0xff] %v136
  %150 = vst [vmem:[#allocation2 + $0x30] sm:$0xff] %v139
  %151 = vst [vmem:[#allocation2 + $0x38] sm:$0xff] %v142
  %v152 = vld [vmem:[%s1] sm:$0xff]
  %v153 = vld [vmem:[%s1 + $0x8] sm:$0xff]
  %v154 = vld [vmem:[%s1 + $0x10] sm:$0xff]
  %v155 = vld [vmem:[%s1 + $0x18] sm:$0xff]
  %v156 = vld [vmem:[%s1 + $0x20] sm:$0xff]
  %v157 = vld [vmem:[%s1 + $0x28] sm:$0xff]
  %v158 = vld [vmem:[%s1 + $0x30] sm:$0xff]
  %v159 = vld [vmem:[%s1 + $0x38] sm:$0xff]
  %v160 = vld [vmem:[%s5] sm:$0xff]
  %v161 = vld [vmem:[%s5 + $0x8] sm:$0xff]
  %v162 = vld [vmem:[%s5 + $0x10] sm:$0xff]
  %v163 = vld [vmem:[%s5 + $0x18] sm:$0xff]
  %v164 = vld [vmem:[%s6] sm:$0x1]
  %v166 = vperm.slane %v164, 0
  %vm168 = vcmask 261120
  %v170 = vsel %vm168, %v152, 0
  %v173 = vsel %vm168, %v153, 0
  %v176 = vsel %vm168, %v154, 0
  %v179 = vsel %vm168, %v155, 0
  %v182 = vsel %vm168, %v156, 0
  %v185 = vsel %vm168, %v157, 0
  %v188 = vsel %vm168, %v158, 0
  %v191 = vsel %vm168, %v159, 0
  %193 = vmatpush.msra.mxu0 0.0
  %194 = vmatpush.msra.mxu0 0.0
  %195 = vmatpush.msra.mxu0 0.0
  %196 = vmatpush.msra.mxu0 0.0
  %197 = vmatpush.msra.mxu0 0.0
  %198 = vmatpush.msra.mxu0 0.0
  %199 = vmatpush.msra.mxu0 0.0
  %200 = vmatpush.msra.mxu0 0.0
  %201 = vmatpush.msra.mxu0 0.0
  %202 = vmatpush.msra.mxu0 0.0
  %203 = vmatpush.msra.mxu0 0.0
  %204 = vmatpush.msra.mxu0 0.0
  %205 = vmatpush.msra.mxu0 %v163
  %206 = vmatpush.msra.mxu0 %v162
  %207 = vmatpush.msra.mxu0 %v161
  %208 = vmatpush.msra.mxu0 %v160
  %209 = vmatmul.f32.gmra.mxu0 %v170
  %v210 = vpop.f32.mrf.mxu0
  %v211 = vadd.f32 %v166, %v210
  %212 = vmatmul.f32.gmra.mxu0 %v173
  %v213 = vpop.f32.mrf.mxu0
  %v214 = vadd.f32 %v166, %v213
  %215 = vmatmul.f32.gmra.mxu0 %v176
  %v216 = vpop.f32.mrf.mxu0
  %v217 = vadd.f32 %v166, %v216
  %218 = vmatmul.f32.gmra.mxu0 %v179
  %v219 = vpop.f32.mrf.mxu0
  %v220 = vadd.f32 %v166, %v219
  %221 = vmatmul.f32.gmra.mxu0 %v182
  %v222 = vpop.f32.mrf.mxu0
  %v223 = vadd.f32 %v166, %v222
  %224 = vmatmul.f32.gmra.mxu0 %v185
  %v225 = vpop.f32.mrf.mxu0
  %v226 = vadd.f32 %v166, %v225
  %227 = vmatmul.f32.gmra.mxu0 %v188
  %v228 = vpop.f32.mrf.mxu0
  %v229 = vadd.f32 %v166, %v228
  %230 = vmatmul.f32.gmra.mxu0 %v191
  %v231 = vpop.f32.mrf.mxu0
  %v232 = vadd.f32 %v166, %v231
  %233 = vdwg.mxu0
  %234 = vst [vmem:[#allocation3] sm:$0xff] %v211
  %235 = vst [vmem:[#allocation3 + $0x8] sm:$0xff] %v214
  %236 = vst [vmem:[#allocation3 + $0x10] sm:$0xff] %v217
  %237 = vst [vmem:[#allocation3 + $0x18] sm:$0xff] %v220
  %238 = vst [vmem:[#allocation3 + $0x20] sm:$0xff] %v223
  %239 = vst [vmem:[#allocation3 + $0x28] sm:$0xff] %v226
  %240 = vst [vmem:[#allocation3 + $0x30] sm:$0xff] %v229
  %241 = vst [vmem:[#allocation3 + $0x38] sm:$0xff] %v232
  %v242 = vld [vmem:[%s4] sm:$0x1]
  %v244 = vperm.slane %v242, 0
  %v246 = vld [vmem:[%s6] sm:$0x1]
  %v248 = vperm.slane %v246, 0
  %v250 = vlaneseq
  %v251 = vand.u32 %v250, 127
  %vm252 = vcmp.ge.s32.totalorder %v251, 64
  %vm253 = vcmp.lt.s32.totalorder %v251, 96
  %vm254 = vmand %vm252, %vm253
  %v255 = vld [vmem:[#allocation2] sm:$0xff]
  %v257 = vsel %vm78, 0.0, 0
  %259 = vmatpush.msra.mxu0 0.0
  %260 = vmatpush.msra.mxu0 0.0
  %261 = vmatpush.msra.mxu0 0.0
  %262 = vmatpush.msra.mxu0 0.0
  %263 = vmatpush.msra.mxu0 0.0
  %264 = vmatpush.msra.mxu0 0.0
  %265 = vmatpush.msra.mxu0 0.0
  %266 = vmatpush.msra.mxu0 0.0
  %267 = vmatpush.msra.mxu0 %v52
  %268 = vmatpush.msra.mxu0 %v50
  %269 = vmatpush.msra.mxu0 %v48
  %270 = vmatpush.msra.mxu0 %v46
  %271 = vmatpush.msra.mxu0 %v44
  %272 = vmatpush.msra.mxu0 %v42
  %273 = vmatpush.msra.mxu0 %v40
  %274 = vmatpush.msra.mxu0 %v38
  %275 = vmatmul.f32.gmra.mxu0 %v257
  %v276 = vpop.f32.mrf.mxu0
  %v277 = vadd.f32 0.0, %v276
  %278 = vdwg.mxu0
  %279 = vmatpush.msra.mxu0 0.0
  %280 = vmatpush.msra.mxu0 0.0
  %281 = vmatpush.msra.mxu0 0.0
  %282 = vmatpush.msra.mxu0 0.0
  %283 = vmatpush.msra.mxu0 0.0
  %284 = vmatpush.msra.mxu0 0.0
  %285 = vmatpush.msra.mxu0 0.0
  %286 = vmatpush.msra.mxu0 0.0
  %287 = vmatpush.msra.mxu0 %v53
  %288 = vmatpush.msra.mxu0 %v51
  %289 = vmatpush.msra.mxu0 %v49
  %290 = vmatpush.msra.mxu0 %v47
  %291 = vmatpush.msra.mxu0 %v45
  %292 = vmatpush.msra.mxu0 %v43
  %293 = vmatpush.msra.mxu0 %v41
  %294 = vmatpush.msra.mxu0 %v39
  %295 = vmatmul.f32.gmra.mxu0 %v257
  %v296 = vpop.f32.mrf.mxu0
  %v297 = vadd.f32 0.0, %v296
  %298 = vdwg.mxu0
  %v299 = vadd.f32 %v255, %v277
  %v300 = vmul.f32 %v299, 0.5
  %v301 = vsel %vm254, %v299, %v300
  %v302 = vtanh.pop %v301
  %v303 = vadd.f32 %v302, 1.0
  %v304 = vmul.f32 %v303, 0.5
  %v305 = vsel %vm254, %v302, %v304
  %v306 = vmul.f32 %v305, 0.0
  %308 = vrot.lane.b32.xlu0 %v305, 64
  %v309 = vpop.permute.xlu0 %308
  %v311 = vmul.f32 %v305, %v309
  %313 = vrot.lane.b32.xlu0 %v311, 32
  %v314 = vpop.permute.xlu0 %313
  %v316 = vadd.f32 %v306, %v314
  %v317 = vtanh.pop %v316
  %319 = vrot.lane.b32.xlu0 %v317, 64
  %v320 = vpop.permute.xlu0 %319
  %v322 = vmul.f32 %v305, %v320
  %v323 = vadd.f32 %v248, %v297
  %325 = vrot.lane.b32.xlu0 %v322, 32
  %v326 = vpop.permute.xlu0 %325
  %v327 = vsel %vm168, %v326, 0
  %329 = vmatpush.msra.mxu0 0.0
  %330 = vmatpush.msra.mxu0 0.0
  %331 = vmatpush.msra.mxu0 0.0
  %332 = vmatpush.msra.mxu0 0.0
  %333 = vmatpush.msra.mxu0 0.0
  %334 = vmatpush.msra.mxu0 0.0
  %335 = vmatpush.msra.mxu0 0.0
  %336 = vmatpush.msra.mxu0 0.0
  %337 = vmatpush.msra.mxu0 0.0
  %338 = vmatpush.msra.mxu0 0.0
  %339 = vmatpush.msra.mxu0 0.0
  %340 = vmatpush.msra.mxu0 0.0
  %341 = vmatpush.msra.mxu0 %v57
  %342 = vmatpush.msra.mxu0 %v56
  %343 = vmatpush.msra.mxu0 %v55
  %344 = vmatpush.msra.mxu0 %v54
  %345 = vmatmul.f32.gmra.mxu0 %v327
  %v346 = vpop.f32.mrf.mxu0
  %v347 = vadd.f32 0.0, %v346
  %348 = vdwg.mxu0
  %v349 = vadd.f32 %v323, %v347
  %v350 = vmul.f32 %v349, 0.5
  %v351 = vsel %vm254, %v349, %v350
  %v352 = vtanh.pop %v351
  %v353 = vadd.f32 %v352, 1.0
  %v354 = vmul.f32 %v353, 0.5
  %v355 = vsel %vm254, %v352, %v354
  %v356 = vmul.f32 %v355, 0.0
  %358 = vrot.lane.b32.xlu0 %v355, 64
  %v359 = vpop.permute.xlu0 %358
  %v361 = vmul.f32 %v355, %v359
  %363 = vrot.lane.b32.xlu0 %v361, 32
  %v364 = vpop.permute.xlu0 %363
  %v366 = vadd.f32 %v356, %v364
  %v367 = vtanh.pop %v366
  %369 = vrot.lane.b32.xlu0 %v367, 64
  %v370 = vpop.permute.xlu0 %369
  %v372 = vmul.f32 %v355, %v370
  %375 = vrot.lane.b32.xlu0 %v372, 64
  %v376 = vpop.permute.xlu0 %375
  %v378 = vsel %vm168, %v326, %v376
  %s379 = scalar_lea.vmem [#allocation2], 8
  %v380 = vld [vmem:[%s379] sm:$0xff]
  %v382 = vsel %vm78, %v378, 0
  %384 = vmatpush.msra.mxu0 0.0
  %385 = vmatpush.msra.mxu0 0.0
  %386 = vmatpush.msra.mxu0 0.0
  %387 = vmatpush.msra.mxu0 0.0
  %388 = vmatpush.msra.mxu0 0.0
  %389 = vmatpush.msra.mxu0 0.0
  %390 = vmatpush.msra.mxu0 0.0
  %391 = vmatpush.msra.mxu0 0.0
  %392 = vmatpush.msra.mxu0 %v52
  %393 = vmatpush.msra.mxu0 %v50
  %394 = vmatpush.msra.mxu0 %v48
  %395 = vmatpush.msra.mxu0 %v46
  %396 = vmatpush.msra.mxu0 %v44
  %397 = vmatpush.msra.mxu0 %v42
  %398 = vmatpush.msra.mxu0 %v40
  %399 = vmatpush.msra.mxu0 %v38
  %400 = vmatmul.f32.gmra.mxu0 %v382
  %v401 = vpop.f32.mrf.mxu0
  %v402 = vadd.f32 0.0, %v401
  %403 = vdwg.mxu0
  %404 = vmatpush.msra.mxu0 0.0
  %405 = vmatpush.msra.mxu0 0.0
  %406 = vmatpush.msra.mxu0 0.0
  %407 = vmatpush.msra.mxu0 0.0
  %408 = vmatpush.msra.mxu0 0.0
  %409 = vmatpush.msra.mxu0 0.0
  %410 = vmatpush.msra.mxu0 0.0
  %411 = vmatpush.msra.mxu0 0.0
  %412 = vmatpush.msra.mxu0 %v53
  %413 = vmatpush.msra.mxu0 %v51
  %414 = vmatpush.msra.mxu0 %v49
  %415 = vmatpush.msra.mxu0 %v47
  %416 = vmatpush.msra.mxu0 %v45
  %417 = vmatpush.msra.mxu0 %v43
  %418 = vmatpush.msra.mxu0 %v41
  %419 = vmatpush.msra.mxu0 %v39
  %420 = vmatmul.f32.gmra.mxu0 %v382
  %v421 = vpop.f32.mrf.mxu0
  %v422 = vadd.f32 0.0, %v421
  %423 = vdwg.mxu0
  %v424 = vadd.f32 %v380, %v402
  %v425 = vmul.f32 %v424, 0.5
  %v426 = vsel %vm254, %v424, %v425
  %v427 = vtanh.pop %v426
  %v428 = vadd.f32 %v427, 1.0
  %v429 = vmul.f32 %v428, 0.5
  %v430 = vsel %vm254, %v427, %v429
  %v431 = vmul.f32 %v430, %v316
  %433 = vrot.lane.b32.xlu0 %v430, 64
  %v434 = vpop.permute.xlu0 %433
  %v436 = vmul.f32 %v430, %v434
  %438 = vrot.lane.b32.xlu0 %v436, 32
  %v439 = vpop.permute.xlu0 %438
  %v441 = vadd.f32 %v431, %v439
  %v442 = vtanh.pop %v441
  %444 = vrot.lane.b32.xlu0 %v442, 64
  %v445 = vpop.permute.xlu0 %444
  %v447 = vmul.f32 %v430, %v445
  %v448 = vadd.f32 %v248, %v422
  %450 = vrot.lane.b32.xlu0 %v447, 32
  %v451 = vpop.permute.xlu0 %450
  %v452 = vsel %vm168, %v451, 0
  %454 = vmatpush.msra.mxu0 0.0
  %455 = vmatpush.msra.mxu0 0.0
  %456 = vmatpush.msra.mxu0 0.0
  %457 = vmatpush.msra.mxu0 0.0
  %458 = vmatpush.msra.mxu0 0.0
  %459 = vmatpush.msra.mxu0 0.0
  %460 = vmatpush.msra.mxu0 0.0
  %461 = vmatpush.msra.mxu0 0.0
  %462 = vmatpush.msra.mxu0 0.0
  %463 = vmatpush.msra.mxu0 0.0
  %464 = vmatpush.msra.mxu0 0.0
  %465 = vmatpush.msra.mxu0 0.0
  %466 = vmatpush.msra.mxu0 %v57
  %467 = vmatpush.msra.mxu0 %v56
  %468 = vmatpush.msra.mxu0 %v55
  %469 = vmatpush.msra.mxu0 %v54
  %470 = vmatmul.f32.gmra.mxu0 %v452
  %v471 = vpop.f32.mrf.mxu0
  %v472 = vadd.f32 0.0, %v471
  %473 = vdwg.mxu0
  %v474 = vadd.f32 %v448, %v472
  %v475 = vmul.f32 %v474, 0.5
  %v476 = vsel %vm254, %v474, %v475
  %v477 = vtanh.pop %v476
  %v478 = vadd.f32 %v477, 1.0
  %v479 = vmul.f32 %v478, 0.5
  %v480 = vsel %vm254, %v477, %v479
  %v481 = vmul.f32 %v480, %v366
  %483 = vrot.lane.b32.xlu0 %v480, 64
  %v484 = vpop.permute.xlu0 %483
  %v486 = vmul.f32 %v480, %v484
  %488 = vrot.lane.b32.xlu0 %v486, 32
  %v489 = vpop.permute.xlu0 %488
  %v491 = vadd.f32 %v481, %v489
  %v492 = vtanh.pop %v491
  %494 = vrot.lane.b32.xlu0 %v492, 64
  %v495 = vpop.permute.xlu0 %494
  %v497 = vmul.f32 %v480, %v495
  %500 = vrot.lane.b32.xlu0 %v497, 64
  %v501 = vpop.permute.xlu0 %500
  %v503 = vsel %vm168, %v451, %v501
  %s504 = scalar_lea.vmem [#allocation2], 16
  %v505 = vld [vmem:[%s504] sm:$0xff]
  %v507 = vsel %vm78, %v503, 0
  %509 = vmatpush.msra.mxu0 0.0
  %510 = vmatpush.msra.mxu0 0.0
  %511 = vmatpush.msra.mxu0 0.0
  %512 = vmatpush.msra.mxu0 0.0
  %513 = vmatpush.msra.mxu0 0.0
  %514 = vmatpush.msra.mxu0 0.0
  %515 = vmatpush.msra.mxu0 0.0
  %516 = vmatpush.msra.mxu0 0.0
  %517 = vmatpush.msra.mxu0 %v52
  %518 = vmatpush.msra.mxu0 %v50
  %519 = vmatpush.msra.mxu0 %v48
  %520 = vmatpush.msra.mxu0 %v46
  %521 = vmatpush.msra.mxu0 %v44
  %522 = vmatpush.msra.mxu0 %v42
  %523 = vmatpush.msra.mxu0 %v40
  %524 = vmatpush.msra.mxu0 %v38
  %525 = vmatmul.f32.gmra.mxu0 %v507
  %v526 = vpop.f32.mrf.mxu0
  %v527 = vadd.f32 0.0, %v526
  %528 = vdwg.mxu0
  %529 = vmatpush.msra.mxu0 0.0
  %530 = vmatpush.msra.mxu0 0.0
  %531 = vmatpush.msra.mxu0 0.0
  %532 = vmatpush.msra.mxu0 0.0
  %533 = vmatpush.msra.mxu0 0.0
  %534 = vmatpush.msra.mxu0 0.0
  %535 = vmatpush.msra.mxu0 0.0
  %536 = vmatpush.msra.mxu0 0.0
  %537 = vmatpush.msra.mxu0 %v53
  %538 = vmatpush.msra.mxu0 %v51
  %539 = vmatpush.msra.mxu0 %v49
  %540 = vmatpush.msra.mxu0 %v47
  %541 = vmatpush.msra.mxu0 %v45
  %542 = vmatpush.msra.mxu0 %v43
  %543 = vmatpush.msra.mxu0 %v41
  %544 = vmatpush.msra.mxu0 %v39
  %545 = vmatmul.f32.gmra.mxu0 %v507
  %v546 = vpop.f32.mrf.mxu0
  %v547 = vadd.f32 0.0, %v546
  %548 = vdwg.mxu0
  %v549 = vadd.f32 %v505, %v527
  %v550 = vmul.f32 %v549, 0.5
  %v551 = vsel %vm254, %v549, %v550
  %v552 = vtanh.pop %v551
  %v553 = vadd.f32 %v552, 1.0
  %v554 = vmul.f32 %v553, 0.5
  %v555 = vsel %vm254, %v552, %v554
  %v556 = vmul.f32 %v555, %v441
  %558 = vrot.lane.b32.xlu0 %v555, 64
  %v559 = vpop.permute.xlu0 %558
  %v561 = vmul.f32 %v555, %v559
  %563 = vrot.lane.b32.xlu0 %v561, 32
  %v564 = vpop.permute.xlu0 %563
  %v566 = vadd.f32 %v556, %v564
  %v567 = vtanh.pop %v566
  %569 = vrot.lane.b32.xlu0 %v567, 64
  %v570 = vpop.permute.xlu0 %569
  %v572 = vmul.f32 %v555, %v570
  %v573 = vadd.f32 %v248, %v547
  %575 = vrot.lane.b32.xlu0 %v572, 32
  %v576 = vpop.permute.xlu0 %575
  %v577 = vsel %vm168, %v576, 0
  %579 = vmatpush.msra.mxu0 0.0
  %580 = vmatpush.msra.mxu0 0.0
  %581 = vmatpush.msra.mxu0 0.0
  %582 = vmatpush.msra.mxu0 0.0
  %583 = vmatpush.msra.mxu0 0.0
  %584 = vmatpush.msra.mxu0 0.0
  %585 = vmatpush.msra.mxu0 0.0
  %586 = vmatpush.msra.mxu0 0.0
  %587 = vmatpush.msra.mxu0 0.0
  %588 = vmatpush.msra.mxu0 0.0
  %589 = vmatpush.msra.mxu0 0.0
  %590 = vmatpush.msra.mxu0 0.0
  %591 = vmatpush.msra.mxu0 %v57
  %592 = vmatpush.msra.mxu0 %v56
  %593 = vmatpush.msra.mxu0 %v55
  %594 = vmatpush.msra.mxu0 %v54
  %595 = vmatmul.f32.gmra.mxu0 %v577
  %v596 = vpop.f32.mrf.mxu0
  %v597 = vadd.f32 0.0, %v596
  %598 = vdwg.mxu0
  %v599 = vadd.f32 %v573, %v597
  %v600 = vmul.f32 %v599, 0.5
  %v601 = vsel %vm254, %v599, %v600
  %v602 = vtanh.pop %v601
  %v603 = vadd.f32 %v602, 1.0
  %v604 = vmul.f32 %v603, 0.5
  %v605 = vsel %vm254, %v602, %v604
  %v606 = vmul.f32 %v605, %v491
  %608 = vrot.lane.b32.xlu0 %v605, 64
  %v609 = vpop.permute.xlu0 %608
  %v611 = vmul.f32 %v605, %v609
  %613 = vrot.lane.b32.xlu0 %v611, 32
  %v614 = vpop.permute.xlu0 %613
  %v616 = vadd.f32 %v606, %v614
  %v617 = vtanh.pop %v616
  %619 = vrot.lane.b32.xlu0 %v617, 64
  %v620 = vpop.permute.xlu0 %619
  %v622 = vmul.f32 %v605, %v620
  %625 = vrot.lane.b32.xlu0 %v622, 64
  %v626 = vpop.permute.xlu0 %625
  %v628 = vsel %vm168, %v576, %v626
  %s629 = scalar_lea.vmem [#allocation2], 24
  %v630 = vld [vmem:[%s629] sm:$0xff]
  %v632 = vsel %vm78, %v628, 0
  %634 = vmatpush.msra.mxu0 0.0
  %635 = vmatpush.msra.mxu0 0.0
  %636 = vmatpush.msra.mxu0 0.0
  %637 = vmatpush.msra.mxu0 0.0
  %638 = vmatpush.msra.mxu0 0.0
  %639 = vmatpush.msra.mxu0 0.0
  %640 = vmatpush.msra.mxu0 0.0
  %641 = vmatpush.msra.mxu0 0.0
  %642 = vmatpush.msra.mxu0 %v52
  %643 = vmatpush.msra.mxu0 %v50
  %644 = vmatpush.msra.mxu0 %v48
  %645 = vmatpush.msra.mxu0 %v46
  %646 = vmatpush.msra.mxu0 %v44
  %647 = vmatpush.msra.mxu0 %v42
  %648 = vmatpush.msra.mxu0 %v40
  %649 = vmatpush.msra.mxu0 %v38
  %650 = vmatmul.f32.gmra.mxu0 %v632
  %v651 = vpop.f32.mrf.mxu0
  %v652 = vadd.f32 0.0, %v651
  %653 = vdwg.mxu0
  %654 = vmatpush.msra.mxu0 0.0
  %655 = vmatpush.msra.mxu0 0.0
  %656 = vmatpush.msra.mxu0 0.0
  %657 = vmatpush.msra.mxu0 0.0
  %658 = vmatpush.msra.mxu0 0.0
  %659 = vmatpush.msra.mxu0 0.0
  %660 = vmatpush.msra.mxu0 0.0
  %661 = vmatpush.msra.mxu0 0.0
  %662 = vmatpush.msra.mxu0 %v53
  %663 = vmatpush.msra.mxu0 %v51
  %664 = vmatpush.msra.mxu0 %v49
  %665 = vmatpush.msra.mxu0 %v47
  %666 = vmatpush.msra.mxu0 %v45
  %667 = vmatpush.msra.mxu0 %v43
  %668 = vmatpush.msra.mxu0 %v41
  %669 = vmatpush.msra.mxu0 %v39
  %670 = vmatmul.f32.gmra.mxu0 %v632
  %v671 = vpop.f32.mrf.mxu0
  %v672 = vadd.f32 0.0, %v671
  %673 = vdwg.mxu0
  %v674 = vadd.f32 %v630, %v652
  %v675 = vmul.f32 %v674, 0.5
  %v676 = vsel %vm254, %v674, %v675
  %v677 = vtanh.pop %v676
  %v678 = vadd.f32 %v677, 1.0
  %v679 = vmul.f32 %v678, 0.5
  %v680 = vsel %vm254, %v677, %v679
  %v681 = vmul.f32 %v680, %v566
  %683 = vrot.lane.b32.xlu0 %v680, 64
  %v684 = vpop.permute.xlu0 %683
  %v686 = vmul.f32 %v680, %v684
  %688 = vrot.lane.b32.xlu0 %v686, 32
  %v689 = vpop.permute.xlu0 %688
  %v691 = vadd.f32 %v681, %v689
  %v692 = vtanh.pop %v691
  %694 = vrot.lane.b32.xlu0 %v692, 64
  %v695 = vpop.permute.xlu0 %694
  %v697 = vmul.f32 %v680, %v695
  %v698 = vadd.f32 %v248, %v672
  %700 = vrot.lane.b32.xlu0 %v697, 32
  %v701 = vpop.permute.xlu0 %700
  %v702 = vsel %vm168, %v701, 0
  %704 = vmatpush.msra.mxu0 0.0
  %705 = vmatpush.msra.mxu0 0.0
  %706 = vmatpush.msra.mxu0 0.0
  %707 = vmatpush.msra.mxu0 0.0
  %708 = vmatpush.msra.mxu0 0.0
  %709 = vmatpush.msra.mxu0 0.0
  %710 = vmatpush.msra.mxu0 0.0
  %711 = vmatpush.msra.mxu0 0.0
  %712 = vmatpush.msra.mxu0 0.0
  %713 = vmatpush.msra.mxu0 0.0
  %714 = vmatpush.msra.mxu0 0.0
  %715 = vmatpush.msra.mxu0 0.0
  %716 = vmatpush.msra.mxu0 %v57
  %717 = vmatpush.msra.mxu0 %v56
  %718 = vmatpush.msra.mxu0 %v55
  %719 = vmatpush.msra.mxu0 %v54
  %720 = vmatmul.f32.gmra.mxu0 %v702
  %v721 = vpop.f32.mrf.mxu0
  %v722 = vadd.f32 0.0, %v721
  %723 = vdwg.mxu0
  %v724 = vadd.f32 %v698, %v722
  %v725 = vmul.f32 %v724, 0.5
  %v726 = vsel %vm254, %v724, %v725
  %v727 = vtanh.pop %v726
  %v728 = vadd.f32 %v727, 1.0
  %v729 = vmul.f32 %v728, 0.5
  %v730 = vsel %vm254, %v727, %v729
  %v731 = vmul.f32 %v730, %v616
  %733 = vrot.lane.b32.xlu0 %v730, 64
  %v734 = vpop.permute.xlu0 %733
  %v736 = vmul.f32 %v730, %v734
  %738 = vrot.lane.b32.xlu0 %v736, 32
  %v739 = vpop.permute.xlu0 %738
  %v741 = vadd.f32 %v731, %v739
  %v742 = vtanh.pop %v741
  %744 = vrot.lane.b32.xlu0 %v742, 64
  %v745 = vpop.permute.xlu0 %744
  %v747 = vmul.f32 %v730, %v745
  %750 = vrot.lane.b32.xlu0 %v747, 64
  %v751 = vpop.permute.xlu0 %750
  %v753 = vsel %vm168, %v701, %v751
  %s754 = scalar_lea.vmem [#allocation2], 32
  %v755 = vld [vmem:[%s754] sm:$0xff]
  %v757 = vsel %vm78, %v753, 0
  %759 = vmatpush.msra.mxu0 0.0
  %760 = vmatpush.msra.mxu0 0.0
  %761 = vmatpush.msra.mxu0 0.0
  %762 = vmatpush.msra.mxu0 0.0
  %763 = vmatpush.msra.mxu0 0.0
  %764 = vmatpush.msra.mxu0 0.0
  %765 = vmatpush.msra.mxu0 0.0
  %766 = vmatpush.msra.mxu0 0.0
  %767 = vmatpush.msra.mxu0 %v52
  %768 = vmatpush.msra.mxu0 %v50
  %769 = vmatpush.msra.mxu0 %v48
  %770 = vmatpush.msra.mxu0 %v46
  %771 = vmatpush.msra.mxu0 %v44
  %772 = vmatpush.msra.mxu0 %v42
  %773 = vmatpush.msra.mxu0 %v40
  %774 = vmatpush.msra.mxu0 %v38
  %775 = vmatmul.f32.gmra.mxu0 %v757
  %v776 = vpop.f32.mrf.mxu0
  %v777 = vadd.f32 0.0, %v776
  %778 = vdwg.mxu0
  %779 = vmatpush.msra.mxu0 0.0
  %780 = vmatpush.msra.mxu0 0.0
  %781 = vmatpush.msra.mxu0 0.0
  %782 = vmatpush.msra.mxu0 0.0
  %783 = vmatpush.msra.mxu0 0.0
  %784 = vmatpush.msra.mxu0 0.0
  %785 = vmatpush.msra.mxu0 0.0
  %786 = vmatpush.msra.mxu0 0.0
  %787 = vmatpush.msra.mxu0 %v53
  %788 = vmatpush.msra.mxu0 %v51
  %789 = vmatpush.msra.mxu0 %v49
  %790 = vmatpush.msra.mxu0 %v47
  %791 = vmatpush.msra.mxu0 %v45
  %792 = vmatpush.msra.mxu0 %v43
  %793 = vmatpush.msra.mxu0 %v41
  %794 = vmatpush.msra.mxu0 %v39
  %795 = vmatmul.f32.gmra.mxu0 %v757
  %v796 = vpop.f32.mrf.mxu0
  %v797 = vadd.f32 0.0, %v796
  %798 = vdwg.mxu0
  %v799 = vadd.f32 %v755, %v777
  %v800 = vmul.f32 %v799, 0.5
  %v801 = vsel %vm254, %v799, %v800
  %v802 = vtanh.pop %v801
  %v803 = vadd.f32 %v802, 1.0
  %v804 = vmul.f32 %v803, 0.5
  %v805 = vsel %vm254, %v802, %v804
  %v806 = vmul.f32 %v805, %v691
  %808 = vrot.lane.b32.xlu0 %v805, 64
  %v809 = vpop.permute.xlu0 %808
  %v811 = vmul.f32 %v805, %v809
  %813 = vrot.lane.b32.xlu0 %v811, 32
  %v814 = vpop.permute.xlu0 %813
  %v816 = vadd.f32 %v806, %v814
  %v817 = vtanh.pop %v816
  %819 = vrot.lane.b32.xlu0 %v817, 64
  %v820 = vpop.permute.xlu0 %819
  %v822 = vmul.f32 %v805, %v820
  %v823 = vadd.f32 %v248, %v797
  %825 = vrot.lane.b32.xlu0 %v822, 32
  %v826 = vpop.permute.xlu0 %825
  %v827 = vsel %vm168, %v826, 0
  %829 = vmatpush.msra.mxu0 0.0
  %830 = vmatpush.msra.mxu0 0.0
  %831 = vmatpush.msra.mxu0 0.0
  %832 = vmatpush.msra.mxu0 0.0
  %833 = vmatpush.msra.mxu0 0.0
  %834 = vmatpush.msra.mxu0 0.0
  %835 = vmatpush.msra.mxu0 0.0
  %836 = vmatpush.msra.mxu0 0.0
  %837 = vmatpush.msra.mxu0 0.0
  %838 = vmatpush.msra.mxu0 0.0
  %839 = vmatpush.msra.mxu0 0.0
  %840 = vmatpush.msra.mxu0 0.0
  %841 = vmatpush.msra.mxu0 %v57
  %842 = vmatpush.msra.mxu0 %v56
  %843 = vmatpush.msra.mxu0 %v55
  %844 = vmatpush.msra.mxu0 %v54
  %845 = vmatmul.f32.gmra.mxu0 %v827
  %v846 = vpop.f32.mrf.mxu0
  %v847 = vadd.f32 0.0, %v846
  %848 = vdwg.mxu0
  %v849 = vadd.f32 %v823, %v847
  %v850 = vmul.f32 %v849, 0.5
  %v851 = vsel %vm254, %v849, %v850
  %v852 = vtanh.pop %v851
  %v853 = vadd.f32 %v852, 1.0
  %v854 = vmul.f32 %v853, 0.5
  %v855 = vsel %vm254, %v852, %v854
  %v856 = vmul.f32 %v855, %v741
  %858 = vrot.lane.b32.xlu0 %v855, 64
  %v859 = vpop.permute.xlu0 %858
  %v861 = vmul.f32 %v855, %v859
  %863 = vrot.lane.b32.xlu0 %v861, 32
  %v864 = vpop.permute.xlu0 %863
  %v866 = vadd.f32 %v856, %v864
  %v867 = vtanh.pop %v866
  %869 = vrot.lane.b32.xlu0 %v867, 64
  %v870 = vpop.permute.xlu0 %869
  %v872 = vmul.f32 %v855, %v870
  %875 = vrot.lane.b32.xlu0 %v872, 64
  %v876 = vpop.permute.xlu0 %875
  %v878 = vsel %vm168, %v826, %v876
  %s879 = scalar_lea.vmem [#allocation2], 40
  %v880 = vld [vmem:[%s879] sm:$0xff]
  %v882 = vsel %vm78, %v878, 0
  %884 = vmatpush.msra.mxu0 0.0
  %885 = vmatpush.msra.mxu0 0.0
  %886 = vmatpush.msra.mxu0 0.0
  %887 = vmatpush.msra.mxu0 0.0
  %888 = vmatpush.msra.mxu0 0.0
  %889 = vmatpush.msra.mxu0 0.0
  %890 = vmatpush.msra.mxu0 0.0
  %891 = vmatpush.msra.mxu0 0.0
  %892 = vmatpush.msra.mxu0 %v52
  %893 = vmatpush.msra.mxu0 %v50
  %894 = vmatpush.msra.mxu0 %v48
  %895 = vmatpush.msra.mxu0 %v46
  %896 = vmatpush.msra.mxu0 %v44
  %897 = vmatpush.msra.mxu0 %v42
  %898 = vmatpush.msra.mxu0 %v40
  %899 = vmatpush.msra.mxu0 %v38
  %900 = vmatmul.f32.gmra.mxu0 %v882
  %v901 = vpop.f32.mrf.mxu0
  %v902 = vadd.f32 0.0, %v901
  %903 = vdwg.mxu0
  %904 = vmatpush.msra.mxu0 0.0
  %905 = vmatpush.msra.mxu0 0.0
  %906 = vmatpush.msra.mxu0 0.0
  %907 = vmatpush.msra.mxu0 0.0
  %908 = vmatpush.msra.mxu0 0.0
  %909 = vmatpush.msra.mxu0 0.0
  %910 = vmatpush.msra.mxu0 0.0
  %911 = vmatpush.msra.mxu0 0.0
  %912 = vmatpush.msra.mxu0 %v53
  %913 = vmatpush.msra.mxu0 %v51
  %914 = vmatpush.msra.mxu0 %v49
  %915 = vmatpush.msra.mxu0 %v47
  %916 = vmatpush.msra.mxu0 %v45
  %917 = vmatpush.msra.mxu0 %v43
  %918 = vmatpush.msra.mxu0 %v41
  %919 = vmatpush.msra.mxu0 %v39
  %920 = vmatmul.f32.gmra.mxu0 %v882
  %v921 = vpop.f32.mrf.mxu0
  %v922 = vadd.f32 0.0, %v921
  %923 = vdwg.mxu0
  %v924 = vadd.f32 %v880, %v902
  %v925 = vmul.f32 %v924, 0.5
  %v926 = vsel %vm254, %v924, %v925
  %v927 = vtanh.pop %v926
  %v928 = vadd.f32 %v927, 1.0
  %v929 = vmul.f32 %v928, 0.5
  %v930 = vsel %vm254, %v927, %v929
  %v931 = vmul.f32 %v930, %v816
  %933 = vrot.lane.b32.xlu0 %v930, 64
  %v934 = vpop.permute.xlu0 %933
  %v936 = vmul.f32 %v930, %v934
  %938 = vrot.lane.b32.xlu0 %v936, 32
  %v939 = vpop.permute.xlu0 %938
  %v941 = vadd.f32 %v931, %v939
  %v942 = vtanh.pop %v941
  %944 = vrot.lane.b32.xlu0 %v942, 64
  %v945 = vpop.permute.xlu0 %944
  %v947 = vmul.f32 %v930, %v945
  %v948 = vadd.f32 %v248, %v922
  %950 = vrot.lane.b32.xlu0 %v947, 32
  %v951 = vpop.permute.xlu0 %950
  %v952 = vsel %vm168, %v951, 0
  %954 = vmatpush.msra.mxu0 0.0
  %955 = vmatpush.msra.mxu0 0.0
  %956 = vmatpush.msra.mxu0 0.0
  %957 = vmatpush.msra.mxu0 0.0
  %958 = vmatpush.msra.mxu0 0.0
  %959 = vmatpush.msra.mxu0 0.0
  %960 = vmatpush.msra.mxu0 0.0
  %961 = vmatpush.msra.mxu0 0.0
  %962 = vmatpush.msra.mxu0 0.0
  %963 = vmatpush.msra.mxu0 0.0
  %964 = vmatpush.msra.mxu0 0.0
  %965 = vmatpush.msra.mxu0 0.0
  %966 = vmatpush.msra.mxu0 %v57
  %967 = vmatpush.msra.mxu0 %v56
  %968 = vmatpush.msra.mxu0 %v55
  %969 = vmatpush.msra.mxu0 %v54
  %970 = vmatmul.f32.gmra.mxu0 %v952
  %v971 = vpop.f32.mrf.mxu0
  %v972 = vadd.f32 0.0, %v971
  %973 = vdwg.mxu0
  %v974 = vadd.f32 %v948, %v972
  %v975 = vmul.f32 %v974, 0.5
  %v976 = vsel %vm254, %v974, %v975
  %v977 = vtanh.pop %v976
  %v978 = vadd.f32 %v977, 1.0
  %v979 = vmul.f32 %v978, 0.5
  %v980 = vsel %vm254, %v977, %v979
  %v981 = vmul.f32 %v980, %v866
  %983 = vrot.lane.b32.xlu0 %v980, 64
  %v984 = vpop.permute.xlu0 %983
  %v986 = vmul.f32 %v980, %v984
  %988 = vrot.lane.b32.xlu0 %v986, 32
  %v989 = vpop.permute.xlu0 %988
  %v991 = vadd.f32 %v981, %v989
  %v992 = vtanh.pop %v991
  %994 = vrot.lane.b32.xlu0 %v992, 64
  %v995 = vpop.permute.xlu0 %994
  %v997 = vmul.f32 %v980, %v995
  %1000 = vrot.lane.b32.xlu0 %v997, 64
  %v1001 = vpop.permute.xlu0 %1000
  %v1003 = vsel %vm168, %v951, %v1001
  %s1004 = scalar_lea.vmem [#allocation2], 48
  %v1005 = vld [vmem:[%s1004] sm:$0xff]
  %v1007 = vsel %vm78, %v1003, 0
  %1009 = vmatpush.msra.mxu0 0.0
  %1010 = vmatpush.msra.mxu0 0.0
  %1011 = vmatpush.msra.mxu0 0.0
  %1012 = vmatpush.msra.mxu0 0.0
  %1013 = vmatpush.msra.mxu0 0.0
  %1014 = vmatpush.msra.mxu0 0.0
  %1015 = vmatpush.msra.mxu0 0.0
  %1016 = vmatpush.msra.mxu0 0.0
  %1017 = vmatpush.msra.mxu0 %v52
  %1018 = vmatpush.msra.mxu0 %v50
  %1019 = vmatpush.msra.mxu0 %v48
  %1020 = vmatpush.msra.mxu0 %v46
  %1021 = vmatpush.msra.mxu0 %v44
  %1022 = vmatpush.msra.mxu0 %v42
  %1023 = vmatpush.msra.mxu0 %v40
  %1024 = vmatpush.msra.mxu0 %v38
  %1025 = vmatmul.f32.gmra.mxu0 %v1007
  %v1026 = vpop.f32.mrf.mxu0
  %v1027 = vadd.f32 0.0, %v1026
  %1028 = vdwg.mxu0
  %1029 = vmatpush.msra.mxu0 0.0
  %1030 = vmatpush.msra.mxu0 0.0
  %1031 = vmatpush.msra.mxu0 0.0
  %1032 = vmatpush.msra.mxu0 0.0
  %1033 = vmatpush.msra.mxu0 0.0
  %1034 = vmatpush.msra.mxu0 0.0
  %1035 = vmatpush.msra.mxu0 0.0
  %1036 = vmatpush.msra.mxu0 0.0
  %1037 = vmatpush.msra.mxu0 %v53
  %1038 = vmatpush.msra.mxu0 %v51
  %1039 = vmatpush.msra.mxu0 %v49
  %1040 = vmatpush.msra.mxu0 %v47
  %1041 = vmatpush.msra.mxu0 %v45
  %1042 = vmatpush.msra.mxu0 %v43
  %1043 = vmatpush.msra.mxu0 %v41
  %1044 = vmatpush.msra.mxu0 %v39
  %1045 = vmatmul.f32.gmra.mxu0 %v1007
  %v1046 = vpop.f32.mrf.mxu0
  %v1047 = vadd.f32 0.0, %v1046
  %1048 = vdwg.mxu0
  %v1049 = vadd.f32 %v1005, %v1027
  %v1050 = vmul.f32 %v1049, 0.5
  %v1051 = vsel %vm254, %v1049, %v1050
  %v1052 = vtanh.pop %v1051
  %v1053 = vadd.f32 %v1052, 1.0
  %v1054 = vmul.f32 %v1053, 0.5
  %v1055 = vsel %vm254, %v1052, %v1054
  %v1056 = vmul.f32 %v1055, %v941
  %1058 = vrot.lane.b32.xlu0 %v1055, 64
  %v1059 = vpop.permute.xlu0 %1058
  %v1061 = vmul.f32 %v1055, %v1059
  %1063 = vrot.lane.b32.xlu0 %v1061, 32
  %v1064 = vpop.permute.xlu0 %1063
  %v1066 = vadd.f32 %v1056, %v1064
  %v1067 = vtanh.pop %v1066
  %1069 = vrot.lane.b32.xlu0 %v1067, 64
  %v1070 = vpop.permute.xlu0 %1069
  %v1072 = vmul.f32 %v1055, %v1070
  %v1073 = vadd.f32 %v248, %v1047
  %1075 = vrot.lane.b32.xlu0 %v1072, 32
  %v1076 = vpop.permute.xlu0 %1075
  %v1077 = vsel %vm168, %v1076, 0
  %1079 = vmatpush.msra.mxu0 0.0
  %1080 = vmatpush.msra.mxu0 0.0
  %1081 = vmatpush.msra.mxu0 0.0
  %1082 = vmatpush.msra.mxu0 0.0
  %1083 = vmatpush.msra.mxu0 0.0
  %1084 = vmatpush.msra.mxu0 0.0
  %1085 = vmatpush.msra.mxu0 0.0
  %1086 = vmatpush.msra.mxu0 0.0
  %1087 = vmatpush.msra.mxu0 0.0
  %1088 = vmatpush.msra.mxu0 0.0
  %1089 = vmatpush.msra.mxu0 0.0
  %1090 = vmatpush.msra.mxu0 0.0
  %1091 = vmatpush.msra.mxu0 %v57
  %1092 = vmatpush.msra.mxu0 %v56
  %1093 = vmatpush.msra.mxu0 %v55
  %1094 = vmatpush.msra.mxu0 %v54
  %1095 = vmatmul.f32.gmra.mxu0 %v1077
  %v1096 = vpop.f32.mrf.mxu0
  %v1097 = vadd.f32 0.0, %v1096
  %1098 = vdwg.mxu0
  %v1099 = vadd.f32 %v1073, %v1097
  %v1100 = vmul.f32 %v1099, 0.5
  %v1101 = vsel %vm254, %v1099, %v1100
  %v1102 = vtanh.pop %v1101
  %v1103 = vadd.f32 %v1102, 1.0
  %v1104 = vmul.f32 %v1103, 0.5
  %v1105 = vsel %vm254, %v1102, %v1104
  %v1106 = vmul.f32 %v1105, %v991
  %1108 = vrot.lane.b32.xlu0 %v1105, 64
  %v1109 = vpop.permute.xlu0 %1108
  %v1111 = vmul.f32 %v1105, %v1109
  %1113 = vrot.lane.b32.xlu0 %v1111, 32
  %v1114 = vpop.permute.xlu0 %1113
  %v1116 = vadd.f32 %v1106, %v1114
  %v1117 = vtanh.pop %v1116
  %1119 = vrot.lane.b32.xlu0 %v1117, 64
  %v1120 = vpop.permute.xlu0 %1119
  %v1122 = vmul.f32 %v1105, %v1120
  %1125 = vrot.lane.b32.xlu0 %v1122, 64
  %v1126 = vpop.permute.xlu0 %1125
  %v1128 = vsel %vm168, %v1076, %v1126
  %s1129 = scalar_lea.vmem [#allocation2], 56
  %v1130 = vld [vmem:[%s1129] sm:$0xff]
  %v1132 = vsel %vm78, %v1128, 0
  %1134 = vmatpush.msra.mxu0 0.0
  %1135 = vmatpush.msra.mxu0 0.0
  %1136 = vmatpush.msra.mxu0 0.0
  %1137 = vmatpush.msra.mxu0 0.0
  %1138 = vmatpush.msra.mxu0 0.0
  %1139 = vmatpush.msra.mxu0 0.0
  %1140 = vmatpush.msra.mxu0 0.0
  %1141 = vmatpush.msra.mxu0 0.0
  %1142 = vmatpush.msra.mxu0 %v52
  %1143 = vmatpush.msra.mxu0 %v50
  %1144 = vmatpush.msra.mxu0 %v48
  %1145 = vmatpush.msra.mxu0 %v46
  %1146 = vmatpush.msra.mxu0 %v44
  %1147 = vmatpush.msra.mxu0 %v42
  %1148 = vmatpush.msra.mxu0 %v40
  %1149 = vmatpush.msra.mxu0 %v38
  %1150 = vmatmul.f32.gmra.mxu0 %v1132
  %v1151 = vpop.f32.mrf.mxu0
  %v1152 = vadd.f32 0.0, %v1151
  %1153 = vdwg.mxu0
  %1154 = vmatpush.msra.mxu0 0.0
  %1155 = vmatpush.msra.mxu0 0.0
  %1156 = vmatpush.msra.mxu0 0.0
  %1157 = vmatpush.msra.mxu0 0.0
  %1158 = vmatpush.msra.mxu0 0.0
  %1159 = vmatpush.msra.mxu0 0.0
  %1160 = vmatpush.msra.mxu0 0.0
  %1161 = vmatpush.msra.mxu0 0.0
  %1162 = vmatpush.msra.mxu0 %v53
  %1163 = vmatpush.msra.mxu0 %v51
  %1164 = vmatpush.msra.mxu0 %v49
  %1165 = vmatpush.msra.mxu0 %v47
  %1166 = vmatpush.msra.mxu0 %v45
  %1167 = vmatpush.msra.mxu0 %v43
  %1168 = vmatpush.msra.mxu0 %v41
  %1169 = vmatpush.msra.mxu0 %v39
  %1170 = vmatmul.f32.gmra.mxu0 %v1132
  %v1171 = vpop.f32.mrf.mxu0
  %v1172 = vadd.f32 0.0, %v1171
  %1173 = vdwg.mxu0
  %v1174 = vadd.f32 %v1130, %v1152
  %v1175 = vmul.f32 %v1174, 0.5
  %v1176 = vsel %vm254, %v1174, %v1175
  %v1177 = vtanh.pop %v1176
  %v1178 = vadd.f32 %v1177, 1.0
  %v1179 = vmul.f32 %v1178, 0.5
  %v1180 = vsel %vm254, %v1177, %v1179
  %v1181 = vmul.f32 %v1180, %v1066
  %1183 = vrot.lane.b32.xlu0 %v1180, 64
  %v1184 = vpop.permute.xlu0 %1183
  %v1186 = vmul.f32 %v1180, %v1184
  %1188 = vrot.lane.b32.xlu0 %v1186, 32
  %v1189 = vpop.permute.xlu0 %1188
  %v1191 = vadd.f32 %v1181, %v1189
  %v1192 = vtanh.pop %v1191
  %1194 = vrot.lane.b32.xlu0 %v1192, 64
  %v1195 = vpop.permute.xlu0 %1194
  %v1197 = vmul.f32 %v1180, %v1195
  %v1198 = vadd.f32 %v248, %v1172
  %1200 = vrot.lane.b32.xlu0 %v1197, 32
  %v1201 = vpop.permute.xlu0 %1200
  %v1202 = vsel %vm168, %v1201, 0
  %1204 = vmatpush.msra.mxu0 0.0
  %1205 = vmatpush.msra.mxu0 0.0
  %1206 = vmatpush.msra.mxu0 0.0
  %1207 = vmatpush.msra.mxu0 0.0
  %1208 = vmatpush.msra.mxu0 0.0
  %1209 = vmatpush.msra.mxu0 0.0
  %1210 = vmatpush.msra.mxu0 0.0
  %1211 = vmatpush.msra.mxu0 0.0
  %1212 = vmatpush.msra.mxu0 0.0
  %1213 = vmatpush.msra.mxu0 0.0
  %1214 = vmatpush.msra.mxu0 0.0
  %1215 = vmatpush.msra.mxu0 0.0
  %1216 = vmatpush.msra.mxu0 %v57
  %1217 = vmatpush.msra.mxu0 %v56
  %1218 = vmatpush.msra.mxu0 %v55
  %1219 = vmatpush.msra.mxu0 %v54
  %1220 = vmatmul.f32.gmra.mxu0 %v1202
  %v1221 = vpop.f32.mrf.mxu0
  %v1222 = vadd.f32 0.0, %v1221
  %1223 = vdwg.mxu0
  %v1224 = vadd.f32 %v1198, %v1222
  %v1225 = vmul.f32 %v1224, 0.5
  %v1226 = vsel %vm254, %v1224, %v1225
  %v1227 = vtanh.pop %v1226
  %v1228 = vadd.f32 %v1227, 1.0
  %v1229 = vmul.f32 %v1228, 0.5
  %v1230 = vsel %vm254, %v1227, %v1229
  %v1231 = vmul.f32 %v1230, %v1116
  %1233 = vrot.lane.b32.xlu0 %v1230, 64
  %v1234 = vpop.permute.xlu0 %1233
  %v1236 = vmul.f32 %v1230, %v1234
  %1238 = vrot.lane.b32.xlu0 %v1236, 32
  %v1239 = vpop.permute.xlu0 %1238
  %v1241 = vadd.f32 %v1231, %v1239
  %v1242 = vtanh.pop %v1241
  %1244 = vrot.lane.b32.xlu0 %v1242, 64
  %v1245 = vpop.permute.xlu0 %1244
  %v1247 = vmul.f32 %v1230, %v1245
  %1250 = vrot.lane.b32.xlu0 %v1247, 64
  %v1251 = vpop.permute.xlu0 %1250
  %v1253 = vsel %vm168, %v1201, %v1251
  %v1254 = vld [vmem:[#allocation3] sm:$0xff]
  %v1256 = vsel %vm78, %v1253, 0
  %1258 = vmatpush.msra.mxu0 0.0
  %1259 = vmatpush.msra.mxu0 0.0
  %1260 = vmatpush.msra.mxu0 0.0
  %1261 = vmatpush.msra.mxu0 0.0
  %1262 = vmatpush.msra.mxu0 0.0
  %1263 = vmatpush.msra.mxu0 0.0
  %1264 = vmatpush.msra.mxu0 0.0
  %1265 = vmatpush.msra.mxu0 0.0
  %1266 = vmatpush.msra.mxu0 %v52
  %1267 = vmatpush.msra.mxu0 %v50
  %1268 = vmatpush.msra.mxu0 %v48
  %1269 = vmatpush.msra.mxu0 %v46
  %1270 = vmatpush.msra.mxu0 %v44
  %1271 = vmatpush.msra.mxu0 %v42
  %1272 = vmatpush.msra.mxu0 %v40
  %1273 = vmatpush.msra.mxu0 %v38
  %1274 = vmatmul.f32.gmra.mxu0 %v1256
  %v1275 = vpop.f32.mrf.mxu0
  %v1276 = vadd.f32 0.0, %v1275
  %1277 = vdwg.mxu0
  %1278 = vmatpush.msra.mxu0 0.0
  %1279 = vmatpush.msra.mxu0 0.0
  %1280 = vmatpush.msra.mxu0 0.0
  %1281 = vmatpush.msra.mxu0 0.0
  %1282 = vmatpush.msra.mxu0 0.0
  %1283 = vmatpush.msra.mxu0 0.0
  %1284 = vmatpush.msra.mxu0 0.0
  %1285 = vmatpush.msra.mxu0 0.0
  %1286 = vmatpush.msra.mxu0 %v53
  %1287 = vmatpush.msra.mxu0 %v51
  %1288 = vmatpush.msra.mxu0 %v49
  %1289 = vmatpush.msra.mxu0 %v47
  %1290 = vmatpush.msra.mxu0 %v45
  %1291 = vmatpush.msra.mxu0 %v43
  %1292 = vmatpush.msra.mxu0 %v41
  %1293 = vmatpush.msra.mxu0 %v39
  %1294 = vmatmul.f32.gmra.mxu0 %v1256
  %v1295 = vpop.f32.mrf.mxu0
  %v1296 = vadd.f32 0.0, %v1295
  %1297 = vdwg.mxu0
  %v1298 = vadd.f32 %v244, %v1276
  %v1299 = vmul.f32 %v1298, 0.5
  %v1300 = vsel %vm254, %v1298, %v1299
  %v1301 = vtanh.pop %v1300
  %v1302 = vadd.f32 %v1301, 1.0
  %v1303 = vmul.f32 %v1302, 0.5
  %v1304 = vsel %vm254, %v1301, %v1303
  %v1305 = vmul.f32 %v1304, %v1191
  %1307 = vrot.lane.b32.xlu0 %v1304, 64
  %v1308 = vpop.permute.xlu0 %1307
  %v1310 = vmul.f32 %v1304, %v1308
  %1312 = vrot.lane.b32.xlu0 %v1310, 32
  %v1313 = vpop.permute.xlu0 %1312
  %v1315 = vadd.f32 %v1305, %v1313
  %v1316 = vtanh.pop %v1315
  %1318 = vrot.lane.b32.xlu0 %v1316, 64
  %v1319 = vpop.permute.xlu0 %1318
  %v1321 = vmul.f32 %v1304, %v1319
  %v1322 = vadd.f32 %v1254, %v1296
  %1324 = vrot.lane.b32.xlu0 %v1321, 32
  %v1325 = vpop.permute.xlu0 %1324
  %v1326 = vsel %vm168, %v1325, 0
  %1328 = vmatpush.msra.mxu0 0.0
  %1329 = vmatpush.msra.mxu0 0.0
  %1330 = vmatpush.msra.mxu0 0.0
  %1331 = vmatpush.msra.mxu0 0.0
  %1332 = vmatpush.msra.mxu0 0.0
  %1333 = vmatpush.msra.mxu0 0.0
  %1334 = vmatpush.msra.mxu0 0.0
  %1335 = vmatpush.msra.mxu0 0.0
  %1336 = vmatpush.msra.mxu0 0.0
  %1337 = vmatpush.msra.mxu0 0.0
  %1338 = vmatpush.msra.mxu0 0.0
  %1339 = vmatpush.msra.mxu0 0.0
  %1340 = vmatpush.msra.mxu0 %v57
  %1341 = vmatpush.msra.mxu0 %v56
  %1342 = vmatpush.msra.mxu0 %v55
  %1343 = vmatpush.msra.mxu0 %v54
  %1344 = vmatmul.f32.gmra.mxu0 %v1326
  %v1345 = vpop.f32.mrf.mxu0
  %v1346 = vadd.f32 0.0, %v1345
  %1347 = vdwg.mxu0
  %v1348 = vadd.f32 %v1322, %v1346
  %v1349 = vmul.f32 %v1348, 0.5
  %v1350 = vsel %vm254, %v1348, %v1349
  %v1351 = vtanh.pop %v1350
  %v1352 = vadd.f32 %v1351, 1.0
  %v1353 = vmul.f32 %v1352, 0.5
  %v1354 = vsel %vm254, %v1351, %v1353
  %v1355 = vmul.f32 %v1354, %v1241
  %1357 = vrot.lane.b32.xlu0 %v1354, 64
  %v1358 = vpop.permute.xlu0 %1357
  %v1360 = vmul.f32 %v1354, %v1358
  %1362 = vrot.lane.b32.xlu0 %v1360, 32
  %v1363 = vpop.permute.xlu0 %1362
  %v1365 = vadd.f32 %v1355, %v1363
  %v1366 = vtanh.pop %v1365
  %1368 = vrot.lane.b32.xlu0 %v1366, 64
  %v1369 = vpop.permute.xlu0 %1368
  %v1371 = vmul.f32 %v1354, %v1369
  %1374 = vrot.lane.b32.xlu0 %v1371, 64
  %v1375 = vpop.permute.xlu0 %1374
  %v1377 = vsel %vm168, %v1325, %v1375
  %1378 = vrot.lane.b32.xlu0 %v1371, 32
  %v1379 = vpop.permute.xlu0 %1378
  %1381 = vst.msk [vmem:[#allocation4] sm:$0xff] %vm168, %v1379
  %s1382 = scalar_lea.vmem [#allocation3], 8
  %v1383 = vld [vmem:[%s1382] sm:$0xff]
  %v1385 = vsel %vm78, %v1377, 0
  %1387 = vmatpush.msra.mxu0 0.0
  %1388 = vmatpush.msra.mxu0 0.0
  %1389 = vmatpush.msra.mxu0 0.0
  %1390 = vmatpush.msra.mxu0 0.0
  %1391 = vmatpush.msra.mxu0 0.0
  %1392 = vmatpush.msra.mxu0 0.0
  %1393 = vmatpush.msra.mxu0 0.0
  %1394 = vmatpush.msra.mxu0 0.0
  %1395 = vmatpush.msra.mxu0 %v52
  %1396 = vmatpush.msra.mxu0 %v50
  %1397 = vmatpush.msra.mxu0 %v48
  %1398 = vmatpush.msra.mxu0 %v46
  %1399 = vmatpush.msra.mxu0 %v44
  %1400 = vmatpush.msra.mxu0 %v42
  %1401 = vmatpush.msra.mxu0 %v40
  %1402 = vmatpush.msra.mxu0 %v38
  %1403 = vmatmul.f32.gmra.mxu0 %v1385
  %v1404 = vpop.f32.mrf.mxu0
  %v1405 = vadd.f32 0.0, %v1404
  %1406 = vdwg.mxu0
  %1407 = vmatpush.msra.mxu0 0.0
  %1408 = vmatpush.msra.mxu0 0.0
  %1409 = vmatpush.msra.mxu0 0.0
  %1410 = vmatpush.msra.mxu0 0.0
  %1411 = vmatpush.msra.mxu0 0.0
  %1412 = vmatpush.msra.mxu0 0.0
  %1413 = vmatpush.msra.mxu0 0.0
  %1414 = vmatpush.msra.mxu0 0.0
  %1415 = vmatpush.msra.mxu0 %v53
  %1416 = vmatpush.msra.mxu0 %v51
  %1417 = vmatpush.msra.mxu0 %v49
  %1418 = vmatpush.msra.mxu0 %v47
  %1419 = vmatpush.msra.mxu0 %v45
  %1420 = vmatpush.msra.mxu0 %v43
  %1421 = vmatpush.msra.mxu0 %v41
  %1422 = vmatpush.msra.mxu0 %v39
  %1423 = vmatmul.f32.gmra.mxu0 %v1385
  %v1424 = vpop.f32.mrf.mxu0
  %v1425 = vadd.f32 0.0, %v1424
  %1426 = vdwg.mxu0
  %v1427 = vadd.f32 %v244, %v1405
  %v1428 = vmul.f32 %v1427, 0.5
  %v1429 = vsel %vm254, %v1427, %v1428
  %v1430 = vtanh.pop %v1429
  %v1431 = vadd.f32 %v1430, 1.0
  %v1432 = vmul.f32 %v1431, 0.5
  %v1433 = vsel %vm254, %v1430, %v1432
  %v1434 = vmul.f32 %v1433, %v1315
  %1436 = vrot.lane.b32.xlu0 %v1433, 64
  %v1437 = vpop.permute.xlu0 %1436
  %v1439 = vmul.f32 %v1433, %v1437
  %1441 = vrot.lane.b32.xlu0 %v1439, 32
  %v1442 = vpop.permute.xlu0 %1441
  %v1444 = vadd.f32 %v1434, %v1442
  %v1445 = vtanh.pop %v1444
  %1447 = vrot.lane.b32.xlu0 %v1445, 64
  %v1448 = vpop.permute.xlu0 %1447
  %v1450 = vmul.f32 %v1433, %v1448
  %v1451 = vadd.f32 %v1383, %v1425
  %1453 = vrot.lane.b32.xlu0 %v1450, 32
  %v1454 = vpop.permute.xlu0 %1453
  %v1455 = vsel %vm168, %v1454, 0
  %1457 = vmatpush.msra.mxu0 0.0
  %1458 = vmatpush.msra.mxu0 0.0
  %1459 = vmatpush.msra.mxu0 0.0
  %1460 = vmatpush.msra.mxu0 0.0
  %1461 = vmatpush.msra.mxu0 0.0
  %1462 = vmatpush.msra.mxu0 0.0
  %1463 = vmatpush.msra.mxu0 0.0
  %1464 = vmatpush.msra.mxu0 0.0
  %1465 = vmatpush.msra.mxu0 0.0
  %1466 = vmatpush.msra.mxu0 0.0
  %1467 = vmatpush.msra.mxu0 0.0
  %1468 = vmatpush.msra.mxu0 0.0
  %1469 = vmatpush.msra.mxu0 %v57
  %1470 = vmatpush.msra.mxu0 %v56
  %1471 = vmatpush.msra.mxu0 %v55
  %1472 = vmatpush.msra.mxu0 %v54
  %1473 = vmatmul.f32.gmra.mxu0 %v1455
  %v1474 = vpop.f32.mrf.mxu0
  %v1475 = vadd.f32 0.0, %v1474
  %1476 = vdwg.mxu0
  %v1477 = vadd.f32 %v1451, %v1475
  %v1478 = vmul.f32 %v1477, 0.5
  %v1479 = vsel %vm254, %v1477, %v1478
  %v1480 = vtanh.pop %v1479
  %v1481 = vadd.f32 %v1480, 1.0
  %v1482 = vmul.f32 %v1481, 0.5
  %v1483 = vsel %vm254, %v1480, %v1482
  %v1484 = vmul.f32 %v1483, %v1365
  %1486 = vrot.lane.b32.xlu0 %v1483, 64
  %v1487 = vpop.permute.xlu0 %1486
  %v1489 = vmul.f32 %v1483, %v1487
  %1491 = vrot.lane.b32.xlu0 %v1489, 32
  %v1492 = vpop.permute.xlu0 %1491
  %v1494 = vadd.f32 %v1484, %v1492
  %v1495 = vtanh.pop %v1494
  %1497 = vrot.lane.b32.xlu0 %v1495, 64
  %v1498 = vpop.permute.xlu0 %1497
  %v1500 = vmul.f32 %v1483, %v1498
  %1503 = vrot.lane.b32.xlu0 %v1500, 64
  %v1504 = vpop.permute.xlu0 %1503
  %v1506 = vsel %vm168, %v1454, %v1504
  %1507 = vrot.lane.b32.xlu0 %v1500, 32
  %v1508 = vpop.permute.xlu0 %1507
  %s1510 = scalar_lea.vmem [#allocation4], 8
  %1511 = vst.msk [vmem:[%s1510] sm:$0xff] %vm168, %v1508
  %s1512 = scalar_lea.vmem [#allocation3], 16
  %v1513 = vld [vmem:[%s1512] sm:$0xff]
  %v1515 = vsel %vm78, %v1506, 0
  %1517 = vmatpush.msra.mxu0 0.0
  %1518 = vmatpush.msra.mxu0 0.0
  %1519 = vmatpush.msra.mxu0 0.0
  %1520 = vmatpush.msra.mxu0 0.0
  %1521 = vmatpush.msra.mxu0 0.0
  %1522 = vmatpush.msra.mxu0 0.0
  %1523 = vmatpush.msra.mxu0 0.0
  %1524 = vmatpush.msra.mxu0 0.0
  %1525 = vmatpush.msra.mxu0 %v52
  %1526 = vmatpush.msra.mxu0 %v50
  %1527 = vmatpush.msra.mxu0 %v48
  %1528 = vmatpush.msra.mxu0 %v46
  %1529 = vmatpush.msra.mxu0 %v44
  %1530 = vmatpush.msra.mxu0 %v42
  %1531 = vmatpush.msra.mxu0 %v40
  %1532 = vmatpush.msra.mxu0 %v38
  %1533 = vmatmul.f32.gmra.mxu0 %v1515
  %v1534 = vpop.f32.mrf.mxu0
  %v1535 = vadd.f32 0.0, %v1534
  %1536 = vdwg.mxu0
  %1537 = vmatpush.msra.mxu0 0.0
  %1538 = vmatpush.msra.mxu0 0.0
  %1539 = vmatpush.msra.mxu0 0.0
  %1540 = vmatpush.msra.mxu0 0.0
  %1541 = vmatpush.msra.mxu0 0.0
  %1542 = vmatpush.msra.mxu0 0.0
  %1543 = vmatpush.msra.mxu0 0.0
  %1544 = vmatpush.msra.mxu0 0.0
  %1545 = vmatpush.msra.mxu0 %v53
  %1546 = vmatpush.msra.mxu0 %v51
  %1547 = vmatpush.msra.mxu0 %v49
  %1548 = vmatpush.msra.mxu0 %v47
  %1549 = vmatpush.msra.mxu0 %v45
  %1550 = vmatpush.msra.mxu0 %v43
  %1551 = vmatpush.msra.mxu0 %v41
  %1552 = vmatpush.msra.mxu0 %v39
  %1553 = vmatmul.f32.gmra.mxu0 %v1515
  %v1554 = vpop.f32.mrf.mxu0
  %v1555 = vadd.f32 0.0, %v1554
  %1556 = vdwg.mxu0
  %v1557 = vadd.f32 %v244, %v1535
  %v1558 = vmul.f32 %v1557, 0.5
  %v1559 = vsel %vm254, %v1557, %v1558
  %v1560 = vtanh.pop %v1559
  %v1561 = vadd.f32 %v1560, 1.0
  %v1562 = vmul.f32 %v1561, 0.5
  %v1563 = vsel %vm254, %v1560, %v1562
  %v1564 = vmul.f32 %v1563, %v1444
  %1566 = vrot.lane.b32.xlu0 %v1563, 64
  %v1567 = vpop.permute.xlu0 %1566
  %v1569 = vmul.f32 %v1563, %v1567
  %1571 = vrot.lane.b32.xlu0 %v1569, 32
  %v1572 = vpop.permute.xlu0 %1571
  %v1574 = vadd.f32 %v1564, %v1572
  %v1575 = vtanh.pop %v1574
  %1577 = vrot.lane.b32.xlu0 %v1575, 64
  %v1578 = vpop.permute.xlu0 %1577
  %v1580 = vmul.f32 %v1563, %v1578
  %v1581 = vadd.f32 %v1513, %v1555
  %1583 = vrot.lane.b32.xlu0 %v1580, 32
  %v1584 = vpop.permute.xlu0 %1583
  %v1585 = vsel %vm168, %v1584, 0
  %1587 = vmatpush.msra.mxu0 0.0
  %1588 = vmatpush.msra.mxu0 0.0
  %1589 = vmatpush.msra.mxu0 0.0
  %1590 = vmatpush.msra.mxu0 0.0
  %1591 = vmatpush.msra.mxu0 0.0
  %1592 = vmatpush.msra.mxu0 0.0
  %1593 = vmatpush.msra.mxu0 0.0
  %1594 = vmatpush.msra.mxu0 0.0
  %1595 = vmatpush.msra.mxu0 0.0
  %1596 = vmatpush.msra.mxu0 0.0
  %1597 = vmatpush.msra.mxu0 0.0
  %1598 = vmatpush.msra.mxu0 0.0
  %1599 = vmatpush.msra.mxu0 %v57
  %1600 = vmatpush.msra.mxu0 %v56
  %1601 = vmatpush.msra.mxu0 %v55
  %1602 = vmatpush.msra.mxu0 %v54
  %1603 = vmatmul.f32.gmra.mxu0 %v1585
  %v1604 = vpop.f32.mrf.mxu0
  %v1605 = vadd.f32 0.0, %v1604
  %1606 = vdwg.mxu0
  %v1607 = vadd.f32 %v1581, %v1605
  %v1608 = vmul.f32 %v1607, 0.5
  %v1609 = vsel %vm254, %v1607, %v1608
  %v1610 = vtanh.pop %v1609
  %v1611 = vadd.f32 %v1610, 1.0
  %v1612 = vmul.f32 %v1611, 0.5
  %v1613 = vsel %vm254, %v1610, %v1612
  %v1614 = vmul.f32 %v1613, %v1494
  %1616 = vrot.lane.b32.xlu0 %v1613, 64
  %v1617 = vpop.permute.xlu0 %1616
  %v1619 = vmul.f32 %v1613, %v1617
  %1621 = vrot.lane.b32.xlu0 %v1619, 32
  %v1622 = vpop.permute.xlu0 %1621
  %v1624 = vadd.f32 %v1614, %v1622
  %v1625 = vtanh.pop %v1624
  %1627 = vrot.lane.b32.xlu0 %v1625, 64
  %v1628 = vpop.permute.xlu0 %1627
  %v1630 = vmul.f32 %v1613, %v1628
  %1633 = vrot.lane.b32.xlu0 %v1630, 64
  %v1634 = vpop.permute.xlu0 %1633
  %v1636 = vsel %vm168, %v1584, %v1634
  %1637 = vrot.lane.b32.xlu0 %v1630, 32
  %v1638 = vpop.permute.xlu0 %1637
  %s1640 = scalar_lea.vmem [#allocation4], 16
  %1641 = vst.msk [vmem:[%s1640] sm:$0xff] %vm168, %v1638
  %s1642 = scalar_lea.vmem [#allocation3], 24
  %v1643 = vld [vmem:[%s1642] sm:$0xff]
  %v1645 = vsel %vm78, %v1636, 0
  %1647 = vmatpush.msra.mxu0 0.0
  %1648 = vmatpush.msra.mxu0 0.0
  %1649 = vmatpush.msra.mxu0 0.0
  %1650 = vmatpush.msra.mxu0 0.0
  %1651 = vmatpush.msra.mxu0 0.0
  %1652 = vmatpush.msra.mxu0 0.0
  %1653 = vmatpush.msra.mxu0 0.0
  %1654 = vmatpush.msra.mxu0 0.0
  %1655 = vmatpush.msra.mxu0 %v52
  %1656 = vmatpush.msra.mxu0 %v50
  %1657 = vmatpush.msra.mxu0 %v48
  %1658 = vmatpush.msra.mxu0 %v46
  %1659 = vmatpush.msra.mxu0 %v44
  %1660 = vmatpush.msra.mxu0 %v42
  %1661 = vmatpush.msra.mxu0 %v40
  %1662 = vmatpush.msra.mxu0 %v38
  %1663 = vmatmul.f32.gmra.mxu0 %v1645
  %v1664 = vpop.f32.mrf.mxu0
  %v1665 = vadd.f32 0.0, %v1664
  %1666 = vdwg.mxu0
  %1667 = vmatpush.msra.mxu0 0.0
  %1668 = vmatpush.msra.mxu0 0.0
  %1669 = vmatpush.msra.mxu0 0.0
  %1670 = vmatpush.msra.mxu0 0.0
  %1671 = vmatpush.msra.mxu0 0.0
  %1672 = vmatpush.msra.mxu0 0.0
  %1673 = vmatpush.msra.mxu0 0.0
  %1674 = vmatpush.msra.mxu0 0.0
  %1675 = vmatpush.msra.mxu0 %v53
  %1676 = vmatpush.msra.mxu0 %v51
  %1677 = vmatpush.msra.mxu0 %v49
  %1678 = vmatpush.msra.mxu0 %v47
  %1679 = vmatpush.msra.mxu0 %v45
  %1680 = vmatpush.msra.mxu0 %v43
  %1681 = vmatpush.msra.mxu0 %v41
  %1682 = vmatpush.msra.mxu0 %v39
  %1683 = vmatmul.f32.gmra.mxu0 %v1645
  %v1684 = vpop.f32.mrf.mxu0
  %v1685 = vadd.f32 0.0, %v1684
  %1686 = vdwg.mxu0
  %v1687 = vadd.f32 %v244, %v1665
  %v1688 = vmul.f32 %v1687, 0.5
  %v1689 = vsel %vm254, %v1687, %v1688
  %v1690 = vtanh.pop %v1689
  %v1691 = vadd.f32 %v1690, 1.0
  %v1692 = vmul.f32 %v1691, 0.5
  %v1693 = vsel %vm254, %v1690, %v1692
  %v1694 = vmul.f32 %v1693, %v1574
  %1696 = vrot.lane.b32.xlu0 %v1693, 64
  %v1697 = vpop.permute.xlu0 %1696
  %v1699 = vmul.f32 %v1693, %v1697
  %1701 = vrot.lane.b32.xlu0 %v1699, 32
  %v1702 = vpop.permute.xlu0 %1701
  %v1704 = vadd.f32 %v1694, %v1702
  %v1705 = vtanh.pop %v1704
  %1707 = vrot.lane.b32.xlu0 %v1705, 64
  %v1708 = vpop.permute.xlu0 %1707
  %v1710 = vmul.f32 %v1693, %v1708
  %v1711 = vadd.f32 %v1643, %v1685
  %1713 = vrot.lane.b32.xlu0 %v1710, 32
  %v1714 = vpop.permute.xlu0 %1713
  %v1715 = vsel %vm168, %v1714, 0
  %1717 = vmatpush.msra.mxu0 0.0
  %1718 = vmatpush.msra.mxu0 0.0
  %1719 = vmatpush.msra.mxu0 0.0
  %1720 = vmatpush.msra.mxu0 0.0
  %1721 = vmatpush.msra.mxu0 0.0
  %1722 = vmatpush.msra.mxu0 0.0
  %1723 = vmatpush.msra.mxu0 0.0
  %1724 = vmatpush.msra.mxu0 0.0
  %1725 = vmatpush.msra.mxu0 0.0
  %1726 = vmatpush.msra.mxu0 0.0
  %1727 = vmatpush.msra.mxu0 0.0
  %1728 = vmatpush.msra.mxu0 0.0
  %1729 = vmatpush.msra.mxu0 %v57
  %1730 = vmatpush.msra.mxu0 %v56
  %1731 = vmatpush.msra.mxu0 %v55
  %1732 = vmatpush.msra.mxu0 %v54
  %1733 = vmatmul.f32.gmra.mxu0 %v1715
  %v1734 = vpop.f32.mrf.mxu0
  %v1735 = vadd.f32 0.0, %v1734
  %1736 = vdwg.mxu0
  %v1737 = vadd.f32 %v1711, %v1735
  %v1738 = vmul.f32 %v1737, 0.5
  %v1739 = vsel %vm254, %v1737, %v1738
  %v1740 = vtanh.pop %v1739
  %v1741 = vadd.f32 %v1740, 1.0
  %v1742 = vmul.f32 %v1741, 0.5
  %v1743 = vsel %vm254, %v1740, %v1742
  %v1744 = vmul.f32 %v1743, %v1624
  %1746 = vrot.lane.b32.xlu0 %v1743, 64
  %v1747 = vpop.permute.xlu0 %1746
  %v1749 = vmul.f32 %v1743, %v1747
  %1751 = vrot.lane.b32.xlu0 %v1749, 32
  %v1752 = vpop.permute.xlu0 %1751
  %v1754 = vadd.f32 %v1744, %v1752
  %v1755 = vtanh.pop %v1754
  %1757 = vrot.lane.b32.xlu0 %v1755, 64
  %v1758 = vpop.permute.xlu0 %1757
  %v1760 = vmul.f32 %v1743, %v1758
  %1763 = vrot.lane.b32.xlu0 %v1760, 64
  %v1764 = vpop.permute.xlu0 %1763
  %v1766 = vsel %vm168, %v1714, %v1764
  %1767 = vrot.lane.b32.xlu0 %v1760, 32
  %v1768 = vpop.permute.xlu0 %1767
  %s1770 = scalar_lea.vmem [#allocation4], 24
  %1771 = vst.msk [vmem:[%s1770] sm:$0xff] %vm168, %v1768
  %s1772 = scalar_lea.vmem [#allocation3], 32
  %v1773 = vld [vmem:[%s1772] sm:$0xff]
  %v1775 = vsel %vm78, %v1766, 0
  %1777 = vmatpush.msra.mxu0 0.0
  %1778 = vmatpush.msra.mxu0 0.0
  %1779 = vmatpush.msra.mxu0 0.0
  %1780 = vmatpush.msra.mxu0 0.0
  %1781 = vmatpush.msra.mxu0 0.0
  %1782 = vmatpush.msra.mxu0 0.0
  %1783 = vmatpush.msra.mxu0 0.0
  %1784 = vmatpush.msra.mxu0 0.0
  %1785 = vmatpush.msra.mxu0 %v52
  %1786 = vmatpush.msra.mxu0 %v50
  %1787 = vmatpush.msra.mxu0 %v48
  %1788 = vmatpush.msra.mxu0 %v46
  %1789 = vmatpush.msra.mxu0 %v44
  %1790 = vmatpush.msra.mxu0 %v42
  %1791 = vmatpush.msra.mxu0 %v40
  %1792 = vmatpush.msra.mxu0 %v38
  %1793 = vmatmul.f32.gmra.mxu0 %v1775
  %v1794 = vpop.f32.mrf.mxu0
  %v1795 = vadd.f32 0.0, %v1794
  %1796 = vdwg.mxu0
  %1797 = vmatpush.msra.mxu0 0.0
  %1798 = vmatpush.msra.mxu0 0.0
  %1799 = vmatpush.msra.mxu0 0.0
  %1800 = vmatpush.msra.mxu0 0.0
  %1801 = vmatpush.msra.mxu0 0.0
  %1802 = vmatpush.msra.mxu0 0.0
  %1803 = vmatpush.msra.mxu0 0.0
  %1804 = vmatpush.msra.mxu0 0.0
  %1805 = vmatpush.msra.mxu0 %v53
  %1806 = vmatpush.msra.mxu0 %v51
  %1807 = vmatpush.msra.mxu0 %v49
  %1808 = vmatpush.msra.mxu0 %v47
  %1809 = vmatpush.msra.mxu0 %v45
  %1810 = vmatpush.msra.mxu0 %v43
  %1811 = vmatpush.msra.mxu0 %v41
  %1812 = vmatpush.msra.mxu0 %v39
  %1813 = vmatmul.f32.gmra.mxu0 %v1775
  %v1814 = vpop.f32.mrf.mxu0
  %v1815 = vadd.f32 0.0, %v1814
  %1816 = vdwg.mxu0
  %v1817 = vadd.f32 %v244, %v1795
  %v1818 = vmul.f32 %v1817, 0.5
  %v1819 = vsel %vm254, %v1817, %v1818
  %v1820 = vtanh.pop %v1819
  %v1821 = vadd.f32 %v1820, 1.0
  %v1822 = vmul.f32 %v1821, 0.5
  %v1823 = vsel %vm254, %v1820, %v1822
  %v1824 = vmul.f32 %v1823, %v1704
  %1826 = vrot.lane.b32.xlu0 %v1823, 64
  %v1827 = vpop.permute.xlu0 %1826
  %v1829 = vmul.f32 %v1823, %v1827
  %1831 = vrot.lane.b32.xlu0 %v1829, 32
  %v1832 = vpop.permute.xlu0 %1831
  %v1834 = vadd.f32 %v1824, %v1832
  %v1835 = vtanh.pop %v1834
  %1837 = vrot.lane.b32.xlu0 %v1835, 64
  %v1838 = vpop.permute.xlu0 %1837
  %v1840 = vmul.f32 %v1823, %v1838
  %v1841 = vadd.f32 %v1773, %v1815
  %1843 = vrot.lane.b32.xlu0 %v1840, 32
  %v1844 = vpop.permute.xlu0 %1843
  %v1845 = vsel %vm168, %v1844, 0
  %1847 = vmatpush.msra.mxu0 0.0
  %1848 = vmatpush.msra.mxu0 0.0
  %1849 = vmatpush.msra.mxu0 0.0
  %1850 = vmatpush.msra.mxu0 0.0
  %1851 = vmatpush.msra.mxu0 0.0
  %1852 = vmatpush.msra.mxu0 0.0
  %1853 = vmatpush.msra.mxu0 0.0
  %1854 = vmatpush.msra.mxu0 0.0
  %1855 = vmatpush.msra.mxu0 0.0
  %1856 = vmatpush.msra.mxu0 0.0
  %1857 = vmatpush.msra.mxu0 0.0
  %1858 = vmatpush.msra.mxu0 0.0
  %1859 = vmatpush.msra.mxu0 %v57
  %1860 = vmatpush.msra.mxu0 %v56
  %1861 = vmatpush.msra.mxu0 %v55
  %1862 = vmatpush.msra.mxu0 %v54
  %1863 = vmatmul.f32.gmra.mxu0 %v1845
  %v1864 = vpop.f32.mrf.mxu0
  %v1865 = vadd.f32 0.0, %v1864
  %1866 = vdwg.mxu0
  %v1867 = vadd.f32 %v1841, %v1865
  %v1868 = vmul.f32 %v1867, 0.5
  %v1869 = vsel %vm254, %v1867, %v1868
  %v1870 = vtanh.pop %v1869
  %v1871 = vadd.f32 %v1870, 1.0
  %v1872 = vmul.f32 %v1871, 0.5
  %v1873 = vsel %vm254, %v1870, %v1872
  %v1874 = vmul.f32 %v1873, %v1754
  %1876 = vrot.lane.b32.xlu0 %v1873, 64
  %v1877 = vpop.permute.xlu0 %1876
  %v1879 = vmul.f32 %v1873, %v1877
  %1881 = vrot.lane.b32.xlu0 %v1879, 32
  %v1882 = vpop.permute.xlu0 %1881
  %v1884 = vadd.f32 %v1874, %v1882
  %v1885 = vtanh.pop %v1884
  %1887 = vrot.lane.b32.xlu0 %v1885, 64
  %v1888 = vpop.permute.xlu0 %1887
  %v1890 = vmul.f32 %v1873, %v1888
  %1893 = vrot.lane.b32.xlu0 %v1890, 64
  %v1894 = vpop.permute.xlu0 %1893
  %v1896 = vsel %vm168, %v1844, %v1894
  %1897 = vrot.lane.b32.xlu0 %v1890, 32
  %v1898 = vpop.permute.xlu0 %1897
  %s1900 = scalar_lea.vmem [#allocation4], 32
  %1901 = vst.msk [vmem:[%s1900] sm:$0xff] %vm168, %v1898
  %s1902 = scalar_lea.vmem [#allocation3], 40
  %v1903 = vld [vmem:[%s1902] sm:$0xff]
  %v1905 = vsel %vm78, %v1896, 0
  %1907 = vmatpush.msra.mxu0 0.0
  %1908 = vmatpush.msra.mxu0 0.0
  %1909 = vmatpush.msra.mxu0 0.0
  %1910 = vmatpush.msra.mxu0 0.0
  %1911 = vmatpush.msra.mxu0 0.0
  %1912 = vmatpush.msra.mxu0 0.0
  %1913 = vmatpush.msra.mxu0 0.0
  %1914 = vmatpush.msra.mxu0 0.0
  %1915 = vmatpush.msra.mxu0 %v52
  %1916 = vmatpush.msra.mxu0 %v50
  %1917 = vmatpush.msra.mxu0 %v48
  %1918 = vmatpush.msra.mxu0 %v46
  %1919 = vmatpush.msra.mxu0 %v44
  %1920 = vmatpush.msra.mxu0 %v42
  %1921 = vmatpush.msra.mxu0 %v40
  %1922 = vmatpush.msra.mxu0 %v38
  %1923 = vmatmul.f32.gmra.mxu0 %v1905
  %v1924 = vpop.f32.mrf.mxu0
  %v1925 = vadd.f32 0.0, %v1924
  %1926 = vdwg.mxu0
  %1927 = vmatpush.msra.mxu0 0.0
  %1928 = vmatpush.msra.mxu0 0.0
  %1929 = vmatpush.msra.mxu0 0.0
  %1930 = vmatpush.msra.mxu0 0.0
  %1931 = vmatpush.msra.mxu0 0.0
  %1932 = vmatpush.msra.mxu0 0.0
  %1933 = vmatpush.msra.mxu0 0.0
  %1934 = vmatpush.msra.mxu0 0.0
  %1935 = vmatpush.msra.mxu0 %v53
  %1936 = vmatpush.msra.mxu0 %v51
  %1937 = vmatpush.msra.mxu0 %v49
  %1938 = vmatpush.msra.mxu0 %v47
  %1939 = vmatpush.msra.mxu0 %v45
  %1940 = vmatpush.msra.mxu0 %v43
  %1941 = vmatpush.msra.mxu0 %v41
  %1942 = vmatpush.msra.mxu0 %v39
  %1943 = vmatmul.f32.gmra.mxu0 %v1905
  %v1944 = vpop.f32.mrf.mxu0
  %v1945 = vadd.f32 0.0, %v1944
  %1946 = vdwg.mxu0
  %v1947 = vadd.f32 %v244, %v1925
  %v1948 = vmul.f32 %v1947, 0.5
  %v1949 = vsel %vm254, %v1947, %v1948
  %v1950 = vtanh.pop %v1949
  %v1951 = vadd.f32 %v1950, 1.0
  %v1952 = vmul.f32 %v1951, 0.5
  %v1953 = vsel %vm254, %v1950, %v1952
  %v1954 = vmul.f32 %v1953, %v1834
  %1956 = vrot.lane.b32.xlu0 %v1953, 64
  %v1957 = vpop.permute.xlu0 %1956
  %v1959 = vmul.f32 %v1953, %v1957
  %1961 = vrot.lane.b32.xlu0 %v1959, 32
  %v1962 = vpop.permute.xlu0 %1961
  %v1964 = vadd.f32 %v1954, %v1962
  %v1965 = vtanh.pop %v1964
  %1967 = vrot.lane.b32.xlu0 %v1965, 64
  %v1968 = vpop.permute.xlu0 %1967
  %v1970 = vmul.f32 %v1953, %v1968
  %v1971 = vadd.f32 %v1903, %v1945
  %1973 = vrot.lane.b32.xlu0 %v1970, 32
  %v1974 = vpop.permute.xlu0 %1973
  %v1975 = vsel %vm168, %v1974, 0
  %1977 = vmatpush.msra.mxu0 0.0
  %1978 = vmatpush.msra.mxu0 0.0
  %1979 = vmatpush.msra.mxu0 0.0
  %1980 = vmatpush.msra.mxu0 0.0
  %1981 = vmatpush.msra.mxu0 0.0
  %1982 = vmatpush.msra.mxu0 0.0
  %1983 = vmatpush.msra.mxu0 0.0
  %1984 = vmatpush.msra.mxu0 0.0
  %1985 = vmatpush.msra.mxu0 0.0
  %1986 = vmatpush.msra.mxu0 0.0
  %1987 = vmatpush.msra.mxu0 0.0
  %1988 = vmatpush.msra.mxu0 0.0
  %1989 = vmatpush.msra.mxu0 %v57
  %1990 = vmatpush.msra.mxu0 %v56
  %1991 = vmatpush.msra.mxu0 %v55
  %1992 = vmatpush.msra.mxu0 %v54
  %1993 = vmatmul.f32.gmra.mxu0 %v1975
  %v1994 = vpop.f32.mrf.mxu0
  %v1995 = vadd.f32 0.0, %v1994
  %1996 = vdwg.mxu0
  %v1997 = vadd.f32 %v1971, %v1995
  %v1998 = vmul.f32 %v1997, 0.5
  %v1999 = vsel %vm254, %v1997, %v1998
  %v2000 = vtanh.pop %v1999
  %v2001 = vadd.f32 %v2000, 1.0
  %v2002 = vmul.f32 %v2001, 0.5
  %v2003 = vsel %vm254, %v2000, %v2002
  %v2004 = vmul.f32 %v2003, %v1884
  %2006 = vrot.lane.b32.xlu0 %v2003, 64
  %v2007 = vpop.permute.xlu0 %2006
  %v2009 = vmul.f32 %v2003, %v2007
  %2011 = vrot.lane.b32.xlu0 %v2009, 32
  %v2012 = vpop.permute.xlu0 %2011
  %v2014 = vadd.f32 %v2004, %v2012
  %v2015 = vtanh.pop %v2014
  %2017 = vrot.lane.b32.xlu0 %v2015, 64
  %v2018 = vpop.permute.xlu0 %2017
  %v2020 = vmul.f32 %v2003, %v2018
  %2023 = vrot.lane.b32.xlu0 %v2020, 64
  %v2024 = vpop.permute.xlu0 %2023
  %v2026 = vsel %vm168, %v1974, %v2024
  %2027 = vrot.lane.b32.xlu0 %v2020, 32
  %v2028 = vpop.permute.xlu0 %2027
  %s2030 = scalar_lea.vmem [#allocation4], 40
  %2031 = vst.msk [vmem:[%s2030] sm:$0xff] %vm168, %v2028
  %s2032 = scalar_lea.vmem [#allocation3], 48
  %v2033 = vld [vmem:[%s2032] sm:$0xff]
  %v2035 = vsel %vm78, %v2026, 0
  %2037 = vmatpush.msra.mxu0 0.0
  %2038 = vmatpush.msra.mxu0 0.0
  %2039 = vmatpush.msra.mxu0 0.0
  %2040 = vmatpush.msra.mxu0 0.0
  %2041 = vmatpush.msra.mxu0 0.0
  %2042 = vmatpush.msra.mxu0 0.0
  %2043 = vmatpush.msra.mxu0 0.0
  %2044 = vmatpush.msra.mxu0 0.0
  %2045 = vmatpush.msra.mxu0 %v52
  %2046 = vmatpush.msra.mxu0 %v50
  %2047 = vmatpush.msra.mxu0 %v48
  %2048 = vmatpush.msra.mxu0 %v46
  %2049 = vmatpush.msra.mxu0 %v44
  %2050 = vmatpush.msra.mxu0 %v42
  %2051 = vmatpush.msra.mxu0 %v40
  %2052 = vmatpush.msra.mxu0 %v38
  %2053 = vmatmul.f32.gmra.mxu0 %v2035
  %v2054 = vpop.f32.mrf.mxu0
  %v2055 = vadd.f32 0.0, %v2054
  %2056 = vdwg.mxu0
  %2057 = vmatpush.msra.mxu0 0.0
  %2058 = vmatpush.msra.mxu0 0.0
  %2059 = vmatpush.msra.mxu0 0.0
  %2060 = vmatpush.msra.mxu0 0.0
  %2061 = vmatpush.msra.mxu0 0.0
  %2062 = vmatpush.msra.mxu0 0.0
  %2063 = vmatpush.msra.mxu0 0.0
  %2064 = vmatpush.msra.mxu0 0.0
  %2065 = vmatpush.msra.mxu0 %v53
  %2066 = vmatpush.msra.mxu0 %v51
  %2067 = vmatpush.msra.mxu0 %v49
  %2068 = vmatpush.msra.mxu0 %v47
  %2069 = vmatpush.msra.mxu0 %v45
  %2070 = vmatpush.msra.mxu0 %v43
  %2071 = vmatpush.msra.mxu0 %v41
  %2072 = vmatpush.msra.mxu0 %v39
  %2073 = vmatmul.f32.gmra.mxu0 %v2035
  %v2074 = vpop.f32.mrf.mxu0
  %v2075 = vadd.f32 0.0, %v2074
  %2076 = vdwg.mxu0
  %v2077 = vadd.f32 %v244, %v2055
  %v2078 = vmul.f32 %v2077, 0.5
  %v2079 = vsel %vm254, %v2077, %v2078
  %v2080 = vtanh.pop %v2079
  %v2081 = vadd.f32 %v2080, 1.0
  %v2082 = vmul.f32 %v2081, 0.5
  %v2083 = vsel %vm254, %v2080, %v2082
  %v2084 = vmul.f32 %v2083, %v1964
  %2086 = vrot.lane.b32.xlu0 %v2083, 64
  %v2087 = vpop.permute.xlu0 %2086
  %v2089 = vmul.f32 %v2083, %v2087
  %2091 = vrot.lane.b32.xlu0 %v2089, 32
  %v2092 = vpop.permute.xlu0 %2091
  %v2094 = vadd.f32 %v2084, %v2092
  %v2095 = vtanh.pop %v2094
  %2097 = vrot.lane.b32.xlu0 %v2095, 64
  %v2098 = vpop.permute.xlu0 %2097
  %v2100 = vmul.f32 %v2083, %v2098
  %v2101 = vadd.f32 %v2033, %v2075
  %2103 = vrot.lane.b32.xlu0 %v2100, 32
  %v2104 = vpop.permute.xlu0 %2103
  %v2105 = vsel %vm168, %v2104, 0
  %2107 = vmatpush.msra.mxu0 0.0
  %2108 = vmatpush.msra.mxu0 0.0
  %2109 = vmatpush.msra.mxu0 0.0
  %2110 = vmatpush.msra.mxu0 0.0
  %2111 = vmatpush.msra.mxu0 0.0
  %2112 = vmatpush.msra.mxu0 0.0
  %2113 = vmatpush.msra.mxu0 0.0
  %2114 = vmatpush.msra.mxu0 0.0
  %2115 = vmatpush.msra.mxu0 0.0
  %2116 = vmatpush.msra.mxu0 0.0
  %2117 = vmatpush.msra.mxu0 0.0
  %2118 = vmatpush.msra.mxu0 0.0
  %2119 = vmatpush.msra.mxu0 %v57
  %2120 = vmatpush.msra.mxu0 %v56
  %2121 = vmatpush.msra.mxu0 %v55
  %2122 = vmatpush.msra.mxu0 %v54
  %2123 = vmatmul.f32.gmra.mxu0 %v2105
  %v2124 = vpop.f32.mrf.mxu0
  %v2125 = vadd.f32 0.0, %v2124
  %2126 = vdwg.mxu0
  %v2127 = vadd.f32 %v2101, %v2125
  %v2128 = vmul.f32 %v2127, 0.5
  %v2129 = vsel %vm254, %v2127, %v2128
  %v2130 = vtanh.pop %v2129
  %v2131 = vadd.f32 %v2130, 1.0
  %v2132 = vmul.f32 %v2131, 0.5
  %v2133 = vsel %vm254, %v2130, %v2132
  %v2134 = vmul.f32 %v2133, %v2014
  %2136 = vrot.lane.b32.xlu0 %v2133, 64
  %v2137 = vpop.permute.xlu0 %2136
  %v2139 = vmul.f32 %v2133, %v2137
  %2141 = vrot.lane.b32.xlu0 %v2139, 32
  %v2142 = vpop.permute.xlu0 %2141
  %v2144 = vadd.f32 %v2134, %v2142
  %v2145 = vtanh.pop %v2144
  %2147 = vrot.lane.b32.xlu0 %v2145, 64
  %v2148 = vpop.permute.xlu0 %2147
  %v2150 = vmul.f32 %v2133, %v2148
  %2153 = vrot.lane.b32.xlu0 %v2150, 64
  %v2154 = vpop.permute.xlu0 %2153
  %v2156 = vsel %vm168, %v2104, %v2154
  %2157 = vrot.lane.b32.xlu0 %v2150, 32
  %v2158 = vpop.permute.xlu0 %2157
  %s2160 = scalar_lea.vmem [#allocation4], 48
  %2161 = vst.msk [vmem:[%s2160] sm:$0xff] %vm168, %v2158
  %s2162 = scalar_lea.vmem [#allocation3], 56
  %v2163 = vld [vmem:[%s2162] sm:$0xff]
  %v2165 = vsel %vm78, %v2156, 0
  %2167 = vmatpush.msra.mxu0 0.0
  %2168 = vmatpush.msra.mxu0 0.0
  %2169 = vmatpush.msra.mxu0 0.0
  %2170 = vmatpush.msra.mxu0 0.0
  %2171 = vmatpush.msra.mxu0 0.0
  %2172 = vmatpush.msra.mxu0 0.0
  %2173 = vmatpush.msra.mxu0 0.0
  %2174 = vmatpush.msra.mxu0 0.0
  %2175 = vmatpush.msra.mxu0 %v52
  %2176 = vmatpush.msra.mxu0 %v50
  %2177 = vmatpush.msra.mxu0 %v48
  %2178 = vmatpush.msra.mxu0 %v46
  %2179 = vmatpush.msra.mxu0 %v44
  %2180 = vmatpush.msra.mxu0 %v42
  %2181 = vmatpush.msra.mxu0 %v40
  %2182 = vmatpush.msra.mxu0 %v38
  %2183 = vmatmul.f32.gmra.mxu0 %v2165
  %v2184 = vpop.f32.mrf.mxu0
  %v2185 = vadd.f32 0.0, %v2184
  %2186 = vdwg.mxu0
  %2187 = vmatpush.msra.mxu0 0.0
  %2188 = vmatpush.msra.mxu0 0.0
  %2189 = vmatpush.msra.mxu0 0.0
  %2190 = vmatpush.msra.mxu0 0.0
  %2191 = vmatpush.msra.mxu0 0.0
  %2192 = vmatpush.msra.mxu0 0.0
  %2193 = vmatpush.msra.mxu0 0.0
  %2194 = vmatpush.msra.mxu0 0.0
  %2195 = vmatpush.msra.mxu0 %v53
  %2196 = vmatpush.msra.mxu0 %v51
  %2197 = vmatpush.msra.mxu0 %v49
  %2198 = vmatpush.msra.mxu0 %v47
  %2199 = vmatpush.msra.mxu0 %v45
  %2200 = vmatpush.msra.mxu0 %v43
  %2201 = vmatpush.msra.mxu0 %v41
  %2202 = vmatpush.msra.mxu0 %v39
  %2203 = vmatmul.f32.gmra.mxu0 %v2165
  %v2204 = vpop.f32.mrf.mxu0
  %v2205 = vadd.f32 0.0, %v2204
  %2206 = vdwg.mxu0
  %v2207 = vadd.f32 %v244, %v2185
  %v2208 = vmul.f32 %v2207, 0.5
  %v2209 = vsel %vm254, %v2207, %v2208
  %v2210 = vtanh.pop %v2209
  %v2211 = vadd.f32 %v2210, 1.0
  %v2212 = vmul.f32 %v2211, 0.5
  %v2213 = vsel %vm254, %v2210, %v2212
  %v2214 = vmul.f32 %v2213, %v2094
  %2216 = vrot.lane.b32.xlu0 %v2213, 64
  %v2217 = vpop.permute.xlu0 %2216
  %v2219 = vmul.f32 %v2213, %v2217
  %2221 = vrot.lane.b32.xlu0 %v2219, 32
  %v2222 = vpop.permute.xlu0 %2221
  %v2224 = vadd.f32 %v2214, %v2222
  %v2225 = vtanh.pop %v2224
  %2227 = vrot.lane.b32.xlu0 %v2225, 64
  %v2228 = vpop.permute.xlu0 %2227
  %v2230 = vmul.f32 %v2213, %v2228
  %v2231 = vadd.f32 %v2163, %v2205
  %2233 = vrot.lane.b32.xlu0 %v2230, 32
  %v2234 = vpop.permute.xlu0 %2233
  %v2235 = vsel %vm168, %v2234, 0
  %2237 = vmatpush.msra.mxu0 0.0
  %2238 = vmatpush.msra.mxu0 0.0
  %2239 = vmatpush.msra.mxu0 0.0
  %2240 = vmatpush.msra.mxu0 0.0
  %2241 = vmatpush.msra.mxu0 0.0
  %2242 = vmatpush.msra.mxu0 0.0
  %2243 = vmatpush.msra.mxu0 0.0
  %2244 = vmatpush.msra.mxu0 0.0
  %2245 = vmatpush.msra.mxu0 0.0
  %2246 = vmatpush.msra.mxu0 0.0
  %2247 = vmatpush.msra.mxu0 0.0
  %2248 = vmatpush.msra.mxu0 0.0
  %2249 = vmatpush.msra.mxu0 %v57
  %2250 = vmatpush.msra.mxu0 %v56
  %2251 = vmatpush.msra.mxu0 %v55
  %2252 = vmatpush.msra.mxu0 %v54
  %2253 = vmatmul.f32.gmra.mxu0 %v2235
  %v2254 = vpop.f32.mrf.mxu0
  %v2255 = vadd.f32 0.0, %v2254
  %2256 = vdwg.mxu0
  %v2257 = vadd.f32 %v2231, %v2255
  %v2258 = vmul.f32 %v2257, 0.5
  %v2259 = vsel %vm254, %v2257, %v2258
  %v2260 = vtanh.pop %v2259
  %v2261 = vadd.f32 %v2260, 1.0
  %v2262 = vmul.f32 %v2261, 0.5
  %v2263 = vsel %vm254, %v2260, %v2262
  %v2264 = vmul.f32 %v2263, %v2144
  %2266 = vrot.lane.b32.xlu0 %v2263, 64
  %v2267 = vpop.permute.xlu0 %2266
  %v2269 = vmul.f32 %v2263, %v2267
  %2271 = vrot.lane.b32.xlu0 %v2269, 32
  %v2272 = vpop.permute.xlu0 %2271
  %v2274 = vadd.f32 %v2264, %v2272
  %v2275 = vtanh.pop %v2274
  %2277 = vrot.lane.b32.xlu0 %v2275, 64
  %v2278 = vpop.permute.xlu0 %2277
  %v2280 = vmul.f32 %v2263, %v2278
  %2282 = vrot.lane.b32.xlu0 %v2280, 32
  %v2283 = vpop.permute.xlu0 %2282
  %s2285 = scalar_lea.vmem [#allocation4], 56
  %2286 = vst.msk [vmem:[%s2285] sm:$0xff] %vm168, %v2283
  %v2287 = vld [vmem:[#allocation4] sm:$0xff]
  %v2288 = vld [vmem:[#allocation4 + $0x8] sm:$0xff]
  %v2289 = vld [vmem:[#allocation4 + $0x10] sm:$0xff]
  %v2290 = vld [vmem:[#allocation4 + $0x18] sm:$0xff]
  %v2291 = vld [vmem:[#allocation4 + $0x20] sm:$0xff]
  %v2292 = vld [vmem:[#allocation4 + $0x28] sm:$0xff]
  %v2293 = vld [vmem:[#allocation4 + $0x30] sm:$0xff]
  %v2294 = vld [vmem:[#allocation4 + $0x38] sm:$0xff]
  %v2295 = vld [vmem:[%s9] sm:$0xff]
  %v2296 = vld [vmem:[%s9 + $0x8] sm:$0xff]
  %v2297 = vld [vmem:[%s9 + $0x10] sm:$0xff]
  %v2298 = vld [vmem:[%s9 + $0x18] sm:$0xff]
  %v2299 = vld [vmem:[%s10] sm:$0x1]
  %v2301 = vperm.slane %v2299, 0
  %v2304 = vsel %vm168, %v2287, 0
  %v2307 = vsel %vm168, %v2288, 0
  %v2310 = vsel %vm168, %v2289, 0
  %v2313 = vsel %vm168, %v2290, 0
  %v2316 = vsel %vm168, %v2291, 0
  %v2319 = vsel %vm168, %v2292, 0
  %v2322 = vsel %vm168, %v2293, 0
  %v2325 = vsel %vm168, %v2294, 0
  %2327 = vmatpush.msra.mxu0 0.0
  %2328 = vmatpush.msra.mxu0 0.0
  %2329 = vmatpush.msra.mxu0 0.0
  %2330 = vmatpush.msra.mxu0 0.0
  %2331 = vmatpush.msra.mxu0 0.0
  %2332 = vmatpush.msra.mxu0 0.0
  %2333 = vmatpush.msra.mxu0 0.0
  %2334 = vmatpush.msra.mxu0 0.0
  %2335 = vmatpush.msra.mxu0 0.0
  %2336 = vmatpush.msra.mxu0 0.0
  %2337 = vmatpush.msra.mxu0 0.0
  %2338 = vmatpush.msra.mxu0 0.0
  %2339 = vmatpush.msra.mxu0 %v2298
  %2340 = vmatpush.msra.mxu0 %v2297
  %2341 = vmatpush.msra.mxu0 %v2296
  %2342 = vmatpush.msra.mxu0 %v2295
  %2343 = vmatmul.f32.gmra.mxu0 %v2304
  %v2344 = vpop.f32.mrf.mxu0
  %v2345 = vadd.f32 %v2301, %v2344
  %2346 = vmatmul.f32.gmra.mxu0 %v2307
  %v2347 = vpop.f32.mrf.mxu0
  %v2348 = vadd.f32 %v2301, %v2347
  %2349 = vmatmul.f32.gmra.mxu0 %v2310
  %v2350 = vpop.f32.mrf.mxu0
  %v2351 = vadd.f32 %v2301, %v2350
  %2352 = vmatmul.f32.gmra.mxu0 %v2313
  %v2353 = vpop.f32.mrf.mxu0
  %v2354 = vadd.f32 %v2301, %v2353
  %2355 = vmatmul.f32.gmra.mxu0 %v2316
  %v2356 = vpop.f32.mrf.mxu0
  %v2357 = vadd.f32 %v2301, %v2356
  %2358 = vmatmul.f32.gmra.mxu0 %v2319
  %v2359 = vpop.f32.mrf.mxu0
  %v2360 = vadd.f32 %v2301, %v2359
  %2361 = vmatmul.f32.gmra.mxu0 %v2322
  %v2362 = vpop.f32.mrf.mxu0
  %v2363 = vadd.f32 %v2301, %v2362
  %2364 = vmatmul.f32.gmra.mxu0 %v2325
  %v2365 = vpop.f32.mrf.mxu0
  %v2366 = vadd.f32 %v2301, %v2365
  %2367 = vdwg.mxu0
  %2368 = vst [vmem:[%s11] sm:$0xff] %v2345
  %2369 = vst [vmem:[%s11 + $0x8] sm:$0xff] %v2348
  %2370 = vst [vmem:[%s11 + $0x10] sm:$0xff] %v2351
  %2371 = vst [vmem:[%s11 + $0x18] sm:$0xff] %v2354
  %2372 = vst [vmem:[%s11 + $0x20] sm:$0xff] %v2357
  %2373 = vst [vmem:[%s11 + $0x28] sm:$0xff] %v2360
  %2374 = vst [vmem:[%s11 + $0x30] sm:$0xff] %v2363
  %2375 = vst [vmem:[%s11 + $0x38] sm:$0xff] %v2366
  // Predicated region
  $region46: #{decoder_rnn_forward.1} parent=0 // pred_check
    _
  $region47: #{decoder_rnn_forward.1} parent=0 // pred_check_branch
    %2377 = sbr.rel (0) target = $region49
  $region48: #{decoder_rnn_forward.1} parent=0 // pred_region
    _
  $region49: #{decoder_rnn_forward.1} parent=0 // pred_fallthru
    _
  // Predicated region
  $region50: #{decoder_rnn_forward.1} parent=0 // pred_check
    _
  $region51: #{decoder_rnn_forward.1} parent=0 // pred_check_branch
    %2379 = sbr.rel (0) target = $region53
  $region52: #{decoder_rnn_forward.1} parent=0 // pred_region
    _
  $region53: #{decoder_rnn_forward.1} parent=0 // pred_fallthru
    _

</llo_original>
